<compile_context>
chip_gen: v7x
topology: tpu7x:2x2x1
jax: 0.10.0
libtpu: 0.0.40
codegen_flags: <defaults>
</compile_context>

<pallas_src>
import functools
import math

import jax
import jax.numpy as jnp
from jax.experimental import pallas as pl
from jax.experimental.pallas import tpu as pltpu

_BF16 = jnp.bfloat16
_F32 = jnp.float32


# --------------------------------------------------------------------------- helpers
def _vmem_limit_bytes():
    """Scoped-VMEM budget: half of physical, clamped to [32, 96] MiB (keeps v7x at 32 MiB)."""
    cap = None
    try:
        cap = getattr(pltpu.get_tpu_info(), "vmem_capacity_bytes", None)
    except Exception:
        cap = None
    if not cap:
        cap = 64 * 1024 * 1024
    return int(min(96 * 1024 * 1024, max(32 * 1024 * 1024, cap // 2)))


def _pick_tile(n, candidates=(512, 256, 128, 64, 32, 16, 8)):
    for t in candidates:
        if n % t == 0:
            return t
    return n


def _full_spec(a):
    return pl.BlockSpec(tuple(a.shape), lambda *_: (0,) * a.ndim)


# --------------------------------------------------------------------------- kernels
def _make_kv_kernel(sr_ratio, ln_eps=1e-5):
    """K / V projections as full-width matmuls, stored lane-dense (kv_tile, C)."""

    def kernel(*refs):
        if sr_ratio > 1:
            (p_ref, wsr_ref, bsr_ref, lnw_ref, lnb_ref,
             wk_ref, wv_ref, k_ref, v_ref) = refs
            p = p_ref[0]                                                     # (T, C*s*s) bf16
            xr = jnp.dot(p, wsr_ref[...],
                         preferred_element_type=_F32) + bsr_ref[...]        # (T, C) f32
            # centered-variance LayerNorm (robust vs E[x^2]-mu^2 cancellation)
            mu = jnp.mean(xr, axis=-1, keepdims=True)
            xc = xr - mu
            var = jnp.mean(xc * xc, axis=-1, keepdims=True)
            xr = xc * jax.lax.rsqrt(var + ln_eps) * lnw_ref[...] + lnb_ref[...]
            kv_in = xr.astype(_BF16)
        else:
            (x_ref, wk_ref, wv_ref, k_ref, v_ref) = refs
            kv_in = x_ref[0]                                                 # (T, C) bf16

        # Full-C-wide matmuls (use the whole MXU), unmasked lane-dense stores.
        k_ref[0] = jnp.dot(kv_in, wk_ref[...],
                           preferred_element_type=_F32).astype(k_ref.dtype)
        v_ref[0] = jnp.dot(kv_in, wv_ref[...],
                           preferred_element_type=_F32).astype(v_ref.dtype)

    return kernel


def _make_attn_kernel(num_heads, head_dim):
    """Attention + fused q / output projections on a (TQ, C) query tile."""

    def kernel(x_ref, k_ref, v_ref, wq_ref, wproj_ref, bproj_ref, o_ref, q_scr, o_scr):
        x = x_ref[0]                                                         # (TQ, C) bf16

        # Fused q projection (softmax scale folded into wq); parked in VMEM scratch so the
        # unrolled head loop never keeps a (TQ, C) value live in vregs.
        q_scr[...] = jnp.dot(x, wq_ref[...], preferred_element_type=_F32).astype(_BF16)

        for h in range(num_heads):
            lo = h * head_dim
            hi = lo + head_dim
            qh = q_scr[:, lo:hi]                                             # (TQ, hd)  bf16
            kh = k_ref[0, :, lo:hi]                                          # (Nkv, hd) bf16
            vh = v_ref[0, :, lo:hi]                                          # (Nkv, hd) bf16

            # scores: contract head dims (no explicit .T materialization)
            s = jax.lax.dot_general(qh, kh, (((1,), (1,)), ((), ())),
                                    preferred_element_type=_F32)             # (TQ, Nkv)
            s = s - jnp.max(s, axis=-1, keepdims=True)
            e = jnp.exp(s)
            denom = jnp.sum(e, axis=-1, keepdims=True)                       # (TQ, 1)

            # deferred softmax normalization: (e @ v) * (1/denom)
            oh = jnp.dot(e.astype(_BF16), vh, preferred_element_type=_F32)   # (TQ, hd)
            oh = oh * pl.reciprocal(denom, approx=True)
            o_scr[:, lo:hi] = oh.astype(_BF16)                               # heads lane-contiguous

        # One fused (TQ,C)@(C,C) output projection; bias added once.
        out = jnp.dot(o_scr[...], wproj_ref[...], preferred_element_type=_F32)
        o_ref[0] = (out + bproj_ref[...]).astype(o_ref.dtype)

    return kernel


# --------------------------------------------------------------------------- wrapper
def attention_pallas(x, H, W, params, *, num_heads, sr_ratio, q_tile=None):
    B, N, C = x.shape
    hd = C // num_heads
    scale = hd ** (-0.5)
    vmem_limit = _vmem_limit_bytes()

    # ---- weight prep (trace time): scale folded into wq; all matmul weights bf16, (in, out) ----
    wq = (params["q_w"].T * scale).astype(_BF16)                             # (C, C)
    wk = params["kv_w"][:C, :].T.astype(_BF16)                               # (C, C)
    wv = params["kv_w"][C:, :].T.astype(_BF16)                               # (C, C)
    wproj = params["proj_w"].T.astype(_BF16)                                 # (C, C)
    bproj = params["proj_b"].reshape(1, C).astype(_F32)

    x_bf = x.astype(_BF16)

    # ---- stage 1: K / V (with optional spatial reduction + LayerNorm) ----
    if sr_ratio > 1:
        s_ = sr_ratio
        Ho, Wo = H // s_, W // s_
        Nkv = Ho * Wo
        # im2col for the kernel==stride conv: only a local (s <-> W/s) axis swap, C stays
        # innermost (much cheaper than the old NCHW round trip).
        # TODO(synk): do the strided patch gather in-kernel from a resident x block to save
        # this remaining extra HBM pass.
        patches = x.reshape(B, Ho, s_, Wo, s_, C)
        patches = jnp.transpose(patches, (0, 1, 3, 2, 4, 5)).reshape(B, Nkv, s_ * s_ * C)
        patches = patches.astype(_BF16)
        wsr = jnp.transpose(params["sr_w"], (2, 3, 1, 0)).reshape(s_ * s_ * C, C).astype(_BF16)
        bsr = params["sr_b"].reshape(1, C).astype(_F32)
        lnw = params["ln_w"].reshape(1, C).astype(_F32)
        lnb = params["ln_b"].reshape(1, C).astype(_F32)
        kv_tile = _pick_tile(Nkv)
        kv_inputs = (patches, wsr, bsr, lnw, lnb, wk, wv)
        kv_in_specs = [
            pl.BlockSpec((1, kv_tile, s_ * s_ * C), lambda b, t: (b, t, 0)),
            _full_spec(wsr), _full_spec(bsr), _full_spec(lnw), _full_spec(lnb),
            _full_spec(wk), _full_spec(wv),
        ]
    else:
        Nkv = N
        kv_tile = _pick_tile(Nkv)
        kv_inputs = (x_bf, wk, wv)
        kv_in_specs = [
            pl.BlockSpec((1, kv_tile, C), lambda b, t: (b, t, 0)),
            _full_spec(wk), _full_spec(wv),
        ]

    n_kv = Nkv // kv_tile
    k_arr, v_arr = pl.pallas_call(
        _make_kv_kernel(sr_ratio),
        out_shape=(jax.ShapeDtypeStruct((B, Nkv, C), _BF16),
                   jax.ShapeDtypeStruct((B, Nkv, C), _BF16)),
        grid=(B, n_kv),
        in_specs=kv_in_specs,
        out_specs=(pl.BlockSpec((1, kv_tile, C), lambda b, t: (b, t, 0)),
                   pl.BlockSpec((1, kv_tile, C), lambda b, t: (b, t, 0))),
        compiler_params=pltpu.CompilerParams(
            dimension_semantics=("parallel", "parallel"),
            vmem_limit_bytes=vmem_limit),
    )(*kv_inputs)

    # ---- stage 2: attention + fused projections, tiled over queries ----
    if q_tile is None:
        q_tile = _pick_tile(N)
    assert N % q_tile == 0 and (q_tile == N or q_tile % 8 == 0)
    n_q = N // q_tile

    cost = pl.CostEstimate(
        flops=int(4 * B * N * C * (C + Nkv)),
        transcendentals=int(B * num_heads * N * Nkv),
        bytes_accessed=int(B * N * C * 2                    # x (bf16)
                           + 2 * B * Nkv * C * 2            # k, v (bf16)
                           + B * N * C * 4                  # out (f32)
                           + (wq.size + wproj.size) * 2 + bproj.size * 4),
    )

    # TODO(synk): for very large Nkv (sr_ratio==1, long sequences) add an Nkv grid axis with
    # online-softmax accumulation and single-buffer K/V (pl.Buffered) for the 64 MiB v7x VMEM.
    out = pl.pallas_call(
        _make_attn_kernel(num_heads, hd),
        out_shape=jax.ShapeDtypeStruct((B, N, C), x.dtype),
        grid=(B, n_q),
        in_specs=[
            pl.BlockSpec((1, q_tile, C), lambda b, t: (b, t, 0)),
            pl.BlockSpec((1, Nkv, C), lambda b, t: (b, 0, 0)),
            pl.BlockSpec((1, Nkv, C), lambda b, t: (b, 0, 0)),
            _full_spec(wq), _full_spec(wproj), _full_spec(bproj),
        ],
        out_specs=pl.BlockSpec((1, q_tile, C), lambda b, t: (b, t, 0)),
        scratch_shapes=[pltpu.VMEM((q_tile, C), _BF16),      # q projection
                        pltpu.VMEM((q_tile, C), _BF16)],     # per-head outputs (lane-contig)
        compiler_params=pltpu.CompilerParams(
            dimension_semantics=("parallel", "parallel"),
            vmem_limit_bytes=vmem_limit),
        cost_estimate=cost,
    )(x_bf, k_arr, v_arr, wq, wproj, bproj)
    return out


# --------------------------------------------------------------------------- reference
def attention_ref(x, H, W, params, *, num_heads, sr_ratio):
    """Pure-JAX fp32 reference matching the PyTorch forward exactly."""
    B, N, C = x.shape
    hd = C // num_heads
    scale = hd ** (-0.5)
    q = x @ params["q_w"].T
    q = q.reshape(B, N, num_heads, hd).transpose(0, 2, 1, 3)
    if sr_ratio > 1:
        s = sr_ratio
        x_ = jnp.transpose(x, (0, 2, 1)).reshape(B, C, H, W)
        x_ = jax.lax.conv_general_dilated(
            x_, params["sr_w"], window_strides=(s, s), padding="VALID",
            dimension_numbers=("NCHW", "OIHW", "NCHW"))
        x_ = x_ + params["sr_b"].reshape(1, C, 1, 1)
        x_ = x_.reshape(B, C, -1).transpose(0, 2, 1)
        mu = jnp.mean(x_, axis=-1, keepdims=True)
        var = jnp.mean((x_ - mu) ** 2, axis=-1, keepdims=True)
        x_ = (x_ - mu) / jnp.sqrt(var + 1e-5) * params["ln_w"] + params["ln_b"]
        kv_src = x_
    else:
        kv_src = x
    Nkv = kv_src.shape[1]
    kv = kv_src @ params["kv_w"].T
    kv = kv.reshape(B, Nkv, 2, num_heads, hd).transpose(2, 0, 3, 1, 4)
    k, v = kv[0], kv[1]
    attn = jnp.einsum("bhqd,bhkd->bhqk", q, k) * scale
    attn = jax.nn.softmax(attn, axis=-1)
    o = jnp.einsum("bhqk,bhkd->bhqd", attn, v)
    o = o.transpose(0, 2, 1, 3).reshape(B, N, C)
    return o @ params["proj_w"].T + params["proj_b"]


def init_params(key, C, sr_ratio):
    ks = jax.random.split(key, 4)
    tn = lambda k, shape: 0.02 * jax.random.truncated_normal(k, -2.0, 2.0, shape, jnp.float32)
    params = {
        "q_w": tn(ks[0], (C, C)),
        "kv_w": tn(ks[1], (2 * C, C)),
        "proj_w": tn(ks[2], (C, C)),
        "proj_b": jnp.zeros((C,), jnp.float32),
    }
    if sr_ratio > 1:
        fan_out = sr_ratio * sr_ratio * C
        params["sr_w"] = math.sqrt(2.0 / fan_out) * jax.random.normal(
            ks[3], (C, C, sr_ratio, sr_ratio), jnp.float32)
        params["sr_b"] = jnp.zeros((C,), jnp.float32)
        params["ln_w"] = jnp.ones((C,), jnp.float32)
        params["ln_b"] = jnp.zeros((C,), jnp.float32)
    return params


# --------------------------------------------------------------------------- demo
if __name__ == "__main__":
    B, H, W, C = 2, 16, 16, 32
    num_heads = 4
    N = H * W

    key = jax.random.PRNGKey(0)
    kx, kp1, kp2 = jax.random.split(key, 3)
    x = jax.random.normal(kx, (B, N, C), jnp.float32)

    # sr_ratio=2 with explicit multi-tile q grid; sr_ratio=1 with auto (large) q tile.
    for sr_ratio, kp, qt in ((2, kp1, 128), (1, kp2, None)):
        params = init_params(kp, C, sr_ratio)
        run = jax.jit(functools.partial(attention_pallas, num_heads=num_heads,
                                        sr_ratio=sr_ratio, q_tile=qt),
                      static_argnums=(1, 2))
        out = run(x, H, W, params)
        jax.block_until_ready(out)

        ref = attention_ref(x, H, W, params, num_heads=num_heads, sr_ratio=sr_ratio)
        assert out.shape == (B, N, C)
        err = float(jnp.max(jnp.abs(out - ref)))
        # bf16 matmul operands + approx reciprocal -> compare against fp32 ref loosely
        assert err < 2e-2, f"sr_ratio={sr_ratio}: max abs err {err}"

    print("KERNEL_OK")
</pallas_src>

<mosaic_0001>
module attributes {stable_mosaic.version = 11 : i64} {
  func.func @kernel(%arg0: i32, %arg1: i32, %arg2: memref<1x64x128xbf16, #tpu.memory_space<vmem>>, %arg3: memref<128x32xbf16, #tpu.memory_space<vmem>>, %arg4: memref<1x32xf32, #tpu.memory_space<vmem>>, %arg5: memref<1x32xf32, #tpu.memory_space<vmem>>, %arg6: memref<1x32xf32, #tpu.memory_space<vmem>>, %arg7: memref<32x32xbf16, #tpu.memory_space<vmem>>, %arg8: memref<32x32xbf16, #tpu.memory_space<vmem>>, %arg9: memref<1x64x32xbf16, #tpu.memory_space<vmem>>, %arg10: memref<1x64x32xbf16, #tpu.memory_space<vmem>>) attributes {dimension_semantics = [#tpu.dimension_semantics<parallel>, #tpu.dimension_semantics<parallel>], iteration_bounds = array<i64: 2, 1>, scalar_prefetch = 0 : i64, scratch_operands = 0 : i64, tpu.core_type = #tpu.core_type<tc>, window_params = [{transform_indices = @transform_0, window_bounds = array<i64: 1, 64, 128>}, {pipeline_mode = #tpu.pipeline_mode<synchronous>, transform_indices = @transform_1, window_bounds = array<i64: 128, 32>}, {pipeline_mode = #tpu.pipeline_mode<synchronous>, transform_indices = @transform_2, window_bounds = array<i64: 1, 32>}, {pipeline_mode = #tpu.pipeline_mode<synchronous>, transform_indices = @transform_3, window_bounds = array<i64: 1, 32>}, {pipeline_mode = #tpu.pipeline_mode<synchronous>, transform_indices = @transform_4, window_bounds = array<i64: 1, 32>}, {pipeline_mode = #tpu.pipeline_mode<synchronous>, transform_indices = @transform_5, window_bounds = array<i64: 32, 32>}, {pipeline_mode = #tpu.pipeline_mode<synchronous>, transform_indices = @transform_6, window_bounds = array<i64: 32, 32>}, {transform_indices = @transform_7, window_bounds = array<i64: 1, 64, 32>}, {transform_indices = @transform_8, window_bounds = array<i64: 1, 64, 32>}]} {
    %c0 = arith.constant 0 : index
    %c0_0 = arith.constant 0 : index
    %c0_1 = arith.constant 0 : index
    %0 = vector.load %arg2[%c0, %c0_0, %c0_1] : memref<1x64x128xbf16, #tpu.memory_space<vmem>>, vector<1x64x128xbf16>
    %1 = vector.shape_cast %0 : vector<1x64x128xbf16> to vector<64x128xbf16>
    %c0_2 = arith.constant 0 : index
    %c0_3 = arith.constant 0 : index
    %2 = vector.load %arg3[%c0_2, %c0_3] : memref<128x32xbf16, #tpu.memory_space<vmem>>, vector<128x32xbf16>
    %cst = arith.constant dense<0.000000e+00> : vector<64x32xf32>
    %3 = tpu.matmul %1, %2, %cst {dimension_numbers = #tpu.dot_dimension_numbers<[1], [0], [0], [1], [0, 0, 1, 1], [], []>} : vector<64x128xbf16>, vector<128x32xbf16>, vector<64x32xf32> -> vector<64x32xf32>
    %c0_4 = arith.constant 0 : index
    %c0_5 = arith.constant 0 : index
    %4 = vector.load %arg4[%c0_4, %c0_5] : memref<1x32xf32, #tpu.memory_space<vmem>>, vector<1x32xf32>
    %5 = vector.broadcast %4 : vector<1x32xf32> to vector<64x32xf32>
    %6 = arith.addf %3, %5 : vector<64x32xf32>
    %cst_6 = arith.constant dense<0.000000e+00> : vector<64xf32>
    %7 = vector.multi_reduction <add>, %6, %cst_6 [1] : vector<64x32xf32> to vector<64xf32>
    %8 = vector.shape_cast %7 : vector<64xf32> to vector<64x1xf32>
    %cst_7 = arith.constant 3.200000e+01 : f32
    %9 = vector.broadcast %cst_7 : f32 to vector<64x1xf32>
    %10 = arith.divf %8, %9 : vector<64x1xf32>
    %11 = vector.broadcast %10 : vector<64x1xf32> to vector<64x32xf32>
    %12 = arith.subf %6, %11 : vector<64x32xf32>
    %13 = arith.mulf %12, %12 : vector<64x32xf32>
    %cst_8 = arith.constant dense<0.000000e+00> : vector<64xf32>
    %14 = vector.multi_reduction <add>, %13, %cst_8 [1] : vector<64x32xf32> to vector<64xf32>
    %15 = vector.shape_cast %14 : vector<64xf32> to vector<64x1xf32>
    %cst_9 = arith.constant 3.200000e+01 : f32
    %16 = vector.broadcast %cst_9 : f32 to vector<64x1xf32>
    %17 = arith.divf %15, %16 : vector<64x1xf32>
    %cst_10 = arith.constant 9.99999974E-6 : f32
    %18 = vector.broadcast %cst_10 : f32 to vector<64x1xf32>
    %19 = arith.addf %17, %18 : vector<64x1xf32>
    %20 = math.rsqrt %19 : vector<64x1xf32>
    %21 = vector.broadcast %20 : vector<64x1xf32> to vector<64x32xf32>
    %22 = arith.mulf %12, %21 : vector<64x32xf32>
    %c0_11 = arith.constant 0 : index
    %c0_12 = arith.constant 0 : index
    %23 = vector.load %arg5[%c0_11, %c0_12] : memref<1x32xf32, #tpu.memory_space<vmem>>, vector<1x32xf32>
    %24 = vector.broadcast %23 : vector<1x32xf32> to vector<64x32xf32>
    %25 = arith.mulf %22, %24 : vector<64x32xf32>
    %c0_13 = arith.constant 0 : index
    %c0_14 = arith.constant 0 : index
    %26 = vector.load %arg6[%c0_13, %c0_14] : memref<1x32xf32, #tpu.memory_space<vmem>>, vector<1x32xf32>
    %27 = vector.broadcast %26 : vector<1x32xf32> to vector<64x32xf32>
    %28 = arith.addf %25, %27 : vector<64x32xf32>
    %29 = arith.truncf %28 : vector<64x32xf32> to vector<64x32xbf16>
    %c0_15 = arith.constant 0 : index
    %c0_16 = arith.constant 0 : index
    %30 = vector.load %arg7[%c0_15, %c0_16] : memref<32x32xbf16, #tpu.memory_space<vmem>>, vector<32x32xbf16>
    %cst_17 = arith.constant dense<0.000000e+00> : vector<64x32xf32>
    %31 = tpu.matmul %29, %30, %cst_17 {dimension_numbers = #tpu.dot_dimension_numbers<[1], [0], [0], [1], [0, 0, 1, 1], [], []>} : vector<64x32xbf16>, vector<32x32xbf16>, vector<64x32xf32> -> vector<64x32xf32>
    %32 = arith.truncf %31 : vector<64x32xf32> to vector<64x32xbf16>
    %c0_18 = arith.constant 0 : index
    %c0_19 = arith.constant 0 : index
    %c0_20 = arith.constant 0 : index
    %33 = vector.load %arg9[%c0_18, %c0_19, %c0_20] : memref<1x64x32xbf16, #tpu.memory_space<vmem>>, vector<1x64x32xbf16>
    %34 = vector.shape_cast %33 : vector<1x64x32xbf16> to vector<64x32xbf16>
    %35 = vector.shape_cast %32 : vector<64x32xbf16> to vector<1x64x32xbf16>
    tpu.vector_store %arg9[%c0_18, %c0_19, %c0_20], %35 {strides = array<i32>} : memref<1x64x32xbf16, #tpu.memory_space<vmem>>, vector<1x64x32xbf16>,
    %c0_21 = arith.constant 0 : index
    %c0_22 = arith.constant 0 : index
    %36 = vector.load %arg8[%c0_21, %c0_22] : memref<32x32xbf16, #tpu.memory_space<vmem>>, vector<32x32xbf16>
    %cst_23 = arith.constant dense<0.000000e+00> : vector<64x32xf32>
    %37 = tpu.matmul %29, %36, %cst_23 {dimension_numbers = #tpu.dot_dimension_numbers<[1], [0], [0], [1], [0, 0, 1, 1], [], []>} : vector<64x32xbf16>, vector<32x32xbf16>, vector<64x32xf32> -> vector<64x32xf32>
    %38 = arith.truncf %37 : vector<64x32xf32> to vector<64x32xbf16>
    %c0_24 = arith.constant 0 : index
    %c0_25 = arith.constant 0 : index
    %c0_26 = arith.constant 0 : index
    %39 = vector.load %arg10[%c0_24, %c0_25, %c0_26] : memref<1x64x32xbf16, #tpu.memory_space<vmem>>, vector<1x64x32xbf16>
    %40 = vector.shape_cast %39 : vector<1x64x32xbf16> to vector<64x32xbf16>
    %41 = vector.shape_cast %38 : vector<64x32xbf16> to vector<1x64x32xbf16>
    tpu.vector_store %arg10[%c0_24, %c0_25, %c0_26], %41 {strides = array<i32>} : memref<1x64x32xbf16, #tpu.memory_space<vmem>>, vector<1x64x32xbf16>,
    return
  }
  func.func @transform_0(%arg0: i32, %arg1: i32) -> (i32, i32, i32) {
    %c0_i32 = arith.constant 0 : i32
    %c0_i32_0 = arith.constant 0 : i32
    return %arg0, %arg1, %c0_i32 : i32, i32, i32
  }
  func.func @transform_1(%arg0: i32, %arg1: i32) -> (i32, i32) {
    %c0_i32 = arith.constant 0 : i32
    %c0_i32_0 = arith.constant 0 : i32
    %c0_i32_1 = arith.constant 0 : i32
    return %c0_i32, %c0_i32_0 : i32, i32
  }
  func.func @transform_2(%arg0: i32, %arg1: i32) -> (i32, i32) {
    %c0_i32 = arith.constant 0 : i32
    %c0_i32_0 = arith.constant 0 : i32
    %c0_i32_1 = arith.constant 0 : i32
    return %c0_i32, %c0_i32_0 : i32, i32
  }
  func.func @transform_3(%arg0: i32, %arg1: i32) -> (i32, i32) {
    %c0_i32 = arith.constant 0 : i32
    %c0_i32_0 = arith.constant 0 : i32
    %c0_i32_1 = arith.constant 0 : i32
    return %c0_i32, %c0_i32_0 : i32, i32
  }
  func.func @transform_4(%arg0: i32, %arg1: i32) -> (i32, i32) {
    %c0_i32 = arith.constant 0 : i32
    %c0_i32_0 = arith.constant 0 : i32
    %c0_i32_1 = arith.constant 0 : i32
    return %c0_i32, %c0_i32_0 : i32, i32
  }
  func.func @transform_5(%arg0: i32, %arg1: i32) -> (i32, i32) {
    %c0_i32 = arith.constant 0 : i32
    %c0_i32_0 = arith.constant 0 : i32
    %c0_i32_1 = arith.constant 0 : i32
    return %c0_i32, %c0_i32_0 : i32, i32
  }
  func.func @transform_6(%arg0: i32, %arg1: i32) -> (i32, i32) {
    %c0_i32 = arith.constant 0 : i32
    %c0_i32_0 = arith.constant 0 : i32
    %c0_i32_1 = arith.constant 0 : i32
    return %c0_i32, %c0_i32_0 : i32, i32
  }
  func.func @transform_7(%arg0: i32, %arg1: i32) -> (i32, i32, i32) {
    %c0_i32 = arith.constant 0 : i32
    %c0_i32_0 = arith.constant 0 : i32
    return %arg0, %arg1, %c0_i32 : i32, i32, i32
  }
  func.func @transform_8(%arg0: i32, %arg1: i32) -> (i32, i32, i32) {
    %c0_i32 = arith.constant 0 : i32
    %c0_i32_0 = arith.constant 0 : i32
    return %arg0, %arg1, %c0_i32 : i32, i32, i32
  }
}

module attributes {stable_mosaic.version = 11 : i64} {
  func.func @kernel(%arg0: i32, %arg1: i32, %arg2: memref<1x128x32xbf16, #tpu.memory_space<vmem>>, %arg3: memref<1x64x32xbf16, #tpu.memory_space<vmem>>, %arg4: memref<1x64x32xbf16, #tpu.memory_space<vmem>>, %arg5: memref<32x32xbf16, #tpu.memory_space<vmem>>, %arg6: memref<32x32xbf16, #tpu.memory_space<vmem>>, %arg7: memref<1x32xf32, #tpu.memory_space<vmem>>, %arg8: memref<1x128x32xf32, #tpu.memory_space<vmem>>, %arg9: memref<128x32xbf16, #tpu.memory_space<vmem>>, %arg10: memref<128x32xbf16, #tpu.memory_space<vmem>>) attributes {dimension_semantics = [#tpu.dimension_semantics<parallel>, #tpu.dimension_semantics<parallel>], iteration_bounds = array<i64: 2, 2>, scalar_prefetch = 0 : i64, scratch_operands = 2 : i64, tpu.core_type = #tpu.core_type<tc>, window_params = [{transform_indices = @transform_0, window_bounds = array<i64: 1, 128, 32>}, {transform_indices = @transform_1, window_bounds = array<i64: 1, 64, 32>}, {transform_indices = @transform_2, window_bounds = array<i64: 1, 64, 32>}, {pipeline_mode = #tpu.pipeline_mode<synchronous>, transform_indices = @transform_3, window_bounds = array<i64: 32, 32>}, {pipeline_mode = #tpu.pipeline_mode<synchronous>, transform_indices = @transform_4, window_bounds = array<i64: 32, 32>}, {pipeline_mode = #tpu.pipeline_mode<synchronous>, transform_indices = @transform_5, window_bounds = array<i64: 1, 32>}, {transform_indices = @transform_6, window_bounds = array<i64: 1, 128, 32>}]} {
    %c0 = arith.constant 0 : index
    %c0_0 = arith.constant 0 : index
    %c0_1 = arith.constant 0 : index
    %0 = vector.load %arg2[%c0, %c0_0, %c0_1] : memref<1x128x32xbf16, #tpu.memory_space<vmem>>, vector<1x128x32xbf16>
    %1 = vector.shape_cast %0 : vector<1x128x32xbf16> to vector<128x32xbf16>
    %c0_2 = arith.constant 0 : index
    %c0_3 = arith.constant 0 : index
    %2 = vector.load %arg5[%c0_2, %c0_3] : memref<32x32xbf16, #tpu.memory_space<vmem>>, vector<32x32xbf16>
    %cst = arith.constant dense<0.000000e+00> : vector<128x32xf32>
    %3 = tpu.matmul %1, %2, %cst {dimension_numbers = #tpu.dot_dimension_numbers<[1], [0], [0], [1], [0, 0, 1, 1], [], []>} : vector<128x32xbf16>, vector<32x32xbf16>, vector<128x32xf32> -> vector<128x32xf32>
    %4 = arith.truncf %3 : vector<128x32xf32> to vector<128x32xbf16>
    %c0_4 = arith.constant 0 : index
    %c0_5 = arith.constant 0 : index
    %5 = vector.load %arg9[%c0_4, %c0_5] : memref<128x32xbf16, #tpu.memory_space<vmem>>, vector<128x32xbf16>
    tpu.vector_store %arg9[%c0_4, %c0_5], %4 {strides = array<i32>} : memref<128x32xbf16, #tpu.memory_space<vmem>>, vector<128x32xbf16>,
    %c0_6 = arith.constant 0 : index
    %c0_7 = arith.constant 0 : index
    %6 = vector.load %arg9[%c0_6, %c0_7] : memref<128x32xbf16, #tpu.memory_space<vmem>>, vector<128x8xbf16>
    %c0_8 = arith.constant 0 : index
    %c0_9 = arith.constant 0 : index
    %c0_10 = arith.constant 0 : index
    %7 = vector.load %arg3[%c0_8, %c0_9, %c0_10] : memref<1x64x32xbf16, #tpu.memory_space<vmem>>, vector<1x64x8xbf16>
    %8 = vector.shape_cast %7 : vector<1x64x8xbf16> to vector<64x8xbf16>
    %c0_11 = arith.constant 0 : index
    %c0_12 = arith.constant 0 : index
    %c0_13 = arith.constant 0 : index
    %9 = vector.load %arg4[%c0_11, %c0_12, %c0_13] : memref<1x64x32xbf16, #tpu.memory_space<vmem>>, vector<1x64x8xbf16>
    %10 = vector.shape_cast %9 : vector<1x64x8xbf16> to vector<64x8xbf16>
    %cst_14 = arith.constant dense<0.000000e+00> : vector<128x64xf32>
    %11 = tpu.matmul %6, %8, %cst_14 {dimension_numbers = #tpu.dot_dimension_numbers<[1], [1], [0], [0], [0, 0, 1, 0], [], []>} : vector<128x8xbf16>, vector<64x8xbf16>, vector<128x64xf32> -> vector<128x64xf32>
    %cst_15 = arith.constant dense<0xFF800000> : vector<128xf32>
    %12 = vector.multi_reduction <maximumf>, %11, %cst_15 [1] : vector<128x64xf32> to vector<128xf32>
    %13 = vector.shape_cast %12 : vector<128xf32> to vector<128x1xf32>
    %14 = vector.broadcast %13 : vector<128x1xf32> to vector<128x64xf32>
    %15 = arith.subf %11, %14 : vector<128x64xf32>
    %16 = math.exp %15 : vector<128x64xf32>
    %cst_16 = arith.constant dense<0.000000e+00> : vector<128xf32>
    %17 = vector.multi_reduction <add>, %16, %cst_16 [1] : vector<128x64xf32> to vector<128xf32>
    %18 = vector.shape_cast %17 : vector<128xf32> to vector<128x1xf32>
    %19 = arith.truncf %16 : vector<128x64xf32> to vector<128x64xbf16>
    %cst_17 = arith.constant dense<0.000000e+00> : vector<128x8xf32>
    %20 = tpu.matmul %19, %10, %cst_17 {dimension_numbers = #tpu.dot_dimension_numbers<[1], [0], [0], [1], [0, 0, 1, 1], [], []>} : vector<128x64xbf16>, vector<64x8xbf16>, vector<128x8xf32> -> vector<128x8xf32>
    %21 = tpu.reciprocal %18 {approx = true} : vector<128x1xf32> -> vector<128x1xf32>
    %22 = vector.broadcast %21 : vector<128x1xf32> to vector<128x8xf32>
    %23 = arith.mulf %20, %22 : vector<128x8xf32>
    %24 = arith.truncf %23 : vector<128x8xf32> to vector<128x8xbf16>
    %c0_18 = arith.constant 0 : index
    %c0_19 = arith.constant 0 : index
    %25 = vector.load %arg10[%c0_18, %c0_19] : memref<128x32xbf16, #tpu.memory_space<vmem>>, vector<128x8xbf16>
    tpu.vector_store %arg10[%c0_18, %c0_19], %24 {strides = array<i32>} : memref<128x32xbf16, #tpu.memory_space<vmem>>, vector<128x8xbf16>,
    %c0_20 = arith.constant 0 : index
    %c8 = arith.constant 8 : index
    %26 = vector.load %arg9[%c0_20, %c8] : memref<128x32xbf16, #tpu.memory_space<vmem>>, vector<128x8xbf16>
    %c0_21 = arith.constant 0 : index
    %c0_22 = arith.constant 0 : index
    %c8_23 = arith.constant 8 : index
    %27 = vector.load %arg3[%c0_21, %c0_22, %c8_23] : memref<1x64x32xbf16, #tpu.memory_space<vmem>>, vector<1x64x8xbf16>
    %28 = vector.shape_cast %27 : vector<1x64x8xbf16> to vector<64x8xbf16>
    %c0_24 = arith.constant 0 : index
    %c0_25 = arith.constant 0 : index
    %c8_26 = arith.constant 8 : index
    %29 = vector.load %arg4[%c0_24, %c0_25, %c8_26] : memref<1x64x32xbf16, #tpu.memory_space<vmem>>, vector<1x64x8xbf16>
    %30 = vector.shape_cast %29 : vector<1x64x8xbf16> to vector<64x8xbf16>
    %cst_27 = arith.constant dense<0.000000e+00> : vector<128x64xf32>
    %31 = tpu.matmul %26, %28, %cst_27 {dimension_numbers = #tpu.dot_dimension_numbers<[1], [1], [0], [0], [0, 0, 1, 0], [], []>} : vector<128x8xbf16>, vector<64x8xbf16>, vector<128x64xf32> -> vector<128x64xf32>
    %cst_28 = arith.constant dense<0xFF800000> : vector<128xf32>
    %32 = vector.multi_reduction <maximumf>, %31, %cst_28 [1] : vector<128x64xf32> to vector<128xf32>
    %33 = vector.shape_cast %32 : vector<128xf32> to vector<128x1xf32>
    %34 = vector.broadcast %33 : vector<128x1xf32> to vector<128x64xf32>
    %35 = arith.subf %31, %34 : vector<128x64xf32>
    %36 = math.exp %35 : vector<128x64xf32>
    %cst_29 = arith.constant dense<0.000000e+00> : vector<128xf32>
    %37 = vector.multi_reduction <add>, %36, %cst_29 [1] : vector<128x64xf32> to vector<128xf32>
    %38 = vector.shape_cast %37 : vector<128xf32> to vector<128x1xf32>
    %39 = arith.truncf %36 : vector<128x64xf32> to vector<128x64xbf16>
    %cst_30 = arith.constant dense<0.000000e+00> : vector<128x8xf32>
    %40 = tpu.matmul %39, %30, %cst_30 {dimension_numbers = #tpu.dot_dimension_numbers<[1], [0], [0], [1], [0, 0, 1, 1], [], []>} : vector<128x64xbf16>, vector<64x8xbf16>, vector<128x8xf32> -> vector<128x8xf32>
    %41 = tpu.reciprocal %38 {approx = true} : vector<128x1xf32> -> vector<128x1xf32>
    %42 = vector.broadcast %41 : vector<128x1xf32> to vector<128x8xf32>
    %43 = arith.mulf %40, %42 : vector<128x8xf32>
    %44 = arith.truncf %43 : vector<128x8xf32> to vector<128x8xbf16>
    %c0_31 = arith.constant 0 : index
    %c8_32 = arith.constant 8 : index
    %45 = vector.load %arg10[%c0_31, %c8_32] : memref<128x32xbf16, #tpu.memory_space<vmem>>, vector<128x8xbf16>
    tpu.vector_store %arg10[%c0_31, %c8_32], %44 {strides = array<i32>} : memref<128x32xbf16, #tpu.memory_space<vmem>>, vector<128x8xbf16>,
    %c0_33 = arith.constant 0 : index
    %c16 = arith.constant 16 : index
    %46 = vector.load %arg9[%c0_33, %c16] : memref<128x32xbf16, #tpu.memory_space<vmem>>, vector<128x8xbf16>
    %c0_34 = arith.constant 0 : index
    %c0_35 = arith.constant 0 : index
    %c16_36 = arith.constant 16 : index
    %47 = vector.load %arg3[%c0_34, %c0_35, %c16_36] : memref<1x64x32xbf16, #tpu.memory_space<vmem>>, vector<1x64x8xbf16>
    %48 = vector.shape_cast %47 : vector<1x64x8xbf16> to vector<64x8xbf16>
    %c0_37 = arith.constant 0 : index
    %c0_38 = arith.constant 0 : index
    %c16_39 = arith.constant 16 : index
    %49 = vector.load %arg4[%c0_37, %c0_38, %c16_39] : memref<1x64x32xbf16, #tpu.memory_space<vmem>>, vector<1x64x8xbf16>
    %50 = vector.shape_cast %49 : vector<1x64x8xbf16> to vector<64x8xbf16>
    %cst_40 = arith.constant dense<0.000000e+00> : vector<128x64xf32>
    %51 = tpu.matmul %46, %48, %cst_40 {dimension_numbers = #tpu.dot_dimension_numbers<[1], [1], [0], [0], [0, 0, 1, 0], [], []>} : vector<128x8xbf16>, vector<64x8xbf16>, vector<128x64xf32> -> vector<128x64xf32>
    %cst_41 = arith.constant dense<0xFF800000> : vector<128xf32>
    %52 = vector.multi_reduction <maximumf>, %51, %cst_41 [1] : vector<128x64xf32> to vector<128xf32>
    %53 = vector.shape_cast %52 : vector<128xf32> to vector<128x1xf32>
    %54 = vector.broadcast %53 : vector<128x1xf32> to vector<128x64xf32>
    %55 = arith.subf %51, %54 : vector<128x64xf32>
    %56 = math.exp %55 : vector<128x64xf32>
    %cst_42 = arith.constant dense<0.000000e+00> : vector<128xf32>
    %57 = vector.multi_reduction <add>, %56, %cst_42 [1] : vector<128x64xf32> to vector<128xf32>
    %58 = vector.shape_cast %57 : vector<128xf32> to vector<128x1xf32>
    %59 = arith.truncf %56 : vector<128x64xf32> to vector<128x64xbf16>
    %cst_43 = arith.constant dense<0.000000e+00> : vector<128x8xf32>
    %60 = tpu.matmul %59, %50, %cst_43 {dimension_numbers = #tpu.dot_dimension_numbers<[1], [0], [0], [1], [0, 0, 1, 1], [], []>} : vector<128x64xbf16>, vector<64x8xbf16>, vector<128x8xf32> -> vector<128x8xf32>
    %61 = tpu.reciprocal %58 {approx = true} : vector<128x1xf32> -> vector<128x1xf32>
    %62 = vector.broadcast %61 : vector<128x1xf32> to vector<128x8xf32>
    %63 = arith.mulf %60, %62 : vector<128x8xf32>
    %64 = arith.truncf %63 : vector<128x8xf32> to vector<128x8xbf16>
    %c0_44 = arith.constant 0 : index
    %c16_45 = arith.constant 16 : index
    %65 = vector.load %arg10[%c0_44, %c16_45] : memref<128x32xbf16, #tpu.memory_space<vmem>>, vector<128x8xbf16>
    tpu.vector_store %arg10[%c0_44, %c16_45], %64 {strides = array<i32>} : memref<128x32xbf16, #tpu.memory_space<vmem>>, vector<128x8xbf16>,
    %c0_46 = arith.constant 0 : index
    %c24 = arith.constant 24 : index
    %66 = vector.load %arg9[%c0_46, %c24] : memref<128x32xbf16, #tpu.memory_space<vmem>>, vector<128x8xbf16>
    %c0_47 = arith.constant 0 : index
    %c0_48 = arith.constant 0 : index
    %c24_49 = arith.constant 24 : index
    %67 = vector.load %arg3[%c0_47, %c0_48, %c24_49] : memref<1x64x32xbf16, #tpu.memory_space<vmem>>, vector<1x64x8xbf16>
    %68 = vector.shape_cast %67 : vector<1x64x8xbf16> to vector<64x8xbf16>
    %c0_50 = arith.constant 0 : index
    %c0_51 = arith.constant 0 : index
    %c24_52 = arith.constant 24 : index
    %69 = vector.load %arg4[%c0_50, %c0_51, %c24_52] : memref<1x64x32xbf16, #tpu.memory_space<vmem>>, vector<1x64x8xbf16>
    %70 = vector.shape_cast %69 : vector<1x64x8xbf16> to vector<64x8xbf16>
    %cst_53 = arith.constant dense<0.000000e+00> : vector<128x64xf32>
    %71 = tpu.matmul %66, %68, %cst_53 {dimension_numbers = #tpu.dot_dimension_numbers<[1], [1], [0], [0], [0, 0, 1, 0], [], []>} : vector<128x8xbf16>, vector<64x8xbf16>, vector<128x64xf32> -> vector<128x64xf32>
    %cst_54 = arith.constant dense<0xFF800000> : vector<128xf32>
    %72 = vector.multi_reduction <maximumf>, %71, %cst_54 [1] : vector<128x64xf32> to vector<128xf32>
    %73 = vector.shape_cast %72 : vector<128xf32> to vector<128x1xf32>
    %74 = vector.broadcast %73 : vector<128x1xf32> to vector<128x64xf32>
    %75 = arith.subf %71, %74 : vector<128x64xf32>
    %76 = math.exp %75 : vector<128x64xf32>
    %cst_55 = arith.constant dense<0.000000e+00> : vector<128xf32>
    %77 = vector.multi_reduction <add>, %76, %cst_55 [1] : vector<128x64xf32> to vector<128xf32>
    %78 = vector.shape_cast %77 : vector<128xf32> to vector<128x1xf32>
    %79 = arith.truncf %76 : vector<128x64xf32> to vector<128x64xbf16>
    %cst_56 = arith.constant dense<0.000000e+00> : vector<128x8xf32>
    %80 = tpu.matmul %79, %70, %cst_56 {dimension_numbers = #tpu.dot_dimension_numbers<[1], [0], [0], [1], [0, 0, 1, 1], [], []>} : vector<128x64xbf16>, vector<64x8xbf16>, vector<128x8xf32> -> vector<128x8xf32>
    %81 = tpu.reciprocal %78 {approx = true} : vector<128x1xf32> -> vector<128x1xf32>
    %82 = vector.broadcast %81 : vector<128x1xf32> to vector<128x8xf32>
    %83 = arith.mulf %80, %82 : vector<128x8xf32>
    %84 = arith.truncf %83 : vector<128x8xf32> to vector<128x8xbf16>
    %c0_57 = arith.constant 0 : index
    %c24_58 = arith.constant 24 : index
    %85 = vector.load %arg10[%c0_57, %c24_58] : memref<128x32xbf16, #tpu.memory_space<vmem>>, vector<128x8xbf16>
    tpu.vector_store %arg10[%c0_57, %c24_58], %84 {strides = array<i32>} : memref<128x32xbf16, #tpu.memory_space<vmem>>, vector<128x8xbf16>,
    %c0_59 = arith.constant 0 : index
    %c0_60 = arith.constant 0 : index
    %86 = vector.load %arg10[%c0_59, %c0_60] : memref<128x32xbf16, #tpu.memory_space<vmem>>, vector<128x32xbf16>
    %c0_61 = arith.constant 0 : index
    %c0_62 = arith.constant 0 : index
    %87 = vector.load %arg6[%c0_61, %c0_62] : memref<32x32xbf16, #tpu.memory_space<vmem>>, vector<32x32xbf16>
    %cst_63 = arith.constant dense<0.000000e+00> : vector<128x32xf32>
    %88 = tpu.matmul %86, %87, %cst_63 {dimension_numbers = #tpu.dot_dimension_numbers<[1], [0], [0], [1], [0, 0, 1, 1], [], []>} : vector<128x32xbf16>, vector<32x32xbf16>, vector<128x32xf32> -> vector<128x32xf32>
    %c0_64 = arith.constant 0 : index
    %c0_65 = arith.constant 0 : index
    %89 = vector.load %arg7[%c0_64, %c0_65] : memref<1x32xf32, #tpu.memory_space<vmem>>, vector<1x32xf32>
    %90 = vector.broadcast %89 : vector<1x32xf32> to vector<128x32xf32>
    %91 = arith.addf %88, %90 : vector<128x32xf32>
    %c0_66 = arith.constant 0 : index
    %c0_67 = arith.constant 0 : index
    %c0_68 = arith.constant 0 : index
    %92 = vector.load %arg8[%c0_66, %c0_67, %c0_68] : memref<1x128x32xf32, #tpu.memory_space<vmem>>, vector<1x128x32xf32>
    %93 = vector.shape_cast %92 : vector<1x128x32xf32> to vector<128x32xf32>
    %94 = vector.shape_cast %91 : vector<128x32xf32> to vector<1x128x32xf32>
    tpu.vector_store %arg8[%c0_66, %c0_67, %c0_68], %94 {strides = array<i32>} : memref<1x128x32xf32, #tpu.memory_space<vmem>>, vector<1x128x32xf32>,
    return
  }
  func.func @transform_0(%arg0: i32, %arg1: i32) -> (i32, i32, i32) {
    %c0_i32 = arith.constant 0 : i32
    %c0_i32_0 = arith.constant 0 : i32
    return %arg0, %arg1, %c0_i32 : i32, i32, i32
  }
  func.func @transform_1(%arg0: i32, %arg1: i32) -> (i32, i32, i32) {
    %c0_i32 = arith.constant 0 : i32
    %c0_i32_0 = arith.constant 0 : i32
    %c0_i32_1 = arith.constant 0 : i32
    return %arg0, %c0_i32, %c0_i32_0 : i32, i32, i32
  }
  func.func @transform_2(%arg0: i32, %arg1: i32) -> (i32, i32, i32) {
    %c0_i32 = arith.constant 0 : i32
    %c0_i32_0 = arith.constant 0 : i32
    %c0_i32_1 = arith.constant 0 : i32
    return %arg0, %c0_i32, %c0_i32_0 : i32, i32, i32
  }
  func.func @transform_3(%arg0: i32, %arg1: i32) -> (i32, i32) {
    %c0_i32 = arith.constant 0 : i32
    %c0_i32_0 = arith.constant 0 : i32
    %c0_i32_1 = arith.constant 0 : i32
    return %c0_i32, %c0_i32_0 : i32, i32
  }
  func.func @transform_4(%arg0: i32, %arg1: i32) -> (i32, i32) {
    %c0_i32 = arith.constant 0 : i32
    %c0_i32_0 = arith.constant 0 : i32
    %c0_i32_1 = arith.constant 0 : i32
    return %c0_i32, %c0_i32_0 : i32, i32
  }
  func.func @transform_5(%arg0: i32, %arg1: i32) -> (i32, i32) {
    %c0_i32 = arith.constant 0 : i32
    %c0_i32_0 = arith.constant 0 : i32
    %c0_i32_1 = arith.constant 0 : i32
    return %c0_i32, %c0_i32_0 : i32, i32
  }
  func.func @transform_6(%arg0: i32, %arg1: i32) -> (i32, i32, i32) {
    %c0_i32 = arith.constant 0 : i32
    %c0_i32_0 = arith.constant 0 : i32
    return %arg0, %arg1, %c0_i32 : i32, i32, i32
  }
}

</mosaic_0001>

<llo_original>
// kernel: attention_pallas.2
$region0: #{attention_pallas.2}
  #allocation0 [shape = 'u32[]', space=smem, size = 0x4, offset = 0x4, fixed_abs, tag = 'smem constant byte address 0x4 - core index']
  #allocation1 [shape = 'u32[144,128]{1,0:T(1,128)}', space=vmem, size = 0x12000, scoped, tag = 'internal scratch']
  %s0 = inlined_call_operand.vmem [shape: bf16[2,64,128], index: 0, kind: input, shape index: {}]
  %s1 = inlined_call_operand.vmem [shape: bf16[128,32], index: 1, kind: input, shape index: {}]
  %s2 = inlined_call_operand.vmem [shape: f32[1,32], index: 2, kind: input, shape index: {}]
  %s3 = inlined_call_operand.vmem [shape: f32[1,32], index: 3, kind: input, shape index: {}]
  %s4 = inlined_call_operand.vmem [shape: f32[1,32], index: 4, kind: input, shape index: {}]
  %s5 = inlined_call_operand.vmem [shape: bf16[32,32], index: 5, kind: input, shape index: {}]
  %s6 = inlined_call_operand.vmem [shape: bf16[32,32], index: 6, kind: input, shape index: {}]
  %s7 = inlined_call_operand.vmem [shape: bf16[2,64,32], index: 7, kind: output, shape index: {0}]
  %s8 = inlined_call_operand.vmem [shape: bf16[2,64,32], index: 8, kind: output, shape index: {1}]
  %9 = xla_tuple %s7, %s8
  %s10 = sld [smem:[#allocation0]]
  $region69: #{attention_pallas.2} parent=0
    _
  %s12 = ssub.s32 1, %s10
  %s13 = scalar_select 0, %s12, %s10
  loop: start=0, step=1, limit=4
  $region2: #{attention_pallas.2} parent=0 // loop_pre_header
    _
  $region3: #{attention_pallas.2} parent=0 // loop_header
    %s15 = sphi 0, %s19
    %p16 = scmp.ge.s32.totalorder %s15, 4
    %s22 = sphi 0, %s34
    %s23 = sphi 0, %s30
    %s24 = sphi 0, %s22
    %s25 = sphi 0, %s23
    %s26 = sphi 0, %s24
    %s27 = sphi 0, %s25
    %s39 = sphi 0, %s41
    %s42 = sphi 0, %s39
    %s43 = sphi 0, %s42
    %s59 = sphi 0, %s43
    %s63 = sphi 0, %s63
    %s65 = sphi 0, %s63
    %s66 = sphi 0, %s65
    %s80 = sphi 0, %s66
    %s84 = sphi 0, %s84
    %s86 = sphi 0, %s84
    %s87 = sphi 0, %s86
    %s101 = sphi 0, %s87
    %s105 = sphi 0, %s105
    %s107 = sphi 0, %s105
    %s108 = sphi 0, %s107
    %s122 = sphi 0, %s108
    %s126 = sphi 0, %s126
    %s128 = sphi 0, %s126
    %s129 = sphi 0, %s128
    %s143 = sphi 0, %s129
    %s147 = sphi 0, %s147
    %s149 = sphi 0, %s147
    %s150 = sphi 0, %s149
    %s164 = sphi 0, %s150
    %s168 = sphi 0, %s168
    %s170 = sphi 0, %s168
    %s171 = sphi 0, %s170
    %s185 = sphi 0, %s171
    %s193 = sphi 0, %s195
    %s196 = sphi 0, %s193
    %s197 = sphi 0, %s196
    %s213 = sphi 0, %s197
    %s221 = sphi 0, %s223
    %s224 = sphi 0, %s221
    %s225 = sphi 0, %s224
    %s241 = sphi 0, %s225
  $region4: #{attention_pallas.2} parent=0 // loop_header_branch
    %18 = sbr.rel (%p16) target = $region8
  $region5: #{attention_pallas.2} parent=0 // loop_body
    %s20 = ssub.s32 %s15, 1
    %s21 = ssub.s32 %s15, 2
    %s28 = sadd.s32 1, %s23
    %p29 = scmp.ge.s32.totalorder %s28, 1
    %s30 = scalar_select %p29, 0, %s28
    %s31 = sadd.s32 1, %s22
    %s32 = scalar_select %p29, %s31, %s22
    %p33 = scmp.ge.s32.totalorder %s32, 2
    %s34 = scalar_select %p33, 0, %s32
    %s35 = ssub.s32 %s22, %s34
    %s36 = ssub.s32 %s23, %s30
    %s37 = sor.u32 %s35, %s36
    %p38 = scmp.eq.s32.totalorder %s37, 0
    %s40 = sadd.s32 %s39, 1
    %s41 = scalar_select %p38, %s39, %s40
    %p44 = pneg %p38
    %p45 = scmp.eq.s32.totalorder %s15, 1
    %p46 = por %p44, %p45
    %p47 = scmp.ne.s32.totalorder %s39, %s42
    %p48 = scmp.eq.s32.totalorder %s15, 0
    %p49 = por %p47, %p48
    %p50 = scmp.ne.s32.totalorder %s39, %s42
    %p51 = scmp.eq.s32.totalorder %s20, 1
    %p52 = por %p50, %p51
    %p53 = scmp.ne.s32.totalorder %s42, %s43
    %p54 = scmp.eq.s32.totalorder %s20, 0
    %p55 = por %p53, %p54
    %p56 = scmp.ne.s32.totalorder %s42, %s43
    %p57 = scmp.eq.s32.totalorder %s21, 1
    %p58 = por %p56, %p57
    %p60 = scmp.ne.s32.totalorder %s43, %s59
    %p61 = scmp.eq.s32.totalorder %s21, 0
    %p62 = por %p60, %p61
    %s64 = sadd.s32 %s63, 1
    %p67 = scmp.eq.s32.totalorder %s15, 1
    %p68 = scmp.ne.s32.totalorder %s63, %s65
    %p69 = scmp.eq.s32.totalorder %s15, 0
    %p70 = por %p68, %p69
    %p71 = scmp.ne.s32.totalorder %s63, %s65
    %p72 = scmp.eq.s32.totalorder %s20, 1
    %p73 = por %p71, %p72
    %p74 = scmp.ne.s32.totalorder %s65, %s66
    %p75 = scmp.eq.s32.totalorder %s20, 0
    %p76 = por %p74, %p75
    %p77 = scmp.ne.s32.totalorder %s65, %s66
    %p78 = scmp.eq.s32.totalorder %s21, 1
    %p79 = por %p77, %p78
    %p81 = scmp.ne.s32.totalorder %s66, %s80
    %p82 = scmp.eq.s32.totalorder %s21, 0
    %p83 = por %p81, %p82
    %s85 = sadd.s32 %s84, 1
    %p88 = scmp.eq.s32.totalorder %s15, 1
    %p89 = scmp.ne.s32.totalorder %s84, %s86
    %p90 = scmp.eq.s32.totalorder %s15, 0
    %p91 = por %p89, %p90
    %p92 = scmp.ne.s32.totalorder %s84, %s86
    %p93 = scmp.eq.s32.totalorder %s20, 1
    %p94 = por %p92, %p93
    %p95 = scmp.ne.s32.totalorder %s86, %s87
    %p96 = scmp.eq.s32.totalorder %s20, 0
    %p97 = por %p95, %p96
    %p98 = scmp.ne.s32.totalorder %s86, %s87
    %p99 = scmp.eq.s32.totalorder %s21, 1
    %p100 = por %p98, %p99
    %p102 = scmp.ne.s32.totalorder %s87, %s101
    %p103 = scmp.eq.s32.totalorder %s21, 0
    %p104 = por %p102, %p103
    %s106 = sadd.s32 %s105, 1
    %p109 = scmp.eq.s32.totalorder %s15, 1
    %p110 = scmp.ne.s32.totalorder %s105, %s107
    %p111 = scmp.eq.s32.totalorder %s15, 0
    %p112 = por %p110, %p111
    %p113 = scmp.ne.s32.totalorder %s105, %s107
    %p114 = scmp.eq.s32.totalorder %s20, 1
    %p115 = por %p113, %p114
    %p116 = scmp.ne.s32.totalorder %s107, %s108
    %p117 = scmp.eq.s32.totalorder %s20, 0
    %p118 = por %p116, %p117
    %p119 = scmp.ne.s32.totalorder %s107, %s108
    %p120 = scmp.eq.s32.totalorder %s21, 1
    %p121 = por %p119, %p120
    %p123 = scmp.ne.s32.totalorder %s108, %s122
    %p124 = scmp.eq.s32.totalorder %s21, 0
    %p125 = por %p123, %p124
    %s127 = sadd.s32 %s126, 1
    %p130 = scmp.eq.s32.totalorder %s15, 1
    %p131 = scmp.ne.s32.totalorder %s126, %s128
    %p132 = scmp.eq.s32.totalorder %s15, 0
    %p133 = por %p131, %p132
    %p134 = scmp.ne.s32.totalorder %s126, %s128
    %p135 = scmp.eq.s32.totalorder %s20, 1
    %p136 = por %p134, %p135
    %p137 = scmp.ne.s32.totalorder %s128, %s129
    %p138 = scmp.eq.s32.totalorder %s20, 0
    %p139 = por %p137, %p138
    %p140 = scmp.ne.s32.totalorder %s128, %s129
    %p141 = scmp.eq.s32.totalorder %s21, 1
    %p142 = por %p140, %p141
    %p144 = scmp.ne.s32.totalorder %s129, %s143
    %p145 = scmp.eq.s32.totalorder %s21, 0
    %p146 = por %p144, %p145
    %s148 = sadd.s32 %s147, 1
    %p151 = scmp.eq.s32.totalorder %s15, 1
    %p152 = scmp.ne.s32.totalorder %s147, %s149
    %p153 = scmp.eq.s32.totalorder %s15, 0
    %p154 = por %p152, %p153
    %p155 = scmp.ne.s32.totalorder %s147, %s149
    %p156 = scmp.eq.s32.totalorder %s20, 1
    %p157 = por %p155, %p156
    %p158 = scmp.ne.s32.totalorder %s149, %s150
    %p159 = scmp.eq.s32.totalorder %s20, 0
    %p160 = por %p158, %p159
    %p161 = scmp.ne.s32.totalorder %s149, %s150
    %p162 = scmp.eq.s32.totalorder %s21, 1
    %p163 = por %p161, %p162
    %p165 = scmp.ne.s32.totalorder %s150, %s164
    %p166 = scmp.eq.s32.totalorder %s21, 0
    %p167 = por %p165, %p166
    %s169 = sadd.s32 %s168, 1
    %p172 = scmp.eq.s32.totalorder %s15, 1
    %p173 = scmp.ne.s32.totalorder %s168, %s170
    %p174 = scmp.eq.s32.totalorder %s15, 0
    %p175 = por %p173, %p174
    %p176 = scmp.ne.s32.totalorder %s168, %s170
    %p177 = scmp.eq.s32.totalorder %s20, 1
    %p178 = por %p176, %p177
    %p179 = scmp.ne.s32.totalorder %s170, %s171
    %p180 = scmp.eq.s32.totalorder %s20, 0
    %p181 = por %p179, %p180
    %p182 = scmp.ne.s32.totalorder %s170, %s171
    %p183 = scmp.eq.s32.totalorder %s21, 1
    %p184 = por %p182, %p183
    %p186 = scmp.ne.s32.totalorder %s171, %s185
    %p187 = scmp.eq.s32.totalorder %s21, 0
    %p188 = por %p186, %p187
    %s189 = ssub.s32 %s22, %s34
    %s190 = ssub.s32 %s23, %s30
    %s191 = sor.u32 %s189, %s190
    %p192 = scmp.eq.s32.totalorder %s191, 0
    %s194 = sadd.s32 %s193, 1
    %s195 = scalar_select %p192, %s193, %s194
    %p198 = pneg %p192
    %p199 = scmp.eq.s32.totalorder %s15, 1
    %p200 = por %p198, %p199
    %p201 = scmp.ne.s32.totalorder %s193, %s196
    %p202 = scmp.eq.s32.totalorder %s15, 0
    %p203 = por %p201, %p202
    %p204 = scmp.ne.s32.totalorder %s193, %s196
    %p205 = scmp.eq.s32.totalorder %s20, 1
    %p206 = por %p204, %p205
    %p207 = scmp.ne.s32.totalorder %s196, %s197
    %p208 = scmp.eq.s32.totalorder %s20, 0
    %p209 = por %p207, %p208
    %p210 = scmp.ne.s32.totalorder %s196, %s197
    %p211 = scmp.eq.s32.totalorder %s21, 1
    %p212 = por %p210, %p211
    %p214 = scmp.ne.s32.totalorder %s197, %s213
    %p215 = scmp.eq.s32.totalorder %s21, 0
    %p216 = por %p214, %p215
    %s217 = ssub.s32 %s22, %s34
    %s218 = ssub.s32 %s23, %s30
    %s219 = sor.u32 %s217, %s218
    %p220 = scmp.eq.s32.totalorder %s219, 0
    %s222 = sadd.s32 %s221, 1
    %s223 = scalar_select %p220, %s221, %s222
    %p226 = pneg %p220
    %p227 = scmp.eq.s32.totalorder %s15, 1
    %p228 = por %p226, %p227
    %p229 = scmp.ne.s32.totalorder %s221, %s224
    %p230 = scmp.eq.s32.totalorder %s15, 0
    %p231 = por %p229, %p230
    %p232 = scmp.ne.s32.totalorder %s221, %s224
    %p233 = scmp.eq.s32.totalorder %s20, 1
    %p234 = por %p232, %p233
    %p235 = scmp.ne.s32.totalorder %s224, %s225
    %p236 = scmp.eq.s32.totalorder %s20, 0
    %p237 = por %p235, %p236
    %p238 = scmp.ne.s32.totalorder %s224, %s225
    %p239 = scmp.eq.s32.totalorder %s21, 1
    %p240 = por %p238, %p239
    %p242 = scmp.ne.s32.totalorder %s225, %s241
    %p243 = scmp.eq.s32.totalorder %s21, 0
    %p244 = por %p242, %p243
    %p245 = scmp.le.s32.totalorder 1, %s15
    %p246 = scmp.lt.s32.totalorder %s15, 3
    %p247 = pnand %p245, %p246
    %p248 = pneg %p247
    // Predicated region
    $region9: #{attention_pallas.2} parent=5 // pred_check
      _
    $region10: #{attention_pallas.2} parent=5 // pred_check_branch
      %250 = sbr.rel (%p247) target = $region12
    $region11: #{attention_pallas.2} parent=5 // pred_region
      %s251 = ssub.s32 %s15, 1
      // Predicated region
      $region13: #{attention_pallas.2} parent=11 // pred_check
        %p252 = pneg %p76
      $region14: #{attention_pallas.2} parent=11 // pred_check_branch
        %254 = sbr.rel (%p252) target = $region16
      $region15: #{attention_pallas.2} parent=11 // pred_region
        _
      $region16: #{attention_pallas.2} parent=11 // pred_fallthru
        _
      // Predicated region
      $region17: #{attention_pallas.2} parent=11 // pred_check
        %p255 = pneg %p97
      $region18: #{attention_pallas.2} parent=11 // pred_check_branch
        %257 = sbr.rel (%p255) target = $region20
      $region19: #{attention_pallas.2} parent=11 // pred_region
        _
      $region20: #{attention_pallas.2} parent=11 // pred_fallthru
        _
      // Predicated region
      $region21: #{attention_pallas.2} parent=11 // pred_check
        %p258 = pneg %p118
      $region22: #{attention_pallas.2} parent=11 // pred_check_branch
        %260 = sbr.rel (%p258) target = $region24
      $region23: #{attention_pallas.2} parent=11 // pred_region
        _
      $region24: #{attention_pallas.2} parent=11 // pred_fallthru
        _
      // Predicated region
      $region25: #{attention_pallas.2} parent=11 // pred_check
        %p261 = pneg %p139
      $region26: #{attention_pallas.2} parent=11 // pred_check_branch
        %263 = sbr.rel (%p261) target = $region28
      $region27: #{attention_pallas.2} parent=11 // pred_region
        _
      $region28: #{attention_pallas.2} parent=11 // pred_fallthru
        _
      // Predicated region
      $region29: #{attention_pallas.2} parent=11 // pred_check
        %p264 = pneg %p160
      $region30: #{attention_pallas.2} parent=11 // pred_check_branch
        %266 = sbr.rel (%p264) target = $region32
      $region31: #{attention_pallas.2} parent=11 // pred_region
        _
      $region32: #{attention_pallas.2} parent=11 // pred_fallthru
        _
      // Predicated region
      $region33: #{attention_pallas.2} parent=11 // pred_check
        %p267 = pneg %p181
      $region34: #{attention_pallas.2} parent=11 // pred_check_branch
        %269 = sbr.rel (%p267) target = $region36
      $region35: #{attention_pallas.2} parent=11 // pred_region
        _
      $region36: #{attention_pallas.2} parent=11 // pred_fallthru
        _
    $region12: #{attention_pallas.2} parent=5 // pred_fallthru
      _
    %p270 = scmp.lt.s32.totalorder %s15, 2
    // Predicated region
    $region37: #{attention_pallas.2} parent=5 // pred_check
      %p271 = pneg %p270
    $region38: #{attention_pallas.2} parent=5 // pred_check_branch
      %273 = sbr.rel (%p271) target = $region40
    $region39: #{attention_pallas.2} parent=5 // pred_region
      // Predicated region
      $region41: #{attention_pallas.2} parent=39 // pred_check
        %p274 = pneg %p49
      $region42: #{attention_pallas.2} parent=39 // pred_check_branch
        %276 = sbr.rel (%p274) target = $region44
      $region43: #{attention_pallas.2} parent=39 // pred_region
        %s277 = smul.u32 8, %s23
        %p278 = scmp.lt.s32.totalorder %s22, 1
        %s279 = scalar_select %p278, %s22, 1
        %p280 = scmp.lt.s32.totalorder %s277, 7
        %s281 = scalar_select %p280, %s277, 7
        %s282 = smul.addr %s279, 8
        %s283 = sadd.s32 %s281, %s282
        %s284 = smul.addr %s283, 4
        %s285 = scalar_lea.vmem %s0, %s284
        %s286 = smul.u32 8, %s23
      $region44: #{attention_pallas.2} parent=39 // pred_fallthru
        _
    $region40: #{attention_pallas.2} parent=5 // pred_fallthru
      _
    %p287 = scmp.le.s32.totalorder 1, %s15
    %p288 = scmp.lt.s32.totalorder %s15, 3
    %p289 = pnand %p287, %p288
    %p290 = pneg %p289
    // Predicated region
    $region45: #{attention_pallas.2} parent=5 // pred_check
      _
    $region46: #{attention_pallas.2} parent=5 // pred_check_branch
      %292 = sbr.rel (%p289) target = $region48
    $region47: #{attention_pallas.2} parent=5 // pred_region
      %s293 = ssub.s32 %s15, 1
      %s294 = smul.u32 8, %s25
      %p295 = scmp.lt.s32.totalorder %s24, 1
      %s296 = scalar_select %p295, %s24, 1
      %p297 = scmp.lt.s32.totalorder %s294, 7
      %s298 = scalar_select %p297, %s294, 7
      %s299 = smul.addr %s296, 8
      %s300 = sadd.s32 %s298, %s299
      %s301 = smul.addr %s300, 4
      %s302 = scalar_lea.vmem %s0, %s301
      %p303 = pneg %p55
      %p304 = pneg %p52
      %p305 = pneg %p76
      %p306 = pneg %p73
      %p307 = pneg %p97
      %p308 = pneg %p94
      %p309 = pneg %p118
      %p310 = pneg %p115
      %p311 = pneg %p139
      %p312 = pneg %p136
      %p313 = pneg %p160
      %p314 = pneg %p157
      %p315 = pneg %p181
      %p316 = pneg %p178
      %p317 = pneg %p209
      %p318 = pneg %p206
      %s319 = smul.u32 8, %s25
      %p320 = scmp.lt.s32.totalorder %s24, 1
      %s321 = scalar_select %p320, %s24, 1
      %p322 = scmp.lt.s32.totalorder %s319, 7
      %s323 = scalar_select %p322, %s319, 7
      %s324 = smul.addr %s321, 8
      %s325 = sadd.s32 %s323, %s324
      %s326 = smul.addr %s325, 4
      %s327 = scalar_lea.vmem %s7, %s326
      %p328 = pneg %p237
      %p329 = pneg %p234
      %s330 = smul.u32 8, %s25
      %p331 = scmp.lt.s32.totalorder %s24, 1
      %s332 = scalar_select %p331, %s24, 1
      %p333 = scmp.lt.s32.totalorder %s330, 7
      %s334 = scalar_select %p333, %s330, 7
      %s335 = smul.addr %s332, 8
      %s336 = sadd.s32 %s334, %s335
      %s337 = smul.addr %s336, 4
      %s338 = scalar_lea.vmem %s8, %s337
      %s339 = smul.u32 8, %s25
      %p340 = scmp.lt.s32.totalorder %s24, 1
      %s341 = scalar_select %p340, %s24, 1
      %p342 = scmp.lt.s32.totalorder %s339, 7
      %s343 = scalar_select %p342, %s339, 7
      %s344 = smul.addr %s341, 8
      %s345 = sadd.s32 %s343, %s344
      %s346 = smul.addr %s345, 4
      %s347 = scalar_lea.vmem %s0, %s346
      %s348 = smul.u32 8, %s25
      %s349 = smul.u32 8, %s25
      %p350 = scmp.lt.s32.totalorder %s24, 1
      %s351 = scalar_select %p350, %s24, 1
      %p352 = scmp.lt.s32.totalorder %s349, 7
      %s353 = scalar_select %p352, %s349, 7
      %s354 = smul.addr %s351, 8
      %s355 = sadd.s32 %s353, %s354
      %s356 = smul.addr %s355, 4
      %s357 = scalar_lea.vmem %s7, %s356
      %s358 = smul.u32 8, %s25
      %s359 = smul.u32 8, %s25
      %p360 = scmp.lt.s32.totalorder %s24, 1
      %s361 = scalar_select %p360, %s24, 1
      %p362 = scmp.lt.s32.totalorder %s359, 7
      %s363 = scalar_select %p362, %s359, 7
      %s364 = smul.addr %s361, 8
      %s365 = sadd.s32 %s363, %s364
      %s366 = smul.addr %s365, 4
      %s367 = scalar_lea.vmem %s8, %s366
      %s368 = smul.u32 8, %s25
      %v370 = vld [vmem:[%s347] sm:$0xf]
      %v371 = vld [vmem:[%s347 + $0x4] sm:$0xf]
      %v372 = vld [vmem:[%s347 + $0x8] sm:$0xf]
      %v373 = vld [vmem:[%s347 + $0xc] sm:$0xf]
      %v374 = vld [vmem:[%s347 + $0x10] sm:$0xf]
      %v375 = vld [vmem:[%s347 + $0x14] sm:$0xf]
      %v376 = vld [vmem:[%s347 + $0x18] sm:$0xf]
      %v377 = vld [vmem:[%s347 + $0x1c] sm:$0xf]
      %v378 = vld [vmem:[%s1] sm:$0xf]
      %v379 = vld [vmem:[%s1 + $0x4] sm:$0xf]
      %v380 = vld [vmem:[%s1 + $0x8] sm:$0xf]
      %v381 = vld [vmem:[%s1 + $0xc] sm:$0xf]
      %v382 = vld [vmem:[%s1 + $0x10] sm:$0xf]
      %v383 = vld [vmem:[%s1 + $0x14] sm:$0xf]
      %v384 = vld [vmem:[%s1 + $0x18] sm:$0xf]
      %v385 = vld [vmem:[%s1 + $0x1c] sm:$0xf]
      %v386 = vld [vmem:[%s1 + $0x20] sm:$0xf]
      %v387 = vld [vmem:[%s1 + $0x24] sm:$0xf]
      %v388 = vld [vmem:[%s1 + $0x28] sm:$0xf]
      %v389 = vld [vmem:[%s1 + $0x2c] sm:$0xf]
      %v390 = vld [vmem:[%s1 + $0x30] sm:$0xf]
      %v391 = vld [vmem:[%s1 + $0x34] sm:$0xf]
      %v392 = vld [vmem:[%s1 + $0x38] sm:$0xf]
      %v393 = vld [vmem:[%s1 + $0x3c] sm:$0xf]
      %v394 = vld [vmem:[%s2] sm:$0x1]
      %v396 = vlaneseq
      %v397 = vshrl.u32 %v396, 7
      %v398 = vsub.s32 0, %v397
      %v399 = vrot.slane %v394, %v398
      %v409 = vunpack.c.l.b16 %v370
      %v410 = vunpack.c.l.b16 %v371
      %v411 = vunpack.c.l.b16 %v372
      %v412 = vunpack.c.l.b16 %v373
      %v413 = vunpack.c.l.b16 %v374
      %v414 = vunpack.c.l.b16 %v375
      %v415 = vunpack.c.l.b16 %v376
      %v416 = vunpack.c.l.b16 %v377
      %v417 = vpack.c.b16 %v410, %v409
      %v418 = vpack.c.b16 %v412, %v411
      %v419 = vpack.c.b16 %v414, %v413
      %v420 = vpack.c.b16 %v416, %v415
      %v441 = vunpack.c.l.b16 %v378
      %v442 = vunpack.c.l.b16 %v379
      %v443 = vunpack.c.l.b16 %v380
      %v444 = vunpack.c.l.b16 %v381
      %v445 = vunpack.c.l.b16 %v382
      %v446 = vunpack.c.l.b16 %v383
      %v447 = vunpack.c.l.b16 %v384
      %v448 = vunpack.c.l.b16 %v385
      %v449 = vunpack.c.l.b16 %v386
      %v450 = vunpack.c.l.b16 %v387
      %v451 = vunpack.c.l.b16 %v388
      %v452 = vunpack.c.l.b16 %v389
      %v453 = vunpack.c.l.b16 %v390
      %v454 = vunpack.c.l.b16 %v391
      %v455 = vunpack.c.l.b16 %v392
      %v456 = vunpack.c.l.b16 %v393
      %v457 = vpack.c.b16 %v442, %v441
      %v458 = vpack.c.b16 %v444, %v443
      %v459 = vpack.c.b16 %v446, %v445
      %v460 = vpack.c.b16 %v448, %v447
      %v461 = vpack.c.b16 %v450, %v449
      %v462 = vpack.c.b16 %v452, %v451
      %v463 = vpack.c.b16 %v454, %v453
      %v464 = vpack.c.b16 %v456, %v455
      %473 = vmatprep.subr.bf16.mxu0 0
      %474 = vmatpush1.bf16.msra.mxu0 %v457
      %475 = vmatprep.subr.bf16.mxu0 0
      %476 = vmatpush1.bf16.msra.mxu0 %v458
      %477 = vmatprep.subr.bf16.mxu0 0
      %478 = vmatpush1.bf16.msra.mxu0 %v459
      %479 = vmatprep.subr.bf16.mxu0 0
      %480 = vmatpush1.bf16.msra.mxu0 %v460
      %481 = vmatprep.subr.bf16.mxu0 0
      %482 = vmatpush1.bf16.msra.mxu0 %v461
      %483 = vmatprep.subr.bf16.mxu0 0
      %484 = vmatpush1.bf16.msra.mxu0 %v462
      %485 = vmatprep.subr.bf16.mxu0 0
      %486 = vmatpush1.bf16.msra.mxu0 %v463
      %487 = vmatprep.subr.bf16.mxu0 0
      %488 = vmatpush1.bf16.msra.mxu0 %v464
      %489 = vmatprep.subr.bf16.mxu0 0
      %490 = vmatpush1.bf16.msra.mxu0 0
      %491 = vmatprep.subr.bf16.mxu0 0
      %492 = vmatpush1.bf16.msra.mxu0 0
      %493 = vmatprep.subr.bf16.mxu0 0
      %494 = vmatpush1.bf16.msra.mxu0 0
      %495 = vmatprep.subr.bf16.mxu0 0
      %496 = vmatpush1.bf16.msra.mxu0 0
      %497 = vmatprep.subr.bf16.mxu0 0
      %498 = vmatpush1.bf16.msra.mxu0 0
      %499 = vmatprep.subr.bf16.mxu0 0
      %500 = vmatpush1.bf16.msra.mxu0 0
      %501 = vmatprep.subr.bf16.mxu0 0
      %502 = vmatpush1.bf16.msra.mxu0 0
      %503 = vmatprep.subr.bf16.mxu0 0
      %504 = vmatpush1.bf16.msra.mxu0 0
      %505 = vmatprep.mubr.bf16.mxu0 0
      %506 = vmatmul.mubr.bf16.gmra.mrb[0].mxu0 %v417
      %v507 = vpop.f32.mrb[0].mxu0
      %v508 = vadd.f32 %v399, %v507
      %v509 = vpop.f32.mrb[0].mxu0
      %v510 = vpop.f32.mrb[0].mxu0
      %v511 = vadd.f32 %v399, %v510
      %v512 = vpop.f32.mrb[0].mxu0
      %513 = vmatprep.mubr.bf16.mxu0 0
      %514 = vmatmul.mubr.bf16.gmra.mrb[0].mxu0 %v418
      %v515 = vpop.f32.mrb[0].mxu0
      %v516 = vadd.f32 %v399, %v515
      %v517 = vpop.f32.mrb[0].mxu0
      %v518 = vpop.f32.mrb[0].mxu0
      %v519 = vadd.f32 %v399, %v518
      %v520 = vpop.f32.mrb[0].mxu0
      %521 = vmatprep.mubr.bf16.mxu0 0
      %522 = vmatmul.mubr.bf16.gmra.mrb[0].mxu0 %v419
      %v523 = vpop.f32.mrb[0].mxu0
      %v524 = vadd.f32 %v399, %v523
      %v525 = vpop.f32.mrb[0].mxu0
      %v526 = vpop.f32.mrb[0].mxu0
      %v527 = vadd.f32 %v399, %v526
      %v528 = vpop.f32.mrb[0].mxu0
      %529 = vmatprep.mubr.bf16.mxu0 0
      %530 = vmatmul.mubr.bf16.gmra.mrb[0].mxu0 %v420
      %v531 = vpop.f32.mrb[0].mxu0
      %v532 = vadd.f32 %v399, %v531
      %v533 = vpop.f32.mrb[0].mxu0
      %v534 = vpop.f32.mrb[0].mxu0
      %v535 = vadd.f32 %v399, %v534
      %v536 = vpop.f32.mrb[0].mxu0
      %537 = vdwg.mxu0
      %vm538 = vcmask 261120
      %v539 = vsel %vm538, %v508, 0.0
      %540 = vadd.xlane.f32.xlu0 %v539
      %v541 = vpop.xlane.xlu0 %540
      %v542 = vsel %vm538, %v511, 0.0
      %543 = vadd.xlane.f32.xlu0 %v542
      %v544 = vpop.xlane.xlu0 %543
      %v545 = vsel %vm538, %v516, 0.0
      %546 = vadd.xlane.f32.xlu0 %v545
      %v547 = vpop.xlane.xlu0 %546
      %v548 = vsel %vm538, %v519, 0.0
      %549 = vadd.xlane.f32.xlu0 %v548
      %v550 = vpop.xlane.xlu0 %549
      %v551 = vsel %vm538, %v524, 0.0
      %552 = vadd.xlane.f32.xlu0 %v551
      %v553 = vpop.xlane.xlu0 %552
      %v554 = vsel %vm538, %v527, 0.0
      %555 = vadd.xlane.f32.xlu0 %v554
      %v556 = vpop.xlane.xlu0 %555
      %v557 = vsel %vm538, %v532, 0.0
      %558 = vadd.xlane.f32.xlu0 %v557
      %v559 = vpop.xlane.xlu0 %558
      %v560 = vsel %vm538, %v535, 0.0
      %561 = vadd.xlane.f32.xlu0 %v560
      %v562 = vpop.xlane.xlu0 %561
      %v563 = vrcp.pop 32.0
      %v564 = vmul.f32 %v541, %v563
      %v565 = vmul.f32 %v544, %v563
      %v566 = vmul.f32 %v547, %v563
      %v567 = vmul.f32 %v550, %v563
      %v568 = vmul.f32 %v553, %v563
      %v569 = vmul.f32 %v556, %v563
      %v570 = vmul.f32 %v559, %v563
      %v571 = vmul.f32 %v562, %v563
      %v572 = vsub.f32 %v508, %v564
      %v573 = vsub.f32 %v511, %v565
      %v574 = vsub.f32 %v516, %v566
      %v575 = vsub.f32 %v519, %v567
      %v576 = vsub.f32 %v524, %v568
      %v577 = vsub.f32 %v527, %v569
      %v578 = vsub.f32 %v532, %v570
      %v579 = vsub.f32 %v535, %v571
      %v580 = vmul.f32 %v572, %v572
      %v581 = vmul.f32 %v573, %v573
      %v582 = vmul.f32 %v574, %v574
      %v583 = vmul.f32 %v575, %v575
      %v584 = vmul.f32 %v576, %v576
      %v585 = vmul.f32 %v577, %v577
      %v586 = vmul.f32 %v578, %v578
      %v587 = vmul.f32 %v579, %v579
      %v588 = vsel %vm538, %v580, 0.0
      %589 = vadd.xlane.f32.xlu0 %v588
      %v590 = vpop.xlane.xlu0 %589
      %v591 = vsel %vm538, %v581, 0.0
      %592 = vadd.xlane.f32.xlu0 %v591
      %v593 = vpop.xlane.xlu0 %592
      %v594 = vsel %vm538, %v582, 0.0
      %595 = vadd.xlane.f32.xlu0 %v594
      %v596 = vpop.xlane.xlu0 %595
      %v597 = vsel %vm538, %v583, 0.0
      %598 = vadd.xlane.f32.xlu0 %v597
      %v599 = vpop.xlane.xlu0 %598
      %v600 = vsel %vm538, %v584, 0.0
      %601 = vadd.xlane.f32.xlu0 %v600
      %v602 = vpop.xlane.xlu0 %601
      %v603 = vsel %vm538, %v585, 0.0
      %604 = vadd.xlane.f32.xlu0 %v603
      %v605 = vpop.xlane.xlu0 %604
      %v606 = vsel %vm538, %v586, 0.0
      %607 = vadd.xlane.f32.xlu0 %v606
      %v608 = vpop.xlane.xlu0 %607
      %v609 = vsel %vm538, %v587, 0.0
      %610 = vadd.xlane.f32.xlu0 %v609
      %v611 = vpop.xlane.xlu0 %610
      %v612 = vmul.f32 %v590, %v563
      %v613 = vmul.f32 %v593, %v563
      %v614 = vmul.f32 %v596, %v563
      %v615 = vmul.f32 %v599, %v563
      %v616 = vmul.f32 %v602, %v563
      %v617 = vmul.f32 %v605, %v563
      %v618 = vmul.f32 %v608, %v563
      %v619 = vmul.f32 %v611, %v563
      %v620 = vadd.f32 %v612, 1e-05
      %v621 = vadd.f32 %v613, 1e-05
      %v622 = vadd.f32 %v614, 1e-05
      %v623 = vadd.f32 %v615, 1e-05
      %v624 = vadd.f32 %v616, 1e-05
      %v625 = vadd.f32 %v617, 1e-05
      %v626 = vadd.f32 %v618, 1e-05
      %v627 = vadd.f32 %v619, 1e-05
      %v628 = vrsqrt.pop %v620
      %v629 = vrsqrt.pop %v621
      %v630 = vrsqrt.pop %v622
      %v631 = vrsqrt.pop %v623
      %v632 = vrsqrt.pop %v624
      %v633 = vrsqrt.pop %v625
      %v634 = vrsqrt.pop %v626
      %v635 = vrsqrt.pop %v627
      %v636 = vmul.f32 %v572, %v628
      %v637 = vmul.f32 %v573, %v629
      %v638 = vmul.f32 %v574, %v630
      %v639 = vmul.f32 %v575, %v631
      %v640 = vmul.f32 %v576, %v632
      %v641 = vmul.f32 %v577, %v633
      %v642 = vmul.f32 %v578, %v634
      %v643 = vmul.f32 %v579, %v635
      %v644 = vld [vmem:[%s3] sm:$0x1]
      %v646 = vlaneseq
      %v647 = vshrl.u32 %v646, 7
      %v648 = vsub.s32 0, %v647
      %v649 = vrot.slane %v644, %v648
      %v651 = vmul.f32 %v636, %v649
      %v652 = vmul.f32 %v637, %v649
      %v653 = vmul.f32 %v638, %v649
      %v654 = vmul.f32 %v639, %v649
      %v655 = vmul.f32 %v640, %v649
      %v656 = vmul.f32 %v641, %v649
      %v657 = vmul.f32 %v642, %v649
      %v658 = vmul.f32 %v643, %v649
      %v659 = vld [vmem:[%s4] sm:$0x1]
      %v661 = vlaneseq
      %v662 = vshrl.u32 %v661, 7
      %v663 = vsub.s32 0, %v662
      %v664 = vrot.slane %v659, %v663
      %v666 = vadd.f32 %v651, %v664
      %v667 = vadd.f32 %v652, %v664
      %v668 = vadd.f32 %v653, %v664
      %v669 = vadd.f32 %v654, %v664
      %v670 = vadd.f32 %v655, %v664
      %v671 = vadd.f32 %v656, %v664
      %v672 = vadd.f32 %v657, %v664
      %v673 = vadd.f32 %v658, %v664
      %v674 = vpack.c.bf16 %v667, %v666
      %v675 = vpack.c.bf16 %v669, %v668
      %v676 = vpack.c.bf16 %v671, %v670
      %v677 = vpack.c.bf16 %v673, %v672
      %v678 = vld [vmem:[%s5] sm:$0xf]
      %v679 = vld [vmem:[%s5 + $0x4] sm:$0xf]
      %v680 = vld [vmem:[%s5 + $0x8] sm:$0xf]
      %v681 = vld [vmem:[%s5 + $0xc] sm:$0xf]
      %v686 = vunpack.c.l.b16 %v678
      %v687 = vunpack.c.l.b16 %v679
      %v688 = vunpack.c.l.b16 %v680
      %v689 = vunpack.c.l.b16 %v681
      %v690 = vpack.c.b16 %v687, %v686
      %v691 = vpack.c.b16 %v689, %v688
      %v695 = vsel %vm538, %v674, 0
      %v698 = vsel %vm538, %v675, 0
      %v701 = vsel %vm538, %v676, 0
      %v704 = vsel %vm538, %v677, 0
      %706 = vmatprep.subr.bf16.mxu0 0
      %707 = vmatpush1.bf16.msra.mxu0 %v690
      %708 = vmatprep.subr.bf16.mxu0 0
      %709 = vmatpush1.bf16.msra.mxu0 %v691
      %710 = vmatprep.subr.bf16.mxu0 0
      %711 = vmatpush1.bf16.msra.mxu0 0
      %712 = vmatprep.subr.bf16.mxu0 0
      %713 = vmatpush1.bf16.msra.mxu0 0
      %714 = vmatprep.subr.bf16.mxu0 0
      %715 = vmatpush1.bf16.msra.mxu0 0
      %716 = vmatprep.subr.bf16.mxu0 0
      %717 = vmatpush1.bf16.msra.mxu0 0
      %718 = vmatprep.subr.bf16.mxu0 0
      %719 = vmatpush1.bf16.msra.mxu0 0
      %720 = vmatprep.subr.bf16.mxu0 0
      %721 = vmatpush1.bf16.msra.mxu0 0
      %722 = vmatprep.subr.bf16.mxu0 0
      %723 = vmatpush1.bf16.msra.mxu0 0
      %724 = vmatprep.subr.bf16.mxu0 0
      %725 = vmatpush1.bf16.msra.mxu0 0
      %726 = vmatprep.subr.bf16.mxu0 0
      %727 = vmatpush1.bf16.msra.mxu0 0
      %728 = vmatprep.subr.bf16.mxu0 0
      %729 = vmatpush1.bf16.msra.mxu0 0
      %730 = vmatprep.subr.bf16.mxu0 0
      %731 = vmatpush1.bf16.msra.mxu0 0
      %732 = vmatprep.subr.bf16.mxu0 0
      %733 = vmatpush1.bf16.msra.mxu0 0
      %734 = vmatprep.subr.bf16.mxu0 0
      %735 = vmatpush1.bf16.msra.mxu0 0
      %736 = vmatprep.subr.bf16.mxu0 0
      %737 = vmatpush1.bf16.msra.mxu0 0
      %738 = vmatprep.mubr.bf16.mxu0 0
      %739 = vmatmul.mubr.bf16.gmra.mrb[0].mxu0 %v695
      %v740 = vpop.f32.mrb[0].mxu0
      %v741 = vadd.f32 0.0, %v740
      %v742 = vpop.f32.mrb[0].mxu0
      %v743 = vpop.f32.mrb[0].mxu0
      %v744 = vadd.f32 0.0, %v743
      %v745 = vpop.f32.mrb[0].mxu0
      %746 = vmatprep.mubr.bf16.mxu0 0
      %747 = vmatmul.mubr.bf16.gmra.mrb[0].mxu0 %v698
      %v748 = vpop.f32.mrb[0].mxu0
      %v749 = vadd.f32 0.0, %v748
      %v750 = vpop.f32.mrb[0].mxu0
      %v751 = vpop.f32.mrb[0].mxu0
      %v752 = vadd.f32 0.0, %v751
      %v753 = vpop.f32.mrb[0].mxu0
      %754 = vmatprep.mubr.bf16.mxu0 0
      %755 = vmatmul.mubr.bf16.gmra.mrb[0].mxu0 %v701
      %v756 = vpop.f32.mrb[0].mxu0
      %v757 = vadd.f32 0.0, %v756
      %v758 = vpop.f32.mrb[0].mxu0
      %v759 = vpop.f32.mrb[0].mxu0
      %v760 = vadd.f32 0.0, %v759
      %v761 = vpop.f32.mrb[0].mxu0
      %762 = vmatprep.mubr.bf16.mxu0 0
      %763 = vmatmul.mubr.bf16.gmra.mrb[0].mxu0 %v704
      %v764 = vpop.f32.mrb[0].mxu0
      %v765 = vadd.f32 0.0, %v764
      %v766 = vpop.f32.mrb[0].mxu0
      %v767 = vpop.f32.mrb[0].mxu0
      %v768 = vadd.f32 0.0, %v767
      %v769 = vpop.f32.mrb[0].mxu0
      %770 = vdwg.mxu0
      %v771 = vpack.c.bf16 %v744, %v741
      %v772 = vpack.c.bf16 %v752, %v749
      %v773 = vpack.c.bf16 %v760, %v757
      %v774 = vpack.c.bf16 %v768, %v765
      %v779 = vunpack.c.l.b16 %v771
      %v780 = vunpack.c.h.b16 %v771
      %v781 = vunpack.c.l.b16 %v772
      %v782 = vunpack.c.h.b16 %v772
      %v783 = vunpack.c.l.b16 %v773
      %v784 = vunpack.c.h.b16 %v773
      %v785 = vunpack.c.l.b16 %v774
      %v786 = vunpack.c.h.b16 %v774
      %v787 = vpack.c.b16 %v779, %v779
      %v788 = vpack.c.b16 %v780, %v780
      %v789 = vpack.c.b16 %v781, %v781
      %v790 = vpack.c.b16 %v782, %v782
      %v791 = vpack.c.b16 %v783, %v783
      %v792 = vpack.c.b16 %v784, %v784
      %v793 = vpack.c.b16 %v785, %v785
      %v794 = vpack.c.b16 %v786, %v786
      %vm803 = vcmask 257024
      %804 = vst.msk [vmem:[%s357] sm:$0xf] %vm803, %v787
      %805 = vst.msk [vmem:[%s357 + $0x4] sm:$0xf] %vm803, %v788
      %806 = vst.msk [vmem:[%s357 + $0x8] sm:$0xf] %vm803, %v789
      %807 = vst.msk [vmem:[%s357 + $0xc] sm:$0xf] %vm803, %v790
      %808 = vst.msk [vmem:[%s357 + $0x10] sm:$0xf] %vm803, %v791
      %809 = vst.msk [vmem:[%s357 + $0x14] sm:$0xf] %vm803, %v792
      %810 = vst.msk [vmem:[%s357 + $0x18] sm:$0xf] %vm803, %v793
      %811 = vst.msk [vmem:[%s357 + $0x1c] sm:$0xf] %vm803, %v794
      %v812 = vld [vmem:[%s6] sm:$0xf]
      %v813 = vld [vmem:[%s6 + $0x4] sm:$0xf]
      %v814 = vld [vmem:[%s6 + $0x8] sm:$0xf]
      %v815 = vld [vmem:[%s6 + $0xc] sm:$0xf]
      %v820 = vunpack.c.l.b16 %v812
      %v821 = vunpack.c.l.b16 %v813
      %v822 = vunpack.c.l.b16 %v814
      %v823 = vunpack.c.l.b16 %v815
      %v824 = vpack.c.b16 %v821, %v820
      %v825 = vpack.c.b16 %v823, %v822
      %828 = vmatprep.subr.bf16.mxu0 0
      %829 = vmatpush1.bf16.msra.mxu0 %v824
      %830 = vmatprep.subr.bf16.mxu0 0
      %831 = vmatpush1.bf16.msra.mxu0 %v825
      %832 = vmatprep.subr.bf16.mxu0 0
      %833 = vmatpush1.bf16.msra.mxu0 0
      %834 = vmatprep.subr.bf16.mxu0 0
      %835 = vmatpush1.bf16.msra.mxu0 0
      %836 = vmatprep.subr.bf16.mxu0 0
      %837 = vmatpush1.bf16.msra.mxu0 0
      %838 = vmatprep.subr.bf16.mxu0 0
      %839 = vmatpush1.bf16.msra.mxu0 0
      %840 = vmatprep.subr.bf16.mxu0 0
      %841 = vmatpush1.bf16.msra.mxu0 0
      %842 = vmatprep.subr.bf16.mxu0 0
      %843 = vmatpush1.bf16.msra.mxu0 0
      %844 = vmatprep.subr.bf16.mxu0 0
      %845 = vmatpush1.bf16.msra.mxu0 0
      %846 = vmatprep.subr.bf16.mxu0 0
      %847 = vmatpush1.bf16.msra.mxu0 0
      %848 = vmatprep.subr.bf16.mxu0 0
      %849 = vmatpush1.bf16.msra.mxu0 0
      %850 = vmatprep.subr.bf16.mxu0 0
      %851 = vmatpush1.bf16.msra.mxu0 0
      %852 = vmatprep.subr.bf16.mxu0 0
      %853 = vmatpush1.bf16.msra.mxu0 0
      %854 = vmatprep.subr.bf16.mxu0 0
      %855 = vmatpush1.bf16.msra.mxu0 0
      %856 = vmatprep.subr.bf16.mxu0 0
      %857 = vmatpush1.bf16.msra.mxu0 0
      %858 = vmatprep.subr.bf16.mxu0 0
      %859 = vmatpush1.bf16.msra.mxu0 0
      %860 = vmatprep.mubr.bf16.mxu0 0
      %861 = vmatmul.mubr.bf16.gmra.mrb[0].mxu0 %v695
      %v862 = vpop.f32.mrb[0].mxu0
      %v863 = vadd.f32 0.0, %v862
      %v864 = vpop.f32.mrb[0].mxu0
      %v865 = vpop.f32.mrb[0].mxu0
      %v866 = vadd.f32 0.0, %v865
      %v867 = vpop.f32.mrb[0].mxu0
      %868 = vmatprep.mubr.bf16.mxu0 0
      %869 = vmatmul.mubr.bf16.gmra.mrb[0].mxu0 %v698
      %v870 = vpop.f32.mrb[0].mxu0
      %v871 = vadd.f32 0.0, %v870
      %v872 = vpop.f32.mrb[0].mxu0
      %v873 = vpop.f32.mrb[0].mxu0
      %v874 = vadd.f32 0.0, %v873
      %v875 = vpop.f32.mrb[0].mxu0
      %876 = vmatprep.mubr.bf16.mxu0 0
      %877 = vmatmul.mubr.bf16.gmra.mrb[0].mxu0 %v701
      %v878 = vpop.f32.mrb[0].mxu0
      %v879 = vadd.f32 0.0, %v878
      %v880 = vpop.f32.mrb[0].mxu0
      %v881 = vpop.f32.mrb[0].mxu0
      %v882 = vadd.f32 0.0, %v881
      %v883 = vpop.f32.mrb[0].mxu0
      %884 = vmatprep.mubr.bf16.mxu0 0
      %885 = vmatmul.mubr.bf16.gmra.mrb[0].mxu0 %v704
      %v886 = vpop.f32.mrb[0].mxu0
      %v887 = vadd.f32 0.0, %v886
      %v888 = vpop.f32.mrb[0].mxu0
      %v889 = vpop.f32.mrb[0].mxu0
      %v890 = vadd.f32 0.0, %v889
      %v891 = vpop.f32.mrb[0].mxu0
      %892 = vdwg.mxu0
      %v893 = vpack.c.bf16 %v866, %v863
      %v894 = vpack.c.bf16 %v874, %v871
      %v895 = vpack.c.bf16 %v882, %v879
      %v896 = vpack.c.bf16 %v890, %v887
      %v901 = vunpack.c.l.b16 %v893
      %v902 = vunpack.c.h.b16 %v893
      %v903 = vunpack.c.l.b16 %v894
      %v904 = vunpack.c.h.b16 %v894
      %v905 = vunpack.c.l.b16 %v895
      %v906 = vunpack.c.h.b16 %v895
      %v907 = vunpack.c.l.b16 %v896
      %v908 = vunpack.c.h.b16 %v896
      %v909 = vpack.c.b16 %v901, %v901
      %v910 = vpack.c.b16 %v902, %v902
      %v911 = vpack.c.b16 %v903, %v903
      %v912 = vpack.c.b16 %v904, %v904
      %v913 = vpack.c.b16 %v905, %v905
      %v914 = vpack.c.b16 %v906, %v906
      %v915 = vpack.c.b16 %v907, %v907
      %v916 = vpack.c.b16 %v908, %v908
      %925 = vst.msk [vmem:[%s367] sm:$0xf] %vm803, %v909
      %926 = vst.msk [vmem:[%s367 + $0x4] sm:$0xf] %vm803, %v910
      %927 = vst.msk [vmem:[%s367 + $0x8] sm:$0xf] %vm803, %v911
      %928 = vst.msk [vmem:[%s367 + $0xc] sm:$0xf] %vm803, %v912
      %929 = vst.msk [vmem:[%s367 + $0x10] sm:$0xf] %vm803, %v913
      %930 = vst.msk [vmem:[%s367 + $0x14] sm:$0xf] %vm803, %v914
      %931 = vst.msk [vmem:[%s367 + $0x18] sm:$0xf] %vm803, %v915
      %932 = vst.msk [vmem:[%s367 + $0x1c] sm:$0xf] %vm803, %v916
      %s933 = smul.u32 8, %s25
      %p934 = scmp.lt.s32.totalorder %s24, 1
      %s935 = scalar_select %p934, %s24, 1
      %p936 = scmp.lt.s32.totalorder %s933, 7
      %s937 = scalar_select %p936, %s933, 7
      %s938 = smul.addr %s935, 8
      %s939 = sadd.s32 %s937, %s938
      %s940 = smul.addr %s939, 4
      %s941 = scalar_lea.vmem %s7, %s940
      %s942 = smul.u32 8, %s25
      %p943 = scmp.lt.s32.totalorder %s24, 1
      %s944 = scalar_select %p943, %s24, 1
      %p945 = scmp.lt.s32.totalorder %s942, 7
      %s946 = scalar_select %p945, %s942, 7
      %s947 = smul.addr %s944, 8
      %s948 = sadd.s32 %s946, %s947
      %s949 = smul.addr %s948, 4
      %s950 = scalar_lea.vmem %s8, %s949
      // Predicated region
      $region49: #{attention_pallas.2} parent=47 // pred_check
        %p951 = pneg %p206
      $region50: #{attention_pallas.2} parent=47 // pred_check_branch
        %953 = sbr.rel (%p951) target = $region52
      $region51: #{attention_pallas.2} parent=47 // pred_region
        %s954 = smul.u32 8, %s25
      $region52: #{attention_pallas.2} parent=47 // pred_fallthru
        _
      // Predicated region
      $region53: #{attention_pallas.2} parent=47 // pred_check
        %p955 = pneg %p234
      $region54: #{attention_pallas.2} parent=47 // pred_check_branch
        %957 = sbr.rel (%p955) target = $region56
      $region55: #{attention_pallas.2} parent=47 // pred_region
        %s958 = smul.u32 8, %s25
      $region56: #{attention_pallas.2} parent=47 // pred_fallthru
        _
    $region48: #{attention_pallas.2} parent=5 // pred_fallthru
      _
    %p959 = scmp.le.s32.totalorder 2, %s15
    // Predicated region
    $region57: #{attention_pallas.2} parent=5 // pred_check
      %p960 = pneg %p959
    $region58: #{attention_pallas.2} parent=5 // pred_check_branch
      %962 = sbr.rel (%p960) target = $region60
    $region59: #{attention_pallas.2} parent=5 // pred_region
      %s963 = ssub.s32 %s15, 2
      // Predicated region
      $region61: #{attention_pallas.2} parent=59 // pred_check
        %p964 = pneg %p212
      $region62: #{attention_pallas.2} parent=59 // pred_check_branch
        %966 = sbr.rel (%p964) target = $region64
      $region63: #{attention_pallas.2} parent=59 // pred_region
        %s967 = smul.u32 8, %s27
        %p968 = scmp.lt.s32.totalorder %s26, 1
        %s969 = scalar_select %p968, %s26, 1
        %p970 = scmp.lt.s32.totalorder %s967, 7
        %s971 = scalar_select %p970, %s967, 7
        %s972 = smul.addr %s969, 8
        %s973 = sadd.s32 %s971, %s972
        %s974 = smul.addr %s973, 4
        %s975 = scalar_lea.vmem %s7, %s974
      $region64: #{attention_pallas.2} parent=59 // pred_fallthru
        _
      // Predicated region
      $region65: #{attention_pallas.2} parent=59 // pred_check
        %p976 = pneg %p240
      $region66: #{attention_pallas.2} parent=59 // pred_check_branch
        %978 = sbr.rel (%p976) target = $region68
      $region67: #{attention_pallas.2} parent=59 // pred_region
        %s979 = smul.u32 8, %s27
        %p980 = scmp.lt.s32.totalorder %s26, 1
        %s981 = scalar_select %p980, %s26, 1
        %p982 = scmp.lt.s32.totalorder %s979, 7
        %s983 = scalar_select %p982, %s979, 7
        %s984 = smul.addr %s981, 8
        %s985 = sadd.s32 %s983, %s984
        %s986 = smul.addr %s985, 4
        %s987 = scalar_lea.vmem %s8, %s986
      $region68: #{attention_pallas.2} parent=59 // pred_fallthru
        _
    $region60: #{attention_pallas.2} parent=5 // pred_fallthru
      _
  $region6: #{attention_pallas.2} parent=0 // loop_footer
    %s19 = sadd.s32 1, %s15
  $region7: #{attention_pallas.2} parent=0 // loop_footer_branch
    %14 = sbr.rel target = $region3
  $region8: #{attention_pallas.2} parent=0 // loop_exit
    _

// kernel: attention_pallas.3
$region0: #{attention_pallas.3}
  #allocation0 [shape = 'u32[]', space=smem, size = 0x4, offset = 0x4, fixed_abs, tag = 'smem constant byte address 0x4 - core index']
  #allocation1 [shape = 'u32[144,128]{1,0:T(1,128)}', space=vmem, size = 0x12000, scoped, tag = 'internal scratch']
  #allocation2 [shape = 'bf16[128,32]{1,0:T(16,128)(2,1)}', space=vmem, size = 0x8000, scoped, tag = 'scratch operand']
  #allocation3 [shape = 'bf16[128,32]{1,0:T(16,128)(2,1)}', space=vmem, size = 0x8000, scoped, tag = 'scratch operand']
  %s0 = inlined_call_operand.vmem [shape: bf16[2,256,32], index: 0, kind: input, shape index: {}]
  %s1 = inlined_call_operand.vmem [shape: bf16[2,64,32], index: 1, kind: input, shape index: {}]
  %s2 = inlined_call_operand.vmem [shape: bf16[2,64,32], index: 2, kind: input, shape index: {}]
  %s3 = inlined_call_operand.vmem [shape: bf16[32,32], index: 3, kind: input, shape index: {}]
  %s4 = inlined_call_operand.vmem [shape: bf16[32,32], index: 4, kind: input, shape index: {}]
  %s5 = inlined_call_operand.vmem [shape: f32[1,32], index: 5, kind: input, shape index: {}]
  %s6 = inlined_call_operand.vmem [shape: f32[2,256,32], index: 6, kind: output, shape index: {}]
  %s7 = sld [smem:[#allocation0]]
  $region57: #{attention_pallas.3} parent=0
    _
  %s9 = ssub.s32 1, %s7
  %s10 = scalar_select 0, %s9, %s7
  loop: start=0, step=1, limit=6
  $region2: #{attention_pallas.3} parent=0 // loop_pre_header
    _
  $region3: #{attention_pallas.3} parent=0 // loop_header
    %s12 = sphi 0, %s16
    %p13 = scmp.ge.s32.totalorder %s12, 6
    %s19 = sphi 0, %s31
    %s20 = sphi 0, %s27
    %s21 = sphi 0, %s19
    %s22 = sphi 0, %s20
    %s23 = sphi 0, %s21
    %s24 = sphi 0, %s22
    %s36 = sphi 0, %s38
    %s39 = sphi 0, %s36
    %s40 = sphi 0, %s39
    %s56 = sphi 0, %s40
    %s62 = sphi 0, %s64
    %s65 = sphi 0, %s62
    %s66 = sphi 0, %s65
    %s82 = sphi 0, %s66
    %s88 = sphi 0, %s90
    %s91 = sphi 0, %s88
    %s92 = sphi 0, %s91
    %s108 = sphi 0, %s92
    %s112 = sphi 0, %s112
    %s114 = sphi 0, %s112
    %s115 = sphi 0, %s114
    %s129 = sphi 0, %s115
    %s133 = sphi 0, %s133
    %s135 = sphi 0, %s133
    %s136 = sphi 0, %s135
    %s150 = sphi 0, %s136
    %s154 = sphi 0, %s154
    %s156 = sphi 0, %s154
    %s157 = sphi 0, %s156
    %s171 = sphi 0, %s157
    %s179 = sphi 0, %s181
    %s182 = sphi 0, %s179
    %s183 = sphi 0, %s182
    %s199 = sphi 0, %s183
  $region4: #{attention_pallas.3} parent=0 // loop_header_branch
    %15 = sbr.rel (%p13) target = $region8
  $region5: #{attention_pallas.3} parent=0 // loop_body
    %s17 = ssub.s32 %s12, 1
    %s18 = ssub.s32 %s12, 2
    %s25 = sadd.s32 1, %s20
    %p26 = scmp.ge.s32.totalorder %s25, 2
    %s27 = scalar_select %p26, 0, %s25
    %s28 = sadd.s32 1, %s19
    %s29 = scalar_select %p26, %s28, %s19
    %p30 = scmp.ge.s32.totalorder %s29, 2
    %s31 = scalar_select %p30, 0, %s29
    %s32 = ssub.s32 %s19, %s31
    %s33 = ssub.s32 %s20, %s27
    %s34 = sor.u32 %s32, %s33
    %p35 = scmp.eq.s32.totalorder %s34, 0
    %s37 = sadd.s32 %s36, 1
    %s38 = scalar_select %p35, %s36, %s37
    %p41 = pneg %p35
    %p42 = scmp.eq.s32.totalorder %s12, 3
    %p43 = por %p41, %p42
    %p44 = scmp.ne.s32.totalorder %s36, %s39
    %p45 = scmp.eq.s32.totalorder %s12, 0
    %p46 = por %p44, %p45
    %p47 = scmp.ne.s32.totalorder %s36, %s39
    %p48 = scmp.eq.s32.totalorder %s17, 3
    %p49 = por %p47, %p48
    %p50 = scmp.ne.s32.totalorder %s39, %s40
    %p51 = scmp.eq.s32.totalorder %s17, 0
    %p52 = por %p50, %p51
    %p53 = scmp.ne.s32.totalorder %s39, %s40
    %p54 = scmp.eq.s32.totalorder %s18, 3
    %p55 = por %p53, %p54
    %p57 = scmp.ne.s32.totalorder %s40, %s56
    %p58 = scmp.eq.s32.totalorder %s18, 0
    %p59 = por %p57, %p58
    %s60 = ssub.s32 %s19, %s31
    %p61 = scmp.eq.s32.totalorder %s60, 0
    %s63 = sadd.s32 %s62, 1
    %s64 = scalar_select %p61, %s62, %s63
    %p67 = pneg %p61
    %p68 = scmp.eq.s32.totalorder %s12, 3
    %p69 = por %p67, %p68
    %p70 = scmp.ne.s32.totalorder %s62, %s65
    %p71 = scmp.eq.s32.totalorder %s12, 0
    %p72 = por %p70, %p71
    %p73 = scmp.ne.s32.totalorder %s62, %s65
    %p74 = scmp.eq.s32.totalorder %s17, 3
    %p75 = por %p73, %p74
    %p76 = scmp.ne.s32.totalorder %s65, %s66
    %p77 = scmp.eq.s32.totalorder %s17, 0
    %p78 = por %p76, %p77
    %p79 = scmp.ne.s32.totalorder %s65, %s66
    %p80 = scmp.eq.s32.totalorder %s18, 3
    %p81 = por %p79, %p80
    %p83 = scmp.ne.s32.totalorder %s66, %s82
    %p84 = scmp.eq.s32.totalorder %s18, 0
    %p85 = por %p83, %p84
    %s86 = ssub.s32 %s19, %s31
    %p87 = scmp.eq.s32.totalorder %s86, 0
    %s89 = sadd.s32 %s88, 1
    %s90 = scalar_select %p87, %s88, %s89
    %p93 = pneg %p87
    %p94 = scmp.eq.s32.totalorder %s12, 3
    %p95 = por %p93, %p94
    %p96 = scmp.ne.s32.totalorder %s88, %s91
    %p97 = scmp.eq.s32.totalorder %s12, 0
    %p98 = por %p96, %p97
    %p99 = scmp.ne.s32.totalorder %s88, %s91
    %p100 = scmp.eq.s32.totalorder %s17, 3
    %p101 = por %p99, %p100
    %p102 = scmp.ne.s32.totalorder %s91, %s92
    %p103 = scmp.eq.s32.totalorder %s17, 0
    %p104 = por %p102, %p103
    %p105 = scmp.ne.s32.totalorder %s91, %s92
    %p106 = scmp.eq.s32.totalorder %s18, 3
    %p107 = por %p105, %p106
    %p109 = scmp.ne.s32.totalorder %s92, %s108
    %p110 = scmp.eq.s32.totalorder %s18, 0
    %p111 = por %p109, %p110
    %s113 = sadd.s32 %s112, 1
    %p116 = scmp.eq.s32.totalorder %s12, 3
    %p117 = scmp.ne.s32.totalorder %s112, %s114
    %p118 = scmp.eq.s32.totalorder %s12, 0
    %p119 = por %p117, %p118
    %p120 = scmp.ne.s32.totalorder %s112, %s114
    %p121 = scmp.eq.s32.totalorder %s17, 3
    %p122 = por %p120, %p121
    %p123 = scmp.ne.s32.totalorder %s114, %s115
    %p124 = scmp.eq.s32.totalorder %s17, 0
    %p125 = por %p123, %p124
    %p126 = scmp.ne.s32.totalorder %s114, %s115
    %p127 = scmp.eq.s32.totalorder %s18, 3
    %p128 = por %p126, %p127
    %p130 = scmp.ne.s32.totalorder %s115, %s129
    %p131 = scmp.eq.s32.totalorder %s18, 0
    %p132 = por %p130, %p131
    %s134 = sadd.s32 %s133, 1
    %p137 = scmp.eq.s32.totalorder %s12, 3
    %p138 = scmp.ne.s32.totalorder %s133, %s135
    %p139 = scmp.eq.s32.totalorder %s12, 0
    %p140 = por %p138, %p139
    %p141 = scmp.ne.s32.totalorder %s133, %s135
    %p142 = scmp.eq.s32.totalorder %s17, 3
    %p143 = por %p141, %p142
    %p144 = scmp.ne.s32.totalorder %s135, %s136
    %p145 = scmp.eq.s32.totalorder %s17, 0
    %p146 = por %p144, %p145
    %p147 = scmp.ne.s32.totalorder %s135, %s136
    %p148 = scmp.eq.s32.totalorder %s18, 3
    %p149 = por %p147, %p148
    %p151 = scmp.ne.s32.totalorder %s136, %s150
    %p152 = scmp.eq.s32.totalorder %s18, 0
    %p153 = por %p151, %p152
    %s155 = sadd.s32 %s154, 1
    %p158 = scmp.eq.s32.totalorder %s12, 3
    %p159 = scmp.ne.s32.totalorder %s154, %s156
    %p160 = scmp.eq.s32.totalorder %s12, 0
    %p161 = por %p159, %p160
    %p162 = scmp.ne.s32.totalorder %s154, %s156
    %p163 = scmp.eq.s32.totalorder %s17, 3
    %p164 = por %p162, %p163
    %p165 = scmp.ne.s32.totalorder %s156, %s157
    %p166 = scmp.eq.s32.totalorder %s17, 0
    %p167 = por %p165, %p166
    %p168 = scmp.ne.s32.totalorder %s156, %s157
    %p169 = scmp.eq.s32.totalorder %s18, 3
    %p170 = por %p168, %p169
    %p172 = scmp.ne.s32.totalorder %s157, %s171
    %p173 = scmp.eq.s32.totalorder %s18, 0
    %p174 = por %p172, %p173
    %s175 = ssub.s32 %s19, %s31
    %s176 = ssub.s32 %s20, %s27
    %s177 = sor.u32 %s175, %s176
    %p178 = scmp.eq.s32.totalorder %s177, 0
    %s180 = sadd.s32 %s179, 1
    %s181 = scalar_select %p178, %s179, %s180
    %p184 = pneg %p178
    %p185 = scmp.eq.s32.totalorder %s12, 3
    %p186 = por %p184, %p185
    %p187 = scmp.ne.s32.totalorder %s179, %s182
    %p188 = scmp.eq.s32.totalorder %s12, 0
    %p189 = por %p187, %p188
    %p190 = scmp.ne.s32.totalorder %s179, %s182
    %p191 = scmp.eq.s32.totalorder %s17, 3
    %p192 = por %p190, %p191
    %p193 = scmp.ne.s32.totalorder %s182, %s183
    %p194 = scmp.eq.s32.totalorder %s17, 0
    %p195 = por %p193, %p194
    %p196 = scmp.ne.s32.totalorder %s182, %s183
    %p197 = scmp.eq.s32.totalorder %s18, 3
    %p198 = por %p196, %p197
    %p200 = scmp.ne.s32.totalorder %s183, %s199
    %p201 = scmp.eq.s32.totalorder %s18, 0
    %p202 = por %p200, %p201
    %p203 = scmp.le.s32.totalorder 1, %s12
    %p204 = scmp.lt.s32.totalorder %s12, 5
    %p205 = pnand %p203, %p204
    %p206 = pneg %p205
    // Predicated region
    $region9: #{attention_pallas.3} parent=5 // pred_check
      _
    $region10: #{attention_pallas.3} parent=5 // pred_check_branch
      %208 = sbr.rel (%p205) target = $region12
    $region11: #{attention_pallas.3} parent=5 // pred_region
      %s209 = ssub.s32 %s12, 1
      // Predicated region
      $region13: #{attention_pallas.3} parent=11 // pred_check
        %p210 = pneg %p125
      $region14: #{attention_pallas.3} parent=11 // pred_check_branch
        %212 = sbr.rel (%p210) target = $region16
      $region15: #{attention_pallas.3} parent=11 // pred_region
        _
      $region16: #{attention_pallas.3} parent=11 // pred_fallthru
        _
      // Predicated region
      $region17: #{attention_pallas.3} parent=11 // pred_check
        %p213 = pneg %p146
      $region18: #{attention_pallas.3} parent=11 // pred_check_branch
        %215 = sbr.rel (%p213) target = $region20
      $region19: #{attention_pallas.3} parent=11 // pred_region
        _
      $region20: #{attention_pallas.3} parent=11 // pred_fallthru
        _
      // Predicated region
      $region21: #{attention_pallas.3} parent=11 // pred_check
        %p216 = pneg %p167
      $region22: #{attention_pallas.3} parent=11 // pred_check_branch
        %218 = sbr.rel (%p216) target = $region24
      $region23: #{attention_pallas.3} parent=11 // pred_region
        _
      $region24: #{attention_pallas.3} parent=11 // pred_fallthru
        _
    $region12: #{attention_pallas.3} parent=5 // pred_fallthru
      _
    %p219 = scmp.lt.s32.totalorder %s12, 4
    // Predicated region
    $region25: #{attention_pallas.3} parent=5 // pred_check
      %p220 = pneg %p219
    $region26: #{attention_pallas.3} parent=5 // pred_check_branch
      %222 = sbr.rel (%p220) target = $region28
    $region27: #{attention_pallas.3} parent=5 // pred_region
      // Predicated region
      $region29: #{attention_pallas.3} parent=27 // pred_check
        %p223 = pneg %p46
      $region30: #{attention_pallas.3} parent=27 // pred_check_branch
        %225 = sbr.rel (%p223) target = $region32
      $region31: #{attention_pallas.3} parent=27 // pred_region
        %s226 = smul.u32 16, %s20
        %p227 = scmp.lt.s32.totalorder %s19, 1
        %s228 = scalar_select %p227, %s19, 1
        %p229 = scmp.lt.s32.totalorder %s226, 31
        %s230 = scalar_select %p229, %s226, 31
        %s231 = smul.addr %s228, 32
        %s232 = sadd.s32 %s230, %s231
        %s233 = smul.addr %s232, 4
        %s234 = scalar_lea.vmem %s0, %s233
        %s235 = smul.u32 16, %s20
      $region32: #{attention_pallas.3} parent=27 // pred_fallthru
        _
      // Predicated region
      $region33: #{attention_pallas.3} parent=27 // pred_check
        %p236 = pneg %p72
      $region34: #{attention_pallas.3} parent=27 // pred_check_branch
        %238 = sbr.rel (%p236) target = $region36
      $region35: #{attention_pallas.3} parent=27 // pred_region
        %p239 = scmp.lt.s32.totalorder %s19, 1
        %s240 = scalar_select %p239, %s19, 1
        %s241 = smul.addr %s240, 8
        %s242 = smul.addr %s241, 4
        %s243 = scalar_lea.vmem %s1, %s242
      $region36: #{attention_pallas.3} parent=27 // pred_fallthru
        _
      // Predicated region
      $region37: #{attention_pallas.3} parent=27 // pred_check
        %p244 = pneg %p98
      $region38: #{attention_pallas.3} parent=27 // pred_check_branch
        %246 = sbr.rel (%p244) target = $region40
      $region39: #{attention_pallas.3} parent=27 // pred_region
        %p247 = scmp.lt.s32.totalorder %s19, 1
        %s248 = scalar_select %p247, %s19, 1
        %s249 = smul.addr %s248, 8
        %s250 = smul.addr %s249, 4
        %s251 = scalar_lea.vmem %s2, %s250
      $region40: #{attention_pallas.3} parent=27 // pred_fallthru
        _
    $region28: #{attention_pallas.3} parent=5 // pred_fallthru
      _
    %p252 = scmp.le.s32.totalorder 1, %s12
    %p253 = scmp.lt.s32.totalorder %s12, 5
    %p254 = pnand %p252, %p253
    %p255 = pneg %p254
    // Predicated region
    $region41: #{attention_pallas.3} parent=5 // pred_check
      _
    $region42: #{attention_pallas.3} parent=5 // pred_check_branch
      %257 = sbr.rel (%p254) target = $region44
    $region43: #{attention_pallas.3} parent=5 // pred_region
      %s258 = ssub.s32 %s12, 1
      %s259 = smul.u32 16, %s22
      %p260 = scmp.lt.s32.totalorder %s21, 1
      %s261 = scalar_select %p260, %s21, 1
      %p262 = scmp.lt.s32.totalorder %s259, 31
      %s263 = scalar_select %p262, %s259, 31
      %s264 = smul.addr %s261, 32
      %s265 = sadd.s32 %s263, %s264
      %s266 = smul.addr %s265, 4
      %s267 = scalar_lea.vmem %s0, %s266
      %p268 = pneg %p52
      %p269 = pneg %p49
      %p270 = scmp.lt.s32.totalorder %s21, 1
      %s271 = scalar_select %p270, %s21, 1
      %s272 = smul.addr %s271, 8
      %s273 = smul.addr %s272, 4
      %s274 = scalar_lea.vmem %s1, %s273
      %p275 = pneg %p78
      %p276 = pneg %p75
      %p277 = scmp.lt.s32.totalorder %s21, 1
      %s278 = scalar_select %p277, %s21, 1
      %s279 = smul.addr %s278, 8
      %s280 = smul.addr %s279, 4
      %s281 = scalar_lea.vmem %s2, %s280
      %p282 = pneg %p104
      %p283 = pneg %p101
      %p284 = pneg %p125
      %p285 = pneg %p122
      %p286 = pneg %p146
      %p287 = pneg %p143
      %p288 = pneg %p167
      %p289 = pneg %p164
      %p290 = pneg %p195
      %p291 = pneg %p192
      %s292 = smul.u32 16, %s22
      %p293 = scmp.lt.s32.totalorder %s21, 1
      %s294 = scalar_select %p293, %s21, 1
      %p295 = scmp.lt.s32.totalorder %s292, 31
      %s296 = scalar_select %p295, %s292, 31
      %s297 = smul.addr %s294, 32
      %s298 = sadd.s32 %s296, %s297
      %s299 = smul.addr %s298, 8
      %s300 = scalar_lea.vmem %s6, %s299
      %s301 = smul.u32 16, %s22
      %p302 = scmp.lt.s32.totalorder %s21, 1
      %s303 = scalar_select %p302, %s21, 1
      %p304 = scmp.lt.s32.totalorder %s301, 31
      %s305 = scalar_select %p304, %s301, 31
      %s306 = smul.addr %s303, 32
      %s307 = sadd.s32 %s305, %s306
      %s308 = smul.addr %s307, 4
      %s309 = scalar_lea.vmem %s0, %s308
      %s310 = smul.u32 16, %s22
      %p311 = scmp.lt.s32.totalorder %s21, 1
      %s312 = scalar_select %p311, %s21, 1
      %s313 = smul.addr %s312, 8
      %s314 = smul.addr %s313, 4
      %s315 = scalar_lea.vmem %s1, %s314
      %p316 = scmp.lt.s32.totalorder %s21, 1
      %s317 = scalar_select %p316, %s21, 1
      %s318 = smul.addr %s317, 8
      %s319 = smul.addr %s318, 4
      %s320 = scalar_lea.vmem %s2, %s319
      %s321 = smul.u32 16, %s22
      %p322 = scmp.lt.s32.totalorder %s21, 1
      %s323 = scalar_select %p322, %s21, 1
      %p324 = scmp.lt.s32.totalorder %s321, 31
      %s325 = scalar_select %p324, %s321, 31
      %s326 = smul.addr %s323, 32
      %s327 = sadd.s32 %s325, %s326
      %s328 = smul.addr %s327, 8
      %s329 = scalar_lea.vmem %s6, %s328
      %s330 = smul.u32 16, %s22
      %v332 = vld [vmem:[%s309] sm:$0xf]
      %v333 = vld [vmem:[%s309 + $0x4] sm:$0xf]
      %v334 = vld [vmem:[%s309 + $0x8] sm:$0xf]
      %v335 = vld [vmem:[%s309 + $0xc] sm:$0xf]
      %v336 = vld [vmem:[%s309 + $0x10] sm:$0xf]
      %v337 = vld [vmem:[%s309 + $0x14] sm:$0xf]
      %v338 = vld [vmem:[%s309 + $0x18] sm:$0xf]
      %v339 = vld [vmem:[%s309 + $0x1c] sm:$0xf]
      %v340 = vld [vmem:[%s309 + $0x20] sm:$0xf]
      %v341 = vld [vmem:[%s309 + $0x24] sm:$0xf]
      %v342 = vld [vmem:[%s309 + $0x28] sm:$0xf]
      %v343 = vld [vmem:[%s309 + $0x2c] sm:$0xf]
      %v344 = vld [vmem:[%s309 + $0x30] sm:$0xf]
      %v345 = vld [vmem:[%s309 + $0x34] sm:$0xf]
      %v346 = vld [vmem:[%s309 + $0x38] sm:$0xf]
      %v347 = vld [vmem:[%s309 + $0x3c] sm:$0xf]
      %v348 = vld [vmem:[%s3] sm:$0xf]
      %v349 = vld [vmem:[%s3 + $0x4] sm:$0xf]
      %v350 = vld [vmem:[%s3 + $0x8] sm:$0xf]
      %v351 = vld [vmem:[%s3 + $0xc] sm:$0xf]
      %v368 = vunpack.c.l.b16 %v332
      %v369 = vunpack.c.l.b16 %v333
      %v370 = vunpack.c.l.b16 %v334
      %v371 = vunpack.c.l.b16 %v335
      %v372 = vunpack.c.l.b16 %v336
      %v373 = vunpack.c.l.b16 %v337
      %v374 = vunpack.c.l.b16 %v338
      %v375 = vunpack.c.l.b16 %v339
      %v376 = vunpack.c.l.b16 %v340
      %v377 = vunpack.c.l.b16 %v341
      %v378 = vunpack.c.l.b16 %v342
      %v379 = vunpack.c.l.b16 %v343
      %v380 = vunpack.c.l.b16 %v344
      %v381 = vunpack.c.l.b16 %v345
      %v382 = vunpack.c.l.b16 %v346
      %v383 = vunpack.c.l.b16 %v347
      %v384 = vpack.c.b16 %v369, %v368
      %v385 = vpack.c.b16 %v371, %v370
      %v386 = vpack.c.b16 %v373, %v372
      %v387 = vpack.c.b16 %v375, %v374
      %v388 = vpack.c.b16 %v377, %v376
      %v389 = vpack.c.b16 %v379, %v378
      %v390 = vpack.c.b16 %v381, %v380
      %v391 = vpack.c.b16 %v383, %v382
      %v396 = vunpack.c.l.b16 %v348
      %v397 = vunpack.c.l.b16 %v349
      %v398 = vunpack.c.l.b16 %v350
      %v399 = vunpack.c.l.b16 %v351
      %v400 = vpack.c.b16 %v397, %v396
      %v401 = vpack.c.b16 %v399, %v398
      %vm404 = vcmask 261120
      %v406 = vsel %vm404, %v384, 0
      %v409 = vsel %vm404, %v385, 0
      %v412 = vsel %vm404, %v386, 0
      %v415 = vsel %vm404, %v387, 0
      %v418 = vsel %vm404, %v388, 0
      %v421 = vsel %vm404, %v389, 0
      %v424 = vsel %vm404, %v390, 0
      %v427 = vsel %vm404, %v391, 0
      %429 = vmatprep.subr.bf16.mxu0 0
      %430 = vmatpush1.bf16.msra.mxu0 %v400
      %431 = vmatprep.subr.bf16.mxu0 0
      %432 = vmatpush1.bf16.msra.mxu0 %v401
      %433 = vmatprep.subr.bf16.mxu0 0
      %434 = vmatpush1.bf16.msra.mxu0 0
      %435 = vmatprep.subr.bf16.mxu0 0
      %436 = vmatpush1.bf16.msra.mxu0 0
      %437 = vmatprep.subr.bf16.mxu0 0
      %438 = vmatpush1.bf16.msra.mxu0 0
      %439 = vmatprep.subr.bf16.mxu0 0
      %440 = vmatpush1.bf16.msra.mxu0 0
      %441 = vmatprep.subr.bf16.mxu0 0
      %442 = vmatpush1.bf16.msra.mxu0 0
      %443 = vmatprep.subr.bf16.mxu0 0
      %444 = vmatpush1.bf16.msra.mxu0 0
      %445 = vmatprep.subr.bf16.mxu0 0
      %446 = vmatpush1.bf16.msra.mxu0 0
      %447 = vmatprep.subr.bf16.mxu0 0
      %448 = vmatpush1.bf16.msra.mxu0 0
      %449 = vmatprep.subr.bf16.mxu0 0
      %450 = vmatpush1.bf16.msra.mxu0 0
      %451 = vmatprep.subr.bf16.mxu0 0
      %452 = vmatpush1.bf16.msra.mxu0 0
      %453 = vmatprep.subr.bf16.mxu0 0
      %454 = vmatpush1.bf16.msra.mxu0 0
      %455 = vmatprep.subr.bf16.mxu0 0
      %456 = vmatpush1.bf16.msra.mxu0 0
      %457 = vmatprep.subr.bf16.mxu0 0
      %458 = vmatpush1.bf16.msra.mxu0 0
      %459 = vmatprep.subr.bf16.mxu0 0
      %460 = vmatpush1.bf16.msra.mxu0 0
      %461 = vmatprep.mubr.bf16.mxu0 0
      %462 = vmatmul.mubr.bf16.gmra.mrb[0].mxu0 %v406
      %v463 = vpop.f32.mrb[0].mxu0
      %v464 = vadd.f32 0.0, %v463
      %v465 = vpop.f32.mrb[0].mxu0
      %v466 = vpop.f32.mrb[0].mxu0
      %v467 = vadd.f32 0.0, %v466
      %v468 = vpop.f32.mrb[0].mxu0
      %469 = vmatprep.mubr.bf16.mxu0 0
      %470 = vmatmul.mubr.bf16.gmra.mrb[0].mxu0 %v409
      %v471 = vpop.f32.mrb[0].mxu0
      %v472 = vadd.f32 0.0, %v471
      %v473 = vpop.f32.mrb[0].mxu0
      %v474 = vpop.f32.mrb[0].mxu0
      %v475 = vadd.f32 0.0, %v474
      %v476 = vpop.f32.mrb[0].mxu0
      %477 = vmatprep.mubr.bf16.mxu0 0
      %478 = vmatmul.mubr.bf16.gmra.mrb[0].mxu0 %v412
      %v479 = vpop.f32.mrb[0].mxu0
      %v480 = vadd.f32 0.0, %v479
      %v481 = vpop.f32.mrb[0].mxu0
      %v482 = vpop.f32.mrb[0].mxu0
      %v483 = vadd.f32 0.0, %v482
      %v484 = vpop.f32.mrb[0].mxu0
      %485 = vmatprep.mubr.bf16.mxu0 0
      %486 = vmatmul.mubr.bf16.gmra.mrb[0].mxu0 %v415
      %v487 = vpop.f32.mrb[0].mxu0
      %v488 = vadd.f32 0.0, %v487
      %v489 = vpop.f32.mrb[0].mxu0
      %v490 = vpop.f32.mrb[0].mxu0
      %v491 = vadd.f32 0.0, %v490
      %v492 = vpop.f32.mrb[0].mxu0
      %493 = vmatprep.mubr.bf16.mxu0 0
      %494 = vmatmul.mubr.bf16.gmra.mrb[0].mxu0 %v418
      %v495 = vpop.f32.mrb[0].mxu0
      %v496 = vadd.f32 0.0, %v495
      %v497 = vpop.f32.mrb[0].mxu0
      %v498 = vpop.f32.mrb[0].mxu0
      %v499 = vadd.f32 0.0, %v498
      %v500 = vpop.f32.mrb[0].mxu0
      %501 = vmatprep.mubr.bf16.mxu0 0
      %502 = vmatmul.mubr.bf16.gmra.mrb[0].mxu0 %v421
      %v503 = vpop.f32.mrb[0].mxu0
      %v504 = vadd.f32 0.0, %v503
      %v505 = vpop.f32.mrb[0].mxu0
      %v506 = vpop.f32.mrb[0].mxu0
      %v507 = vadd.f32 0.0, %v506
      %v508 = vpop.f32.mrb[0].mxu0
      %509 = vmatprep.mubr.bf16.mxu0 0
      %510 = vmatmul.mubr.bf16.gmra.mrb[0].mxu0 %v424
      %v511 = vpop.f32.mrb[0].mxu0
      %v512 = vadd.f32 0.0, %v511
      %v513 = vpop.f32.mrb[0].mxu0
      %v514 = vpop.f32.mrb[0].mxu0
      %v515 = vadd.f32 0.0, %v514
      %v516 = vpop.f32.mrb[0].mxu0
      %517 = vmatprep.mubr.bf16.mxu0 0
      %518 = vmatmul.mubr.bf16.gmra.mrb[0].mxu0 %v427
      %v519 = vpop.f32.mrb[0].mxu0
      %v520 = vadd.f32 0.0, %v519
      %v521 = vpop.f32.mrb[0].mxu0
      %v522 = vpop.f32.mrb[0].mxu0
      %v523 = vadd.f32 0.0, %v522
      %v524 = vpop.f32.mrb[0].mxu0
      %525 = vdwg.mxu0
      %v526 = vpack.c.bf16 %v467, %v464
      %v527 = vpack.c.bf16 %v475, %v472
      %v528 = vpack.c.bf16 %v483, %v480
      %v529 = vpack.c.bf16 %v491, %v488
      %v530 = vpack.c.bf16 %v499, %v496
      %v531 = vpack.c.bf16 %v507, %v504
      %v532 = vpack.c.bf16 %v515, %v512
      %v533 = vpack.c.bf16 %v523, %v520
      %534 = vst.msk [vmem:[#allocation2] sm:$0xff] %vm404, %v526
      %535 = vst.msk [vmem:[#allocation2 + $0x8] sm:$0xff] %vm404, %v527
      %536 = vst.msk [vmem:[#allocation2 + $0x10] sm:$0xff] %vm404, %v528
      %537 = vst.msk [vmem:[#allocation2 + $0x18] sm:$0xff] %vm404, %v529
      %538 = vst.msk [vmem:[#allocation2 + $0x20] sm:$0xff] %vm404, %v530
      %539 = vst.msk [vmem:[#allocation2 + $0x28] sm:$0xff] %vm404, %v531
      %540 = vst.msk [vmem:[#allocation2 + $0x30] sm:$0xff] %vm404, %v532
      %541 = vst.msk [vmem:[#allocation2 + $0x38] sm:$0xff] %vm404, %v533
      %v542 = vld [vmem:[#allocation2] sm:$0xff]
      %v543 = vld [vmem:[#allocation2 + $0x8] sm:$0xff]
      %v544 = vld [vmem:[#allocation2 + $0x10] sm:$0xff]
      %v545 = vld [vmem:[#allocation2 + $0x18] sm:$0xff]
      %v546 = vld [vmem:[#allocation2 + $0x20] sm:$0xff]
      %v547 = vld [vmem:[#allocation2 + $0x28] sm:$0xff]
      %v548 = vld [vmem:[#allocation2 + $0x30] sm:$0xff]
      %v549 = vld [vmem:[#allocation2 + $0x38] sm:$0xff]
      %v550 = vld [vmem:[%s315] sm:$0xf]
      %v551 = vld [vmem:[%s315 + $0x4] sm:$0xf]
      %v552 = vld [vmem:[%s315 + $0x8] sm:$0xf]
      %v553 = vld [vmem:[%s315 + $0xc] sm:$0xf]
      %v554 = vld [vmem:[%s315 + $0x10] sm:$0xf]
      %v555 = vld [vmem:[%s315 + $0x14] sm:$0xf]
      %v556 = vld [vmem:[%s315 + $0x18] sm:$0xf]
      %v557 = vld [vmem:[%s315 + $0x1c] sm:$0xf]
      %v558 = vld [vmem:[%s320] sm:$0xf]
      %v559 = vld [vmem:[%s320 + $0x4] sm:$0xf]
      %v560 = vld [vmem:[%s320 + $0x8] sm:$0xf]
      %v561 = vld [vmem:[%s320 + $0xc] sm:$0xf]
      %v562 = vld [vmem:[%s320 + $0x10] sm:$0xf]
      %v563 = vld [vmem:[%s320 + $0x14] sm:$0xf]
      %v564 = vld [vmem:[%s320 + $0x18] sm:$0xf]
      %v565 = vld [vmem:[%s320 + $0x1c] sm:$0xf]
      %v574 = vunpack.c.l.b16 %v550
      %v575 = vunpack.c.l.b16 %v551
      %v576 = vunpack.c.l.b16 %v552
      %v577 = vunpack.c.l.b16 %v553
      %v578 = vunpack.c.l.b16 %v554
      %v579 = vunpack.c.l.b16 %v555
      %v580 = vunpack.c.l.b16 %v556
      %v581 = vunpack.c.l.b16 %v557
      %v582 = vpack.c.b16 %v575, %v574
      %v583 = vpack.c.b16 %v577, %v576
      %v584 = vpack.c.b16 %v579, %v578
      %v585 = vpack.c.b16 %v581, %v580
      %vm586 = vcmask 64512
      %v588 = vsel %vm586, %v542, 0
      %v591 = vsel %vm586, %v543, 0
      %v594 = vsel %vm586, %v544, 0
      %v597 = vsel %vm586, %v545, 0
      %v600 = vsel %vm586, %v546, 0
      %v603 = vsel %vm586, %v547, 0
      %v606 = vsel %vm586, %v548, 0
      %v609 = vsel %vm586, %v549, 0
      %v612 = vsel %vm586, %v582, 0
      %v615 = vsel %vm586, %v583, 0
      %v618 = vsel %vm586, %v584, 0
      %v621 = vsel %vm586, %v585, 0
      %623 = vmatprep.subr.bf16.mxu0 0
      %624 = vmatpush1.bf16.xpose.msra.mxu0 %v612
      %625 = vmatprep.subr.bf16.mxu0 0
      %626 = vmatpush1.bf16.xpose.msra.mxu0 %v615
      %627 = vmatprep.subr.bf16.mxu0 0
      %628 = vmatpush1.bf16.xpose.msra.mxu0 %v618
      %629 = vmatprep.subr.bf16.mxu0 0
      %630 = vmatpush1.bf16.xpose.msra.mxu0 %v621
      %631 = vmatprep.subr.bf16.mxu0 0
      %632 = vmatpush1.bf16.xpose.msra.mxu0 0
      %633 = vmatprep.subr.bf16.mxu0 0
      %634 = vmatpush1.bf16.xpose.msra.mxu0 0
      %635 = vmatprep.subr.bf16.mxu0 0
      %636 = vmatpush1.bf16.xpose.msra.mxu0 0
      %637 = vmatprep.subr.bf16.mxu0 0
      %638 = vmatpush1.bf16.xpose.msra.mxu0 0
      %639 = vmatprep.subr.bf16.mxu0 0
      %640 = vmatpush1.bf16.xpose.msra.mxu0 0
      %641 = vmatprep.subr.bf16.mxu0 0
      %642 = vmatpush1.bf16.xpose.msra.mxu0 0
      %643 = vmatprep.subr.bf16.mxu0 0
      %644 = vmatpush1.bf16.xpose.msra.mxu0 0
      %645 = vmatprep.subr.bf16.mxu0 0
      %646 = vmatpush1.bf16.xpose.msra.mxu0 0
      %647 = vmatprep.subr.bf16.mxu0 0
      %648 = vmatpush1.bf16.xpose.msra.mxu0 0
      %649 = vmatprep.subr.bf16.mxu0 0
      %650 = vmatpush1.bf16.xpose.msra.mxu0 0
      %651 = vmatprep.subr.bf16.mxu0 0
      %652 = vmatpush1.bf16.xpose.msra.mxu0 0
      %653 = vmatprep.subr.bf16.mxu0 0
      %654 = vmatpush1.bf16.xpose.msra.mxu0 0
      %655 = vmatprep.mubr.bf16.mxu0 0
      %656 = vmatmul.mubr.bf16.gmra.mrb[0].mxu0 %v588
      %v657 = vpop.f32.mrb[0].mxu0
      %v658 = vadd.f32 0.0, %v657
      %v659 = vpop.f32.mrb[0].mxu0
      %v660 = vpop.f32.mrb[0].mxu0
      %v661 = vadd.f32 0.0, %v660
      %v662 = vpop.f32.mrb[0].mxu0
      %663 = vmatprep.mubr.bf16.mxu0 0
      %664 = vmatmul.mubr.bf16.gmra.mrb[0].mxu0 %v591
      %v665 = vpop.f32.mrb[0].mxu0
      %v666 = vadd.f32 0.0, %v665
      %v667 = vpop.f32.mrb[0].mxu0
      %v668 = vpop.f32.mrb[0].mxu0
      %v669 = vadd.f32 0.0, %v668
      %v670 = vpop.f32.mrb[0].mxu0
      %671 = vmatprep.mubr.bf16.mxu0 0
      %672 = vmatmul.mubr.bf16.gmra.mrb[0].mxu0 %v594
      %v673 = vpop.f32.mrb[0].mxu0
      %v674 = vadd.f32 0.0, %v673
      %v675 = vpop.f32.mrb[0].mxu0
      %v676 = vpop.f32.mrb[0].mxu0
      %v677 = vadd.f32 0.0, %v676
      %v678 = vpop.f32.mrb[0].mxu0
      %679 = vmatprep.mubr.bf16.mxu0 0
      %680 = vmatmul.mubr.bf16.gmra.mrb[0].mxu0 %v597
      %v681 = vpop.f32.mrb[0].mxu0
      %v682 = vadd.f32 0.0, %v681
      %v683 = vpop.f32.mrb[0].mxu0
      %v684 = vpop.f32.mrb[0].mxu0
      %v685 = vadd.f32 0.0, %v684
      %v686 = vpop.f32.mrb[0].mxu0
      %687 = vmatprep.mubr.bf16.mxu0 0
      %688 = vmatmul.mubr.bf16.gmra.mrb[0].mxu0 %v600
      %v689 = vpop.f32.mrb[0].mxu0
      %v690 = vadd.f32 0.0, %v689
      %v691 = vpop.f32.mrb[0].mxu0
      %v692 = vpop.f32.mrb[0].mxu0
      %v693 = vadd.f32 0.0, %v692
      %v694 = vpop.f32.mrb[0].mxu0
      %695 = vmatprep.mubr.bf16.mxu0 0
      %696 = vmatmul.mubr.bf16.gmra.mrb[0].mxu0 %v603
      %v697 = vpop.f32.mrb[0].mxu0
      %v698 = vadd.f32 0.0, %v697
      %v699 = vpop.f32.mrb[0].mxu0
      %v700 = vpop.f32.mrb[0].mxu0
      %v701 = vadd.f32 0.0, %v700
      %v702 = vpop.f32.mrb[0].mxu0
      %703 = vmatprep.mubr.bf16.mxu0 0
      %704 = vmatmul.mubr.bf16.gmra.mrb[0].mxu0 %v606
      %v705 = vpop.f32.mrb[0].mxu0
      %v706 = vadd.f32 0.0, %v705
      %v707 = vpop.f32.mrb[0].mxu0
      %v708 = vpop.f32.mrb[0].mxu0
      %v709 = vadd.f32 0.0, %v708
      %v710 = vpop.f32.mrb[0].mxu0
      %711 = vmatprep.mubr.bf16.mxu0 0
      %712 = vmatmul.mubr.bf16.gmra.mrb[0].mxu0 %v609
      %v713 = vpop.f32.mrb[0].mxu0
      %v714 = vadd.f32 0.0, %v713
      %v715 = vpop.f32.mrb[0].mxu0
      %v716 = vpop.f32.mrb[0].mxu0
      %v717 = vadd.f32 0.0, %v716
      %v718 = vpop.f32.mrb[0].mxu0
      %719 = vdwg.mxu0
      %vm720 = vcmask 523264
      %v721 = vsel %vm720, %v658, -inf
      %722 = vmax.xlane.f32.xlu0 %v721
      %v723 = vpop.xlane.xlu0 %722
      %v724 = vsel %vm720, %v661, -inf
      %725 = vmax.xlane.f32.xlu0 %v724
      %v726 = vpop.xlane.xlu0 %725
      %v727 = vsel %vm720, %v666, -inf
      %728 = vmax.xlane.f32.xlu0 %v727
      %v729 = vpop.xlane.xlu0 %728
      %v730 = vsel %vm720, %v669, -inf
      %731 = vmax.xlane.f32.xlu0 %v730
      %v732 = vpop.xlane.xlu0 %731
      %v733 = vsel %vm720, %v674, -inf
      %734 = vmax.xlane.f32.xlu0 %v733
      %v735 = vpop.xlane.xlu0 %734
      %v736 = vsel %vm720, %v677, -inf
      %737 = vmax.xlane.f32.xlu0 %v736
      %v738 = vpop.xlane.xlu0 %737
      %v739 = vsel %vm720, %v682, -inf
      %740 = vmax.xlane.f32.xlu0 %v739
      %v741 = vpop.xlane.xlu0 %740
      %v742 = vsel %vm720, %v685, -inf
      %743 = vmax.xlane.f32.xlu0 %v742
      %v744 = vpop.xlane.xlu0 %743
      %v745 = vsel %vm720, %v690, -inf
      %746 = vmax.xlane.f32.xlu0 %v745
      %v747 = vpop.xlane.xlu0 %746
      %v748 = vsel %vm720, %v693, -inf
      %749 = vmax.xlane.f32.xlu0 %v748
      %v750 = vpop.xlane.xlu0 %749
      %v751 = vsel %vm720, %v698, -inf
      %752 = vmax.xlane.f32.xlu0 %v751
      %v753 = vpop.xlane.xlu0 %752
      %v754 = vsel %vm720, %v701, -inf
      %755 = vmax.xlane.f32.xlu0 %v754
      %v756 = vpop.xlane.xlu0 %755
      %v757 = vsel %vm720, %v706, -inf
      %758 = vmax.xlane.f32.xlu0 %v757
      %v759 = vpop.xlane.xlu0 %758
      %v760 = vsel %vm720, %v709, -inf
      %761 = vmax.xlane.f32.xlu0 %v760
      %v762 = vpop.xlane.xlu0 %761
      %v763 = vsel %vm720, %v714, -inf
      %764 = vmax.xlane.f32.xlu0 %v763
      %v765 = vpop.xlane.xlu0 %764
      %v766 = vsel %vm720, %v717, -inf
      %767 = vmax.xlane.f32.xlu0 %v766
      %v768 = vpop.xlane.xlu0 %767
      %v769 = vsub.f32 %v658, %v723
      %v770 = vsub.f32 %v661, %v726
      %v771 = vsub.f32 %v666, %v729
      %v772 = vsub.f32 %v669, %v732
      %v773 = vsub.f32 %v674, %v735
      %v774 = vsub.f32 %v677, %v738
      %v775 = vsub.f32 %v682, %v741
      %v776 = vsub.f32 %v685, %v744
      %v777 = vsub.f32 %v690, %v747
      %v778 = vsub.f32 %v693, %v750
      %v779 = vsub.f32 %v698, %v753
      %v780 = vsub.f32 %v701, %v756
      %v781 = vsub.f32 %v706, %v759
      %v782 = vsub.f32 %v709, %v762
      %v783 = vsub.f32 %v714, %v765
      %v784 = vsub.f32 %v717, %v768
      %v785 = vmul.f32 %v769, 1.442695
      %v786 = vpow.pop %v785
      %v787 = vmul.f32 %v770, 1.442695
      %v788 = vpow.pop %v787
      %v789 = vmul.f32 %v771, 1.442695
      %v790 = vpow.pop %v789
      %v791 = vmul.f32 %v772, 1.442695
      %v792 = vpow.pop %v791
      %v793 = vmul.f32 %v773, 1.442695
      %v794 = vpow.pop %v793
      %v795 = vmul.f32 %v774, 1.442695
      %v796 = vpow.pop %v795
      %v797 = vmul.f32 %v775, 1.442695
      %v798 = vpow.pop %v797
      %v799 = vmul.f32 %v776, 1.442695
      %v800 = vpow.pop %v799
      %v801 = vmul.f32 %v777, 1.442695
      %v802 = vpow.pop %v801
      %v803 = vmul.f32 %v778, 1.442695
      %v804 = vpow.pop %v803
      %v805 = vmul.f32 %v779, 1.442695
      %v806 = vpow.pop %v805
      %v807 = vmul.f32 %v780, 1.442695
      %v808 = vpow.pop %v807
      %v809 = vmul.f32 %v781, 1.442695
      %v810 = vpow.pop %v809
      %v811 = vmul.f32 %v782, 1.442695
      %v812 = vpow.pop %v811
      %v813 = vmul.f32 %v783, 1.442695
      %v814 = vpow.pop %v813
      %v815 = vmul.f32 %v784, 1.442695
      %v816 = vpow.pop %v815
      %v817 = vsel %vm720, %v786, 0.0
      %818 = vadd.xlane.f32.xlu0 %v817
      %v819 = vpop.xlane.xlu0 %818
      %v820 = vsel %vm720, %v788, 0.0
      %821 = vadd.xlane.f32.xlu0 %v820
      %v822 = vpop.xlane.xlu0 %821
      %v823 = vsel %vm720, %v790, 0.0
      %824 = vadd.xlane.f32.xlu0 %v823
      %v825 = vpop.xlane.xlu0 %824
      %v826 = vsel %vm720, %v792, 0.0
      %827 = vadd.xlane.f32.xlu0 %v826
      %v828 = vpop.xlane.xlu0 %827
      %v829 = vsel %vm720, %v794, 0.0
      %830 = vadd.xlane.f32.xlu0 %v829
      %v831 = vpop.xlane.xlu0 %830
      %v832 = vsel %vm720, %v796, 0.0
      %833 = vadd.xlane.f32.xlu0 %v832
      %v834 = vpop.xlane.xlu0 %833
      %v835 = vsel %vm720, %v798, 0.0
      %836 = vadd.xlane.f32.xlu0 %v835
      %v837 = vpop.xlane.xlu0 %836
      %v838 = vsel %vm720, %v800, 0.0
      %839 = vadd.xlane.f32.xlu0 %v838
      %v840 = vpop.xlane.xlu0 %839
      %v841 = vsel %vm720, %v802, 0.0
      %842 = vadd.xlane.f32.xlu0 %v841
      %v843 = vpop.xlane.xlu0 %842
      %v844 = vsel %vm720, %v804, 0.0
      %845 = vadd.xlane.f32.xlu0 %v844
      %v846 = vpop.xlane.xlu0 %845
      %v847 = vsel %vm720, %v806, 0.0
      %848 = vadd.xlane.f32.xlu0 %v847
      %v849 = vpop.xlane.xlu0 %848
      %v850 = vsel %vm720, %v808, 0.0
      %851 = vadd.xlane.f32.xlu0 %v850
      %v852 = vpop.xlane.xlu0 %851
      %v853 = vsel %vm720, %v810, 0.0
      %854 = vadd.xlane.f32.xlu0 %v853
      %v855 = vpop.xlane.xlu0 %854
      %v856 = vsel %vm720, %v812, 0.0
      %857 = vadd.xlane.f32.xlu0 %v856
      %v858 = vpop.xlane.xlu0 %857
      %v859 = vsel %vm720, %v814, 0.0
      %860 = vadd.xlane.f32.xlu0 %v859
      %v861 = vpop.xlane.xlu0 %860
      %v862 = vsel %vm720, %v816, 0.0
      %863 = vadd.xlane.f32.xlu0 %v862
      %v864 = vpop.xlane.xlu0 %863
      %v865 = vpack.c.bf16 %v788, %v786
      %v866 = vpack.c.bf16 %v792, %v790
      %v867 = vpack.c.bf16 %v796, %v794
      %v868 = vpack.c.bf16 %v800, %v798
      %v869 = vpack.c.bf16 %v804, %v802
      %v870 = vpack.c.bf16 %v808, %v806
      %v871 = vpack.c.bf16 %v812, %v810
      %v872 = vpack.c.bf16 %v816, %v814
      %v881 = vunpack.c.l.b16 %v558
      %v882 = vunpack.c.l.b16 %v559
      %v883 = vunpack.c.l.b16 %v560
      %v884 = vunpack.c.l.b16 %v561
      %v885 = vunpack.c.l.b16 %v562
      %v886 = vunpack.c.l.b16 %v563
      %v887 = vunpack.c.l.b16 %v564
      %v888 = vunpack.c.l.b16 %v565
      %v889 = vpack.c.b16 %v882, %v881
      %v890 = vpack.c.b16 %v884, %v883
      %v891 = vpack.c.b16 %v886, %v885
      %v892 = vpack.c.b16 %v888, %v887
      %v898 = vsel %vm720, %v865, 0
      %v901 = vsel %vm720, %v866, 0
      %v904 = vsel %vm720, %v867, 0
      %v907 = vsel %vm720, %v868, 0
      %v910 = vsel %vm720, %v869, 0
      %v913 = vsel %vm720, %v870, 0
      %v916 = vsel %vm720, %v871, 0
      %v919 = vsel %vm720, %v872, 0
      %921 = vmatprep.subr.bf16.mxu0 0
      %922 = vmatpush1.bf16.msra.mxu0 %v889
      %923 = vmatprep.subr.bf16.mxu0 0
      %924 = vmatpush1.bf16.msra.mxu0 %v890
      %925 = vmatprep.subr.bf16.mxu0 0
      %926 = vmatpush1.bf16.msra.mxu0 %v891
      %927 = vmatprep.subr.bf16.mxu0 0
      %928 = vmatpush1.bf16.msra.mxu0 %v892
      %929 = vmatprep.subr.bf16.mxu0 0
      %930 = vmatpush1.bf16.msra.mxu0 0
      %931 = vmatprep.subr.bf16.mxu0 0
      %932 = vmatpush1.bf16.msra.mxu0 0
      %933 = vmatprep.subr.bf16.mxu0 0
      %934 = vmatpush1.bf16.msra.mxu0 0
      %935 = vmatprep.subr.bf16.mxu0 0
      %936 = vmatpush1.bf16.msra.mxu0 0
      %937 = vmatprep.subr.bf16.mxu0 0
      %938 = vmatpush1.bf16.msra.mxu0 0
      %939 = vmatprep.subr.bf16.mxu0 0
      %940 = vmatpush1.bf16.msra.mxu0 0
      %941 = vmatprep.subr.bf16.mxu0 0
      %942 = vmatpush1.bf16.msra.mxu0 0
      %943 = vmatprep.subr.bf16.mxu0 0
      %944 = vmatpush1.bf16.msra.mxu0 0
      %945 = vmatprep.subr.bf16.mxu0 0
      %946 = vmatpush1.bf16.msra.mxu0 0
      %947 = vmatprep.subr.bf16.mxu0 0
      %948 = vmatpush1.bf16.msra.mxu0 0
      %949 = vmatprep.subr.bf16.mxu0 0
      %950 = vmatpush1.bf16.msra.mxu0 0
      %951 = vmatprep.subr.bf16.mxu0 0
      %952 = vmatpush1.bf16.msra.mxu0 0
      %953 = vmatprep.mubr.bf16.mxu0 0
      %954 = vmatmul.mubr.bf16.gmra.mrb[0].mxu0 %v898
      %v955 = vpop.f32.mrb[0].mxu0
      %v956 = vadd.f32 0.0, %v955
      %v957 = vpop.f32.mrb[0].mxu0
      %v958 = vpop.f32.mrb[0].mxu0
      %v959 = vadd.f32 0.0, %v958
      %v960 = vpop.f32.mrb[0].mxu0
      %961 = vmatprep.mubr.bf16.mxu0 0
      %962 = vmatmul.mubr.bf16.gmra.mrb[0].mxu0 %v901
      %v963 = vpop.f32.mrb[0].mxu0
      %v964 = vadd.f32 0.0, %v963
      %v965 = vpop.f32.mrb[0].mxu0
      %v966 = vpop.f32.mrb[0].mxu0
      %v967 = vadd.f32 0.0, %v966
      %v968 = vpop.f32.mrb[0].mxu0
      %969 = vmatprep.mubr.bf16.mxu0 0
      %970 = vmatmul.mubr.bf16.gmra.mrb[0].mxu0 %v904
      %v971 = vpop.f32.mrb[0].mxu0
      %v972 = vadd.f32 0.0, %v971
      %v973 = vpop.f32.mrb[0].mxu0
      %v974 = vpop.f32.mrb[0].mxu0
      %v975 = vadd.f32 0.0, %v974
      %v976 = vpop.f32.mrb[0].mxu0
      %977 = vmatprep.mubr.bf16.mxu0 0
      %978 = vmatmul.mubr.bf16.gmra.mrb[0].mxu0 %v907
      %v979 = vpop.f32.mrb[0].mxu0
      %v980 = vadd.f32 0.0, %v979
      %v981 = vpop.f32.mrb[0].mxu0
      %v982 = vpop.f32.mrb[0].mxu0
      %v983 = vadd.f32 0.0, %v982
      %v984 = vpop.f32.mrb[0].mxu0
      %985 = vmatprep.mubr.bf16.mxu0 0
      %986 = vmatmul.mubr.bf16.gmra.mrb[0].mxu0 %v910
      %v987 = vpop.f32.mrb[0].mxu0
      %v988 = vadd.f32 0.0, %v987
      %v989 = vpop.f32.mrb[0].mxu0
      %v990 = vpop.f32.mrb[0].mxu0
      %v991 = vadd.f32 0.0, %v990
      %v992 = vpop.f32.mrb[0].mxu0
      %993 = vmatprep.mubr.bf16.mxu0 0
      %994 = vmatmul.mubr.bf16.gmra.mrb[0].mxu0 %v913
      %v995 = vpop.f32.mrb[0].mxu0
      %v996 = vadd.f32 0.0, %v995
      %v997 = vpop.f32.mrb[0].mxu0
      %v998 = vpop.f32.mrb[0].mxu0
      %v999 = vadd.f32 0.0, %v998
      %v1000 = vpop.f32.mrb[0].mxu0
      %1001 = vmatprep.mubr.bf16.mxu0 0
      %1002 = vmatmul.mubr.bf16.gmra.mrb[0].mxu0 %v916
      %v1003 = vpop.f32.mrb[0].mxu0
      %v1004 = vadd.f32 0.0, %v1003
      %v1005 = vpop.f32.mrb[0].mxu0
      %v1006 = vpop.f32.mrb[0].mxu0
      %v1007 = vadd.f32 0.0, %v1006
      %v1008 = vpop.f32.mrb[0].mxu0
      %1009 = vmatprep.mubr.bf16.mxu0 0
      %1010 = vmatmul.mubr.bf16.gmra.mrb[0].mxu0 %v919
      %v1011 = vpop.f32.mrb[0].mxu0
      %v1012 = vadd.f32 0.0, %v1011
      %v1013 = vpop.f32.mrb[0].mxu0
      %v1014 = vpop.f32.mrb[0].mxu0
      %v1015 = vadd.f32 0.0, %v1014
      %v1016 = vpop.f32.mrb[0].mxu0
      %1017 = vdwg.mxu0
      %v1018 = vrcp.pop %v819
      %v1019 = vrcp.pop %v822
      %v1020 = vrcp.pop %v825
      %v1021 = vrcp.pop %v828
      %v1022 = vrcp.pop %v831
      %v1023 = vrcp.pop %v834
      %v1024 = vrcp.pop %v837
      %v1025 = vrcp.pop %v840
      %v1026 = vrcp.pop %v843
      %v1027 = vrcp.pop %v846
      %v1028 = vrcp.pop %v849
      %v1029 = vrcp.pop %v852
      %v1030 = vrcp.pop %v855
      %v1031 = vrcp.pop %v858
      %v1032 = vrcp.pop %v861
      %v1033 = vrcp.pop %v864
      %v1034 = vmul.f32 %v956, %v1018
      %v1035 = vmul.f32 %v959, %v1019
      %v1036 = vmul.f32 %v964, %v1020
      %v1037 = vmul.f32 %v967, %v1021
      %v1038 = vmul.f32 %v972, %v1022
      %v1039 = vmul.f32 %v975, %v1023
      %v1040 = vmul.f32 %v980, %v1024
      %v1041 = vmul.f32 %v983, %v1025
      %v1042 = vmul.f32 %v988, %v1026
      %v1043 = vmul.f32 %v991, %v1027
      %v1044 = vmul.f32 %v996, %v1028
      %v1045 = vmul.f32 %v999, %v1029
      %v1046 = vmul.f32 %v1004, %v1030
      %v1047 = vmul.f32 %v1007, %v1031
      %v1048 = vmul.f32 %v1012, %v1032
      %v1049 = vmul.f32 %v1015, %v1033
      %v1050 = vpack.c.bf16 %v1035, %v1034
      %v1051 = vpack.c.bf16 %v1037, %v1036
      %v1052 = vpack.c.bf16 %v1039, %v1038
      %v1053 = vpack.c.bf16 %v1041, %v1040
      %v1054 = vpack.c.bf16 %v1043, %v1042
      %v1055 = vpack.c.bf16 %v1045, %v1044
      %v1056 = vpack.c.bf16 %v1047, %v1046
      %v1057 = vpack.c.bf16 %v1049, %v1048
      %1058 = vst.msk [vmem:[#allocation3] sm:$0xff] %vm586, %v1050
      %1059 = vst.msk [vmem:[#allocation3 + $0x8] sm:$0xff] %vm586, %v1051
      %1060 = vst.msk [vmem:[#allocation3 + $0x10] sm:$0xff] %vm586, %v1052
      %1061 = vst.msk [vmem:[#allocation3 + $0x18] sm:$0xff] %vm586, %v1053
      %1062 = vst.msk [vmem:[#allocation3 + $0x20] sm:$0xff] %vm586, %v1054
      %1063 = vst.msk [vmem:[#allocation3 + $0x28] sm:$0xff] %vm586, %v1055
      %1064 = vst.msk [vmem:[#allocation3 + $0x30] sm:$0xff] %vm586, %v1056
      %1065 = vst.msk [vmem:[#allocation3 + $0x38] sm:$0xff] %vm586, %v1057
      %v1066 = vld [vmem:[#allocation2] sm:$0xff]
      %v1067 = vld [vmem:[#allocation2 + $0x8] sm:$0xff]
      %v1068 = vld [vmem:[#allocation2 + $0x10] sm:$0xff]
      %v1069 = vld [vmem:[#allocation2 + $0x18] sm:$0xff]
      %v1070 = vld [vmem:[#allocation2 + $0x20] sm:$0xff]
      %v1071 = vld [vmem:[#allocation2 + $0x28] sm:$0xff]
      %v1072 = vld [vmem:[#allocation2 + $0x30] sm:$0xff]
      %v1073 = vld [vmem:[#allocation2 + $0x38] sm:$0xff]
      %v1074 = vld [vmem:[%s315] sm:$0xf]
      %v1075 = vld [vmem:[%s315 + $0x4] sm:$0xf]
      %v1076 = vld [vmem:[%s315 + $0x8] sm:$0xf]
      %v1077 = vld [vmem:[%s315 + $0xc] sm:$0xf]
      %v1078 = vld [vmem:[%s315 + $0x10] sm:$0xf]
      %v1079 = vld [vmem:[%s315 + $0x14] sm:$0xf]
      %v1080 = vld [vmem:[%s315 + $0x18] sm:$0xf]
      %v1081 = vld [vmem:[%s315 + $0x1c] sm:$0xf]
      %v1082 = vld [vmem:[%s320] sm:$0xf]
      %v1083 = vld [vmem:[%s320 + $0x4] sm:$0xf]
      %v1084 = vld [vmem:[%s320 + $0x8] sm:$0xf]
      %v1085 = vld [vmem:[%s320 + $0xc] sm:$0xf]
      %v1086 = vld [vmem:[%s320 + $0x10] sm:$0xf]
      %v1087 = vld [vmem:[%s320 + $0x14] sm:$0xf]
      %v1088 = vld [vmem:[%s320 + $0x18] sm:$0xf]
      %v1089 = vld [vmem:[%s320 + $0x1c] sm:$0xf]
      %1098 = vrot.lane.b32.xlu0 %v1066, 120
      %v1099 = vpop.permute.xlu0 %1098
      %1100 = vrot.lane.b32.xlu0 %v1067, 120
      %v1101 = vpop.permute.xlu0 %1100
      %1102 = vrot.lane.b32.xlu0 %v1068, 120
      %v1103 = vpop.permute.xlu0 %1102
      %1104 = vrot.lane.b32.xlu0 %v1069, 120
      %v1105 = vpop.permute.xlu0 %1104
      %1106 = vrot.lane.b32.xlu0 %v1070, 120
      %v1107 = vpop.permute.xlu0 %1106
      %1108 = vrot.lane.b32.xlu0 %v1071, 120
      %v1109 = vpop.permute.xlu0 %1108
      %1110 = vrot.lane.b32.xlu0 %v1072, 120
      %v1111 = vpop.permute.xlu0 %1110
      %1112 = vrot.lane.b32.xlu0 %v1073, 120
      %v1113 = vpop.permute.xlu0 %1112
      %v1122 = vunpack.c.l.b16 %v1074
      %v1123 = vunpack.c.l.b16 %v1075
      %v1124 = vunpack.c.l.b16 %v1076
      %v1125 = vunpack.c.l.b16 %v1077
      %v1126 = vunpack.c.l.b16 %v1078
      %v1127 = vunpack.c.l.b16 %v1079
      %v1128 = vunpack.c.l.b16 %v1080
      %v1129 = vunpack.c.l.b16 %v1081
      %v1130 = vpack.c.b16 %v1123, %v1122
      %v1131 = vpack.c.b16 %v1125, %v1124
      %v1132 = vpack.c.b16 %v1127, %v1126
      %v1133 = vpack.c.b16 %v1129, %v1128
      %1134 = vrot.lane.b32.xlu0 %v1130, 120
      %v1135 = vpop.permute.xlu0 %1134
      %1136 = vrot.lane.b32.xlu0 %v1131, 120
      %v1137 = vpop.permute.xlu0 %1136
      %1138 = vrot.lane.b32.xlu0 %v1132, 120
      %v1139 = vpop.permute.xlu0 %1138
      %1140 = vrot.lane.b32.xlu0 %v1133, 120
      %v1141 = vpop.permute.xlu0 %1140
      %v1143 = vsel %vm586, %v1099, 0
      %v1146 = vsel %vm586, %v1101, 0
      %v1149 = vsel %vm586, %v1103, 0
      %v1152 = vsel %vm586, %v1105, 0
      %v1155 = vsel %vm586, %v1107, 0
      %v1158 = vsel %vm586, %v1109, 0
      %v1161 = vsel %vm586, %v1111, 0
      %v1164 = vsel %vm586, %v1113, 0
      %v1167 = vsel %vm586, %v1135, 0
      %v1170 = vsel %vm586, %v1137, 0
      %v1173 = vsel %vm586, %v1139, 0
      %v1176 = vsel %vm586, %v1141, 0
      %1178 = vmatprep.subr.bf16.mxu0 0
      %1179 = vmatpush1.bf16.xpose.msra.mxu0 %v1167
      %1180 = vmatprep.subr.bf16.mxu0 0
      %1181 = vmatpush1.bf16.xpose.msra.mxu0 %v1170
      %1182 = vmatprep.subr.bf16.mxu0 0
      %1183 = vmatpush1.bf16.xpose.msra.mxu0 %v1173
      %1184 = vmatprep.subr.bf16.mxu0 0
      %1185 = vmatpush1.bf16.xpose.msra.mxu0 %v1176
      %1186 = vmatprep.subr.bf16.mxu0 0
      %1187 = vmatpush1.bf16.xpose.msra.mxu0 0
      %1188 = vmatprep.subr.bf16.mxu0 0
      %1189 = vmatpush1.bf16.xpose.msra.mxu0 0
      %1190 = vmatprep.subr.bf16.mxu0 0
      %1191 = vmatpush1.bf16.xpose.msra.mxu0 0
      %1192 = vmatprep.subr.bf16.mxu0 0
      %1193 = vmatpush1.bf16.xpose.msra.mxu0 0
      %1194 = vmatprep.subr.bf16.mxu0 0
      %1195 = vmatpush1.bf16.xpose.msra.mxu0 0
      %1196 = vmatprep.subr.bf16.mxu0 0
      %1197 = vmatpush1.bf16.xpose.msra.mxu0 0
      %1198 = vmatprep.subr.bf16.mxu0 0
      %1199 = vmatpush1.bf16.xpose.msra.mxu0 0
      %1200 = vmatprep.subr.bf16.mxu0 0
      %1201 = vmatpush1.bf16.xpose.msra.mxu0 0
      %1202 = vmatprep.subr.bf16.mxu0 0
      %1203 = vmatpush1.bf16.xpose.msra.mxu0 0
      %1204 = vmatprep.subr.bf16.mxu0 0
      %1205 = vmatpush1.bf16.xpose.msra.mxu0 0
      %1206 = vmatprep.subr.bf16.mxu0 0
      %1207 = vmatpush1.bf16.xpose.msra.mxu0 0
      %1208 = vmatprep.subr.bf16.mxu0 0
      %1209 = vmatpush1.bf16.xpose.msra.mxu0 0
      %1210 = vmatprep.mubr.bf16.mxu0 0
      %1211 = vmatmul.mubr.bf16.gmra.mrb[0].mxu0 %v1143
      %v1212 = vpop.f32.mrb[0].mxu0
      %v1213 = vadd.f32 0.0, %v1212
      %v1214 = vpop.f32.mrb[0].mxu0
      %v1215 = vpop.f32.mrb[0].mxu0
      %v1216 = vadd.f32 0.0, %v1215
      %v1217 = vpop.f32.mrb[0].mxu0
      %1218 = vmatprep.mubr.bf16.mxu0 0
      %1219 = vmatmul.mubr.bf16.gmra.mrb[0].mxu0 %v1146
      %v1220 = vpop.f32.mrb[0].mxu0
      %v1221 = vadd.f32 0.0, %v1220
      %v1222 = vpop.f32.mrb[0].mxu0
      %v1223 = vpop.f32.mrb[0].mxu0
      %v1224 = vadd.f32 0.0, %v1223
      %v1225 = vpop.f32.mrb[0].mxu0
      %1226 = vmatprep.mubr.bf16.mxu0 0
      %1227 = vmatmul.mubr.bf16.gmra.mrb[0].mxu0 %v1149
      %v1228 = vpop.f32.mrb[0].mxu0
      %v1229 = vadd.f32 0.0, %v1228
      %v1230 = vpop.f32.mrb[0].mxu0
      %v1231 = vpop.f32.mrb[0].mxu0
      %v1232 = vadd.f32 0.0, %v1231
      %v1233 = vpop.f32.mrb[0].mxu0
      %1234 = vmatprep.mubr.bf16.mxu0 0
      %1235 = vmatmul.mubr.bf16.gmra.mrb[0].mxu0 %v1152
      %v1236 = vpop.f32.mrb[0].mxu0
      %v1237 = vadd.f32 0.0, %v1236
      %v1238 = vpop.f32.mrb[0].mxu0
      %v1239 = vpop.f32.mrb[0].mxu0
      %v1240 = vadd.f32 0.0, %v1239
      %v1241 = vpop.f32.mrb[0].mxu0
      %1242 = vmatprep.mubr.bf16.mxu0 0
      %1243 = vmatmul.mubr.bf16.gmra.mrb[0].mxu0 %v1155
      %v1244 = vpop.f32.mrb[0].mxu0
      %v1245 = vadd.f32 0.0, %v1244
      %v1246 = vpop.f32.mrb[0].mxu0
      %v1247 = vpop.f32.mrb[0].mxu0
      %v1248 = vadd.f32 0.0, %v1247
      %v1249 = vpop.f32.mrb[0].mxu0
      %1250 = vmatprep.mubr.bf16.mxu0 0
      %1251 = vmatmul.mubr.bf16.gmra.mrb[0].mxu0 %v1158
      %v1252 = vpop.f32.mrb[0].mxu0
      %v1253 = vadd.f32 0.0, %v1252
      %v1254 = vpop.f32.mrb[0].mxu0
      %v1255 = vpop.f32.mrb[0].mxu0
      %v1256 = vadd.f32 0.0, %v1255
      %v1257 = vpop.f32.mrb[0].mxu0
      %1258 = vmatprep.mubr.bf16.mxu0 0
      %1259 = vmatmul.mubr.bf16.gmra.mrb[0].mxu0 %v1161
      %v1260 = vpop.f32.mrb[0].mxu0
      %v1261 = vadd.f32 0.0, %v1260
      %v1262 = vpop.f32.mrb[0].mxu0
      %v1263 = vpop.f32.mrb[0].mxu0
      %v1264 = vadd.f32 0.0, %v1263
      %v1265 = vpop.f32.mrb[0].mxu0
      %1266 = vmatprep.mubr.bf16.mxu0 0
      %1267 = vmatmul.mubr.bf16.gmra.mrb[0].mxu0 %v1164
      %v1268 = vpop.f32.mrb[0].mxu0
      %v1269 = vadd.f32 0.0, %v1268
      %v1270 = vpop.f32.mrb[0].mxu0
      %v1271 = vpop.f32.mrb[0].mxu0
      %v1272 = vadd.f32 0.0, %v1271
      %v1273 = vpop.f32.mrb[0].mxu0
      %1274 = vdwg.mxu0
      %v1275 = vsel %vm720, %v1213, -inf
      %1276 = vmax.xlane.f32.xlu0 %v1275
      %v1277 = vpop.xlane.xlu0 %1276
      %v1278 = vsel %vm720, %v1216, -inf
      %1279 = vmax.xlane.f32.xlu0 %v1278
      %v1280 = vpop.xlane.xlu0 %1279
      %v1281 = vsel %vm720, %v1221, -inf
      %1282 = vmax.xlane.f32.xlu0 %v1281
      %v1283 = vpop.xlane.xlu0 %1282
      %v1284 = vsel %vm720, %v1224, -inf
      %1285 = vmax.xlane.f32.xlu0 %v1284
      %v1286 = vpop.xlane.xlu0 %1285
      %v1287 = vsel %vm720, %v1229, -inf
      %1288 = vmax.xlane.f32.xlu0 %v1287
      %v1289 = vpop.xlane.xlu0 %1288
      %v1290 = vsel %vm720, %v1232, -inf
      %1291 = vmax.xlane.f32.xlu0 %v1290
      %v1292 = vpop.xlane.xlu0 %1291
      %v1293 = vsel %vm720, %v1237, -inf
      %1294 = vmax.xlane.f32.xlu0 %v1293
      %v1295 = vpop.xlane.xlu0 %1294
      %v1296 = vsel %vm720, %v1240, -inf
      %1297 = vmax.xlane.f32.xlu0 %v1296
      %v1298 = vpop.xlane.xlu0 %1297
      %v1299 = vsel %vm720, %v1245, -inf
      %1300 = vmax.xlane.f32.xlu0 %v1299
      %v1301 = vpop.xlane.xlu0 %1300
      %v1302 = vsel %vm720, %v1248, -inf
      %1303 = vmax.xlane.f32.xlu0 %v1302
      %v1304 = vpop.xlane.xlu0 %1303
      %v1305 = vsel %vm720, %v1253, -inf
      %1306 = vmax.xlane.f32.xlu0 %v1305
      %v1307 = vpop.xlane.xlu0 %1306
      %v1308 = vsel %vm720, %v1256, -inf
      %1309 = vmax.xlane.f32.xlu0 %v1308
      %v1310 = vpop.xlane.xlu0 %1309
      %v1311 = vsel %vm720, %v1261, -inf
      %1312 = vmax.xlane.f32.xlu0 %v1311
      %v1313 = vpop.xlane.xlu0 %1312
      %v1314 = vsel %vm720, %v1264, -inf
      %1315 = vmax.xlane.f32.xlu0 %v1314
      %v1316 = vpop.xlane.xlu0 %1315
      %v1317 = vsel %vm720, %v1269, -inf
      %1318 = vmax.xlane.f32.xlu0 %v1317
      %v1319 = vpop.xlane.xlu0 %1318
      %v1320 = vsel %vm720, %v1272, -inf
      %1321 = vmax.xlane.f32.xlu0 %v1320
      %v1322 = vpop.xlane.xlu0 %1321
      %v1323 = vsub.f32 %v1213, %v1277
      %v1324 = vsub.f32 %v1216, %v1280
      %v1325 = vsub.f32 %v1221, %v1283
      %v1326 = vsub.f32 %v1224, %v1286
      %v1327 = vsub.f32 %v1229, %v1289
      %v1328 = vsub.f32 %v1232, %v1292
      %v1329 = vsub.f32 %v1237, %v1295
      %v1330 = vsub.f32 %v1240, %v1298
      %v1331 = vsub.f32 %v1245, %v1301
      %v1332 = vsub.f32 %v1248, %v1304
      %v1333 = vsub.f32 %v1253, %v1307
      %v1334 = vsub.f32 %v1256, %v1310
      %v1335 = vsub.f32 %v1261, %v1313
      %v1336 = vsub.f32 %v1264, %v1316
      %v1337 = vsub.f32 %v1269, %v1319
      %v1338 = vsub.f32 %v1272, %v1322
      %v1339 = vmul.f32 %v1323, 1.442695
      %v1340 = vpow.pop %v1339
      %v1341 = vmul.f32 %v1324, 1.442695
      %v1342 = vpow.pop %v1341
      %v1343 = vmul.f32 %v1325, 1.442695
      %v1344 = vpow.pop %v1343
      %v1345 = vmul.f32 %v1326, 1.442695
      %v1346 = vpow.pop %v1345
      %v1347 = vmul.f32 %v1327, 1.442695
      %v1348 = vpow.pop %v1347
      %v1349 = vmul.f32 %v1328, 1.442695
      %v1350 = vpow.pop %v1349
      %v1351 = vmul.f32 %v1329, 1.442695
      %v1352 = vpow.pop %v1351
      %v1353 = vmul.f32 %v1330, 1.442695
      %v1354 = vpow.pop %v1353
      %v1355 = vmul.f32 %v1331, 1.442695
      %v1356 = vpow.pop %v1355
      %v1357 = vmul.f32 %v1332, 1.442695
      %v1358 = vpow.pop %v1357
      %v1359 = vmul.f32 %v1333, 1.442695
      %v1360 = vpow.pop %v1359
      %v1361 = vmul.f32 %v1334, 1.442695
      %v1362 = vpow.pop %v1361
      %v1363 = vmul.f32 %v1335, 1.442695
      %v1364 = vpow.pop %v1363
      %v1365 = vmul.f32 %v1336, 1.442695
      %v1366 = vpow.pop %v1365
      %v1367 = vmul.f32 %v1337, 1.442695
      %v1368 = vpow.pop %v1367
      %v1369 = vmul.f32 %v1338, 1.442695
      %v1370 = vpow.pop %v1369
      %v1371 = vsel %vm720, %v1340, 0.0
      %1372 = vadd.xlane.f32.xlu0 %v1371
      %v1373 = vpop.xlane.xlu0 %1372
      %v1374 = vsel %vm720, %v1342, 0.0
      %1375 = vadd.xlane.f32.xlu0 %v1374
      %v1376 = vpop.xlane.xlu0 %1375
      %v1377 = vsel %vm720, %v1344, 0.0
      %1378 = vadd.xlane.f32.xlu0 %v1377
      %v1379 = vpop.xlane.xlu0 %1378
      %v1380 = vsel %vm720, %v1346, 0.0
      %1381 = vadd.xlane.f32.xlu0 %v1380
      %v1382 = vpop.xlane.xlu0 %1381
      %v1383 = vsel %vm720, %v1348, 0.0
      %1384 = vadd.xlane.f32.xlu0 %v1383
      %v1385 = vpop.xlane.xlu0 %1384
      %v1386 = vsel %vm720, %v1350, 0.0
      %1387 = vadd.xlane.f32.xlu0 %v1386
      %v1388 = vpop.xlane.xlu0 %1387
      %v1389 = vsel %vm720, %v1352, 0.0
      %1390 = vadd.xlane.f32.xlu0 %v1389
      %v1391 = vpop.xlane.xlu0 %1390
      %v1392 = vsel %vm720, %v1354, 0.0
      %1393 = vadd.xlane.f32.xlu0 %v1392
      %v1394 = vpop.xlane.xlu0 %1393
      %v1395 = vsel %vm720, %v1356, 0.0
      %1396 = vadd.xlane.f32.xlu0 %v1395
      %v1397 = vpop.xlane.xlu0 %1396
      %v1398 = vsel %vm720, %v1358, 0.0
      %1399 = vadd.xlane.f32.xlu0 %v1398
      %v1400 = vpop.xlane.xlu0 %1399
      %v1401 = vsel %vm720, %v1360, 0.0
      %1402 = vadd.xlane.f32.xlu0 %v1401
      %v1403 = vpop.xlane.xlu0 %1402
      %v1404 = vsel %vm720, %v1362, 0.0
      %1405 = vadd.xlane.f32.xlu0 %v1404
      %v1406 = vpop.xlane.xlu0 %1405
      %v1407 = vsel %vm720, %v1364, 0.0
      %1408 = vadd.xlane.f32.xlu0 %v1407
      %v1409 = vpop.xlane.xlu0 %1408
      %v1410 = vsel %vm720, %v1366, 0.0
      %1411 = vadd.xlane.f32.xlu0 %v1410
      %v1412 = vpop.xlane.xlu0 %1411
      %v1413 = vsel %vm720, %v1368, 0.0
      %1414 = vadd.xlane.f32.xlu0 %v1413
      %v1415 = vpop.xlane.xlu0 %1414
      %v1416 = vsel %vm720, %v1370, 0.0
      %1417 = vadd.xlane.f32.xlu0 %v1416
      %v1418 = vpop.xlane.xlu0 %1417
      %v1419 = vpack.c.bf16 %v1342, %v1340
      %v1420 = vpack.c.bf16 %v1346, %v1344
      %v1421 = vpack.c.bf16 %v1350, %v1348
      %v1422 = vpack.c.bf16 %v1354, %v1352
      %v1423 = vpack.c.bf16 %v1358, %v1356
      %v1424 = vpack.c.bf16 %v1362, %v1360
      %v1425 = vpack.c.bf16 %v1366, %v1364
      %v1426 = vpack.c.bf16 %v1370, %v1368
      %v1435 = vunpack.c.l.b16 %v1082
      %v1436 = vunpack.c.l.b16 %v1083
      %v1437 = vunpack.c.l.b16 %v1084
      %v1438 = vunpack.c.l.b16 %v1085
      %v1439 = vunpack.c.l.b16 %v1086
      %v1440 = vunpack.c.l.b16 %v1087
      %v1441 = vunpack.c.l.b16 %v1088
      %v1442 = vunpack.c.l.b16 %v1089
      %v1443 = vpack.c.b16 %v1436, %v1435
      %v1444 = vpack.c.b16 %v1438, %v1437
      %v1445 = vpack.c.b16 %v1440, %v1439
      %v1446 = vpack.c.b16 %v1442, %v1441
      %1447 = vrot.lane.b32.xlu0 %v1443, 120
      %v1448 = vpop.permute.xlu0 %1447
      %1449 = vrot.lane.b32.xlu0 %v1444, 120
      %v1450 = vpop.permute.xlu0 %1449
      %1451 = vrot.lane.b32.xlu0 %v1445, 120
      %v1452 = vpop.permute.xlu0 %1451
      %1453 = vrot.lane.b32.xlu0 %v1446, 120
      %v1454 = vpop.permute.xlu0 %1453
      %v1460 = vsel %vm720, %v1419, 0
      %v1463 = vsel %vm720, %v1420, 0
      %v1466 = vsel %vm720, %v1421, 0
      %v1469 = vsel %vm720, %v1422, 0
      %v1472 = vsel %vm720, %v1423, 0
      %v1475 = vsel %vm720, %v1424, 0
      %v1478 = vsel %vm720, %v1425, 0
      %v1481 = vsel %vm720, %v1426, 0
      %1483 = vmatprep.subr.bf16.mxu0 0
      %1484 = vmatpush1.bf16.msra.mxu0 %v1448
      %1485 = vmatprep.subr.bf16.mxu0 0
      %1486 = vmatpush1.bf16.msra.mxu0 %v1450
      %1487 = vmatprep.subr.bf16.mxu0 0
      %1488 = vmatpush1.bf16.msra.mxu0 %v1452
      %1489 = vmatprep.subr.bf16.mxu0 0
      %1490 = vmatpush1.bf16.msra.mxu0 %v1454
      %1491 = vmatprep.subr.bf16.mxu0 0
      %1492 = vmatpush1.bf16.msra.mxu0 0
      %1493 = vmatprep.subr.bf16.mxu0 0
      %1494 = vmatpush1.bf16.msra.mxu0 0
      %1495 = vmatprep.subr.bf16.mxu0 0
      %1496 = vmatpush1.bf16.msra.mxu0 0
      %1497 = vmatprep.subr.bf16.mxu0 0
      %1498 = vmatpush1.bf16.msra.mxu0 0
      %1499 = vmatprep.subr.bf16.mxu0 0
      %1500 = vmatpush1.bf16.msra.mxu0 0
      %1501 = vmatprep.subr.bf16.mxu0 0
      %1502 = vmatpush1.bf16.msra.mxu0 0
      %1503 = vmatprep.subr.bf16.mxu0 0
      %1504 = vmatpush1.bf16.msra.mxu0 0
      %1505 = vmatprep.subr.bf16.mxu0 0
      %1506 = vmatpush1.bf16.msra.mxu0 0
      %1507 = vmatprep.subr.bf16.mxu0 0
      %1508 = vmatpush1.bf16.msra.mxu0 0
      %1509 = vmatprep.subr.bf16.mxu0 0
      %1510 = vmatpush1.bf16.msra.mxu0 0
      %1511 = vmatprep.subr.bf16.mxu0 0
      %1512 = vmatpush1.bf16.msra.mxu0 0
      %1513 = vmatprep.subr.bf16.mxu0 0
      %1514 = vmatpush1.bf16.msra.mxu0 0
      %1515 = vmatprep.mubr.bf16.mxu0 0
      %1516 = vmatmul.mubr.bf16.gmra.mrb[0].mxu0 %v1460
      %v1517 = vpop.f32.mrb[0].mxu0
      %v1518 = vadd.f32 0.0, %v1517
      %v1519 = vpop.f32.mrb[0].mxu0
      %v1520 = vpop.f32.mrb[0].mxu0
      %v1521 = vadd.f32 0.0, %v1520
      %v1522 = vpop.f32.mrb[0].mxu0
      %1523 = vmatprep.mubr.bf16.mxu0 0
      %1524 = vmatmul.mubr.bf16.gmra.mrb[0].mxu0 %v1463
      %v1525 = vpop.f32.mrb[0].mxu0
      %v1526 = vadd.f32 0.0, %v1525
      %v1527 = vpop.f32.mrb[0].mxu0
      %v1528 = vpop.f32.mrb[0].mxu0
      %v1529 = vadd.f32 0.0, %v1528
      %v1530 = vpop.f32.mrb[0].mxu0
      %1531 = vmatprep.mubr.bf16.mxu0 0
      %1532 = vmatmul.mubr.bf16.gmra.mrb[0].mxu0 %v1466
      %v1533 = vpop.f32.mrb[0].mxu0
      %v1534 = vadd.f32 0.0, %v1533
      %v1535 = vpop.f32.mrb[0].mxu0
      %v1536 = vpop.f32.mrb[0].mxu0
      %v1537 = vadd.f32 0.0, %v1536
      %v1538 = vpop.f32.mrb[0].mxu0
      %1539 = vmatprep.mubr.bf16.mxu0 0
      %1540 = vmatmul.mubr.bf16.gmra.mrb[0].mxu0 %v1469
      %v1541 = vpop.f32.mrb[0].mxu0
      %v1542 = vadd.f32 0.0, %v1541
      %v1543 = vpop.f32.mrb[0].mxu0
      %v1544 = vpop.f32.mrb[0].mxu0
      %v1545 = vadd.f32 0.0, %v1544
      %v1546 = vpop.f32.mrb[0].mxu0
      %1547 = vmatprep.mubr.bf16.mxu0 0
      %1548 = vmatmul.mubr.bf16.gmra.mrb[0].mxu0 %v1472
      %v1549 = vpop.f32.mrb[0].mxu0
      %v1550 = vadd.f32 0.0, %v1549
      %v1551 = vpop.f32.mrb[0].mxu0
      %v1552 = vpop.f32.mrb[0].mxu0
      %v1553 = vadd.f32 0.0, %v1552
      %v1554 = vpop.f32.mrb[0].mxu0
      %1555 = vmatprep.mubr.bf16.mxu0 0
      %1556 = vmatmul.mubr.bf16.gmra.mrb[0].mxu0 %v1475
      %v1557 = vpop.f32.mrb[0].mxu0
      %v1558 = vadd.f32 0.0, %v1557
      %v1559 = vpop.f32.mrb[0].mxu0
      %v1560 = vpop.f32.mrb[0].mxu0
      %v1561 = vadd.f32 0.0, %v1560
      %v1562 = vpop.f32.mrb[0].mxu0
      %1563 = vmatprep.mubr.bf16.mxu0 0
      %1564 = vmatmul.mubr.bf16.gmra.mrb[0].mxu0 %v1478
      %v1565 = vpop.f32.mrb[0].mxu0
      %v1566 = vadd.f32 0.0, %v1565
      %v1567 = vpop.f32.mrb[0].mxu0
      %v1568 = vpop.f32.mrb[0].mxu0
      %v1569 = vadd.f32 0.0, %v1568
      %v1570 = vpop.f32.mrb[0].mxu0
      %1571 = vmatprep.mubr.bf16.mxu0 0
      %1572 = vmatmul.mubr.bf16.gmra.mrb[0].mxu0 %v1481
      %v1573 = vpop.f32.mrb[0].mxu0
      %v1574 = vadd.f32 0.0, %v1573
      %v1575 = vpop.f32.mrb[0].mxu0
      %v1576 = vpop.f32.mrb[0].mxu0
      %v1577 = vadd.f32 0.0, %v1576
      %v1578 = vpop.f32.mrb[0].mxu0
      %1579 = vdwg.mxu0
      %v1580 = vrcp.pop %v1373
      %v1581 = vrcp.pop %v1376
      %v1582 = vrcp.pop %v1379
      %v1583 = vrcp.pop %v1382
      %v1584 = vrcp.pop %v1385
      %v1585 = vrcp.pop %v1388
      %v1586 = vrcp.pop %v1391
      %v1587 = vrcp.pop %v1394
      %v1588 = vrcp.pop %v1397
      %v1589 = vrcp.pop %v1400
      %v1590 = vrcp.pop %v1403
      %v1591 = vrcp.pop %v1406
      %v1592 = vrcp.pop %v1409
      %v1593 = vrcp.pop %v1412
      %v1594 = vrcp.pop %v1415
      %v1595 = vrcp.pop %v1418
      %v1596 = vmul.f32 %v1518, %v1580
      %v1597 = vmul.f32 %v1521, %v1581
      %v1598 = vmul.f32 %v1526, %v1582
      %v1599 = vmul.f32 %v1529, %v1583
      %v1600 = vmul.f32 %v1534, %v1584
      %v1601 = vmul.f32 %v1537, %v1585
      %v1602 = vmul.f32 %v1542, %v1586
      %v1603 = vmul.f32 %v1545, %v1587
      %v1604 = vmul.f32 %v1550, %v1588
      %v1605 = vmul.f32 %v1553, %v1589
      %v1606 = vmul.f32 %v1558, %v1590
      %v1607 = vmul.f32 %v1561, %v1591
      %v1608 = vmul.f32 %v1566, %v1592
      %v1609 = vmul.f32 %v1569, %v1593
      %v1610 = vmul.f32 %v1574, %v1594
      %v1611 = vmul.f32 %v1577, %v1595
      %v1612 = vpack.c.bf16 %v1597, %v1596
      %v1613 = vpack.c.bf16 %v1599, %v1598
      %v1614 = vpack.c.bf16 %v1601, %v1600
      %v1615 = vpack.c.bf16 %v1603, %v1602
      %v1616 = vpack.c.bf16 %v1605, %v1604
      %v1617 = vpack.c.bf16 %v1607, %v1606
      %v1618 = vpack.c.bf16 %v1609, %v1608
      %v1619 = vpack.c.bf16 %v1611, %v1610
      %1628 = vrot.lane.b32.xlu0 %v1612, 8
      %v1629 = vpop.permute.xlu0 %1628
      %1630 = vrot.lane.b32.xlu0 %v1613, 8
      %v1631 = vpop.permute.xlu0 %1630
      %1632 = vrot.lane.b32.xlu0 %v1614, 8
      %v1633 = vpop.permute.xlu0 %1632
      %1634 = vrot.lane.b32.xlu0 %v1615, 8
      %v1635 = vpop.permute.xlu0 %1634
      %1636 = vrot.lane.b32.xlu0 %v1616, 8
      %v1637 = vpop.permute.xlu0 %1636
      %1638 = vrot.lane.b32.xlu0 %v1617, 8
      %v1639 = vpop.permute.xlu0 %1638
      %1640 = vrot.lane.b32.xlu0 %v1618, 8
      %v1641 = vpop.permute.xlu0 %1640
      %1642 = vrot.lane.b32.xlu0 %v1619, 8
      %v1643 = vpop.permute.xlu0 %1642
      %vm1652 = vcmask 130112
      %1653 = vst.msk [vmem:[#allocation3] sm:$0xff] %vm1652, %v1629
      %1654 = vst.msk [vmem:[#allocation3 + $0x8] sm:$0xff] %vm1652, %v1631
      %1655 = vst.msk [vmem:[#allocation3 + $0x10] sm:$0xff] %vm1652, %v1633
      %1656 = vst.msk [vmem:[#allocation3 + $0x18] sm:$0xff] %vm1652, %v1635
      %1657 = vst.msk [vmem:[#allocation3 + $0x20] sm:$0xff] %vm1652, %v1637
      %1658 = vst.msk [vmem:[#allocation3 + $0x28] sm:$0xff] %vm1652, %v1639
      %1659 = vst.msk [vmem:[#allocation3 + $0x30] sm:$0xff] %vm1652, %v1641
      %1660 = vst.msk [vmem:[#allocation3 + $0x38] sm:$0xff] %vm1652, %v1643
      %v1661 = vld [vmem:[#allocation2] sm:$0xff]
      %v1662 = vld [vmem:[#allocation2 + $0x8] sm:$0xff]
      %v1663 = vld [vmem:[#allocation2 + $0x10] sm:$0xff]
      %v1664 = vld [vmem:[#allocation2 + $0x18] sm:$0xff]
      %v1665 = vld [vmem:[#allocation2 + $0x20] sm:$0xff]
      %v1666 = vld [vmem:[#allocation2 + $0x28] sm:$0xff]
      %v1667 = vld [vmem:[#allocation2 + $0x30] sm:$0xff]
      %v1668 = vld [vmem:[#allocation2 + $0x38] sm:$0xff]
      %v1669 = vld [vmem:[%s315] sm:$0xf]
      %v1670 = vld [vmem:[%s315 + $0x4] sm:$0xf]
      %v1671 = vld [vmem:[%s315 + $0x8] sm:$0xf]
      %v1672 = vld [vmem:[%s315 + $0xc] sm:$0xf]
      %v1673 = vld [vmem:[%s315 + $0x10] sm:$0xf]
      %v1674 = vld [vmem:[%s315 + $0x14] sm:$0xf]
      %v1675 = vld [vmem:[%s315 + $0x18] sm:$0xf]
      %v1676 = vld [vmem:[%s315 + $0x1c] sm:$0xf]
      %v1677 = vld [vmem:[%s320] sm:$0xf]
      %v1678 = vld [vmem:[%s320 + $0x4] sm:$0xf]
      %v1679 = vld [vmem:[%s320 + $0x8] sm:$0xf]
      %v1680 = vld [vmem:[%s320 + $0xc] sm:$0xf]
      %v1681 = vld [vmem:[%s320 + $0x10] sm:$0xf]
      %v1682 = vld [vmem:[%s320 + $0x14] sm:$0xf]
      %v1683 = vld [vmem:[%s320 + $0x18] sm:$0xf]
      %v1684 = vld [vmem:[%s320 + $0x1c] sm:$0xf]
      %1693 = vrot.lane.b32.xlu0 %v1661, 112
      %v1694 = vpop.permute.xlu0 %1693
      %1695 = vrot.lane.b32.xlu0 %v1662, 112
      %v1696 = vpop.permute.xlu0 %1695
      %1697 = vrot.lane.b32.xlu0 %v1663, 112
      %v1698 = vpop.permute.xlu0 %1697
      %1699 = vrot.lane.b32.xlu0 %v1664, 112
      %v1700 = vpop.permute.xlu0 %1699
      %1701 = vrot.lane.b32.xlu0 %v1665, 112
      %v1702 = vpop.permute.xlu0 %1701
      %1703 = vrot.lane.b32.xlu0 %v1666, 112
      %v1704 = vpop.permute.xlu0 %1703
      %1705 = vrot.lane.b32.xlu0 %v1667, 112
      %v1706 = vpop.permute.xlu0 %1705
      %1707 = vrot.lane.b32.xlu0 %v1668, 112
      %v1708 = vpop.permute.xlu0 %1707
      %v1717 = vunpack.c.l.b16 %v1669
      %v1718 = vunpack.c.l.b16 %v1670
      %v1719 = vunpack.c.l.b16 %v1671
      %v1720 = vunpack.c.l.b16 %v1672
      %v1721 = vunpack.c.l.b16 %v1673
      %v1722 = vunpack.c.l.b16 %v1674
      %v1723 = vunpack.c.l.b16 %v1675
      %v1724 = vunpack.c.l.b16 %v1676
      %v1725 = vpack.c.b16 %v1718, %v1717
      %v1726 = vpack.c.b16 %v1720, %v1719
      %v1727 = vpack.c.b16 %v1722, %v1721
      %v1728 = vpack.c.b16 %v1724, %v1723
      %1729 = vrot.lane.b32.xlu0 %v1725, 112
      %v1730 = vpop.permute.xlu0 %1729
      %1731 = vrot.lane.b32.xlu0 %v1726, 112
      %v1732 = vpop.permute.xlu0 %1731
      %1733 = vrot.lane.b32.xlu0 %v1727, 112
      %v1734 = vpop.permute.xlu0 %1733
      %1735 = vrot.lane.b32.xlu0 %v1728, 112
      %v1736 = vpop.permute.xlu0 %1735
      %v1738 = vsel %vm586, %v1694, 0
      %v1741 = vsel %vm586, %v1696, 0
      %v1744 = vsel %vm586, %v1698, 0
      %v1747 = vsel %vm586, %v1700, 0
      %v1750 = vsel %vm586, %v1702, 0
      %v1753 = vsel %vm586, %v1704, 0
      %v1756 = vsel %vm586, %v1706, 0
      %v1759 = vsel %vm586, %v1708, 0
      %v1762 = vsel %vm586, %v1730, 0
      %v1765 = vsel %vm586, %v1732, 0
      %v1768 = vsel %vm586, %v1734, 0
      %v1771 = vsel %vm586, %v1736, 0
      %1773 = vmatprep.subr.bf16.mxu0 0
      %1774 = vmatpush1.bf16.xpose.msra.mxu0 %v1762
      %1775 = vmatprep.subr.bf16.mxu0 0
      %1776 = vmatpush1.bf16.xpose.msra.mxu0 %v1765
      %1777 = vmatprep.subr.bf16.mxu0 0
      %1778 = vmatpush1.bf16.xpose.msra.mxu0 %v1768
      %1779 = vmatprep.subr.bf16.mxu0 0
      %1780 = vmatpush1.bf16.xpose.msra.mxu0 %v1771
      %1781 = vmatprep.subr.bf16.mxu0 0
      %1782 = vmatpush1.bf16.xpose.msra.mxu0 0
      %1783 = vmatprep.subr.bf16.mxu0 0
      %1784 = vmatpush1.bf16.xpose.msra.mxu0 0
      %1785 = vmatprep.subr.bf16.mxu0 0
      %1786 = vmatpush1.bf16.xpose.msra.mxu0 0
      %1787 = vmatprep.subr.bf16.mxu0 0
      %1788 = vmatpush1.bf16.xpose.msra.mxu0 0
      %1789 = vmatprep.subr.bf16.mxu0 0
      %1790 = vmatpush1.bf16.xpose.msra.mxu0 0
      %1791 = vmatprep.subr.bf16.mxu0 0
      %1792 = vmatpush1.bf16.xpose.msra.mxu0 0
      %1793 = vmatprep.subr.bf16.mxu0 0
      %1794 = vmatpush1.bf16.xpose.msra.mxu0 0
      %1795 = vmatprep.subr.bf16.mxu0 0
      %1796 = vmatpush1.bf16.xpose.msra.mxu0 0
      %1797 = vmatprep.subr.bf16.mxu0 0
      %1798 = vmatpush1.bf16.xpose.msra.mxu0 0
      %1799 = vmatprep.subr.bf16.mxu0 0
      %1800 = vmatpush1.bf16.xpose.msra.mxu0 0
      %1801 = vmatprep.subr.bf16.mxu0 0
      %1802 = vmatpush1.bf16.xpose.msra.mxu0 0
      %1803 = vmatprep.subr.bf16.mxu0 0
      %1804 = vmatpush1.bf16.xpose.msra.mxu0 0
      %1805 = vmatprep.mubr.bf16.mxu0 0
      %1806 = vmatmul.mubr.bf16.gmra.mrb[0].mxu0 %v1738
      %v1807 = vpop.f32.mrb[0].mxu0
      %v1808 = vadd.f32 0.0, %v1807
      %v1809 = vpop.f32.mrb[0].mxu0
      %v1810 = vpop.f32.mrb[0].mxu0
      %v1811 = vadd.f32 0.0, %v1810
      %v1812 = vpop.f32.mrb[0].mxu0
      %1813 = vmatprep.mubr.bf16.mxu0 0
      %1814 = vmatmul.mubr.bf16.gmra.mrb[0].mxu0 %v1741
      %v1815 = vpop.f32.mrb[0].mxu0
      %v1816 = vadd.f32 0.0, %v1815
      %v1817 = vpop.f32.mrb[0].mxu0
      %v1818 = vpop.f32.mrb[0].mxu0
      %v1819 = vadd.f32 0.0, %v1818
      %v1820 = vpop.f32.mrb[0].mxu0
      %1821 = vmatprep.mubr.bf16.mxu0 0
      %1822 = vmatmul.mubr.bf16.gmra.mrb[0].mxu0 %v1744
      %v1823 = vpop.f32.mrb[0].mxu0
      %v1824 = vadd.f32 0.0, %v1823
      %v1825 = vpop.f32.mrb[0].mxu0
      %v1826 = vpop.f32.mrb[0].mxu0
      %v1827 = vadd.f32 0.0, %v1826
      %v1828 = vpop.f32.mrb[0].mxu0
      %1829 = vmatprep.mubr.bf16.mxu0 0
      %1830 = vmatmul.mubr.bf16.gmra.mrb[0].mxu0 %v1747
      %v1831 = vpop.f32.mrb[0].mxu0
      %v1832 = vadd.f32 0.0, %v1831
      %v1833 = vpop.f32.mrb[0].mxu0
      %v1834 = vpop.f32.mrb[0].mxu0
      %v1835 = vadd.f32 0.0, %v1834
      %v1836 = vpop.f32.mrb[0].mxu0
      %1837 = vmatprep.mubr.bf16.mxu0 0
      %1838 = vmatmul.mubr.bf16.gmra.mrb[0].mxu0 %v1750
      %v1839 = vpop.f32.mrb[0].mxu0
      %v1840 = vadd.f32 0.0, %v1839
      %v1841 = vpop.f32.mrb[0].mxu0
      %v1842 = vpop.f32.mrb[0].mxu0
      %v1843 = vadd.f32 0.0, %v1842
      %v1844 = vpop.f32.mrb[0].mxu0
      %1845 = vmatprep.mubr.bf16.mxu0 0
      %1846 = vmatmul.mubr.bf16.gmra.mrb[0].mxu0 %v1753
      %v1847 = vpop.f32.mrb[0].mxu0
      %v1848 = vadd.f32 0.0, %v1847
      %v1849 = vpop.f32.mrb[0].mxu0
      %v1850 = vpop.f32.mrb[0].mxu0
      %v1851 = vadd.f32 0.0, %v1850
      %v1852 = vpop.f32.mrb[0].mxu0
      %1853 = vmatprep.mubr.bf16.mxu0 0
      %1854 = vmatmul.mubr.bf16.gmra.mrb[0].mxu0 %v1756
      %v1855 = vpop.f32.mrb[0].mxu0
      %v1856 = vadd.f32 0.0, %v1855
      %v1857 = vpop.f32.mrb[0].mxu0
      %v1858 = vpop.f32.mrb[0].mxu0
      %v1859 = vadd.f32 0.0, %v1858
      %v1860 = vpop.f32.mrb[0].mxu0
      %1861 = vmatprep.mubr.bf16.mxu0 0
      %1862 = vmatmul.mubr.bf16.gmra.mrb[0].mxu0 %v1759
      %v1863 = vpop.f32.mrb[0].mxu0
      %v1864 = vadd.f32 0.0, %v1863
      %v1865 = vpop.f32.mrb[0].mxu0
      %v1866 = vpop.f32.mrb[0].mxu0
      %v1867 = vadd.f32 0.0, %v1866
      %v1868 = vpop.f32.mrb[0].mxu0
      %1869 = vdwg.mxu0
      %v1870 = vsel %vm720, %v1808, -inf
      %1871 = vmax.xlane.f32.xlu0 %v1870
      %v1872 = vpop.xlane.xlu0 %1871
      %v1873 = vsel %vm720, %v1811, -inf
      %1874 = vmax.xlane.f32.xlu0 %v1873
      %v1875 = vpop.xlane.xlu0 %1874
      %v1876 = vsel %vm720, %v1816, -inf
      %1877 = vmax.xlane.f32.xlu0 %v1876
      %v1878 = vpop.xlane.xlu0 %1877
      %v1879 = vsel %vm720, %v1819, -inf
      %1880 = vmax.xlane.f32.xlu0 %v1879
      %v1881 = vpop.xlane.xlu0 %1880
      %v1882 = vsel %vm720, %v1824, -inf
      %1883 = vmax.xlane.f32.xlu0 %v1882
      %v1884 = vpop.xlane.xlu0 %1883
      %v1885 = vsel %vm720, %v1827, -inf
      %1886 = vmax.xlane.f32.xlu0 %v1885
      %v1887 = vpop.xlane.xlu0 %1886
      %v1888 = vsel %vm720, %v1832, -inf
      %1889 = vmax.xlane.f32.xlu0 %v1888
      %v1890 = vpop.xlane.xlu0 %1889
      %v1891 = vsel %vm720, %v1835, -inf
      %1892 = vmax.xlane.f32.xlu0 %v1891
      %v1893 = vpop.xlane.xlu0 %1892
      %v1894 = vsel %vm720, %v1840, -inf
      %1895 = vmax.xlane.f32.xlu0 %v1894
      %v1896 = vpop.xlane.xlu0 %1895
      %v1897 = vsel %vm720, %v1843, -inf
      %1898 = vmax.xlane.f32.xlu0 %v1897
      %v1899 = vpop.xlane.xlu0 %1898
      %v1900 = vsel %vm720, %v1848, -inf
      %1901 = vmax.xlane.f32.xlu0 %v1900
      %v1902 = vpop.xlane.xlu0 %1901
      %v1903 = vsel %vm720, %v1851, -inf
      %1904 = vmax.xlane.f32.xlu0 %v1903
      %v1905 = vpop.xlane.xlu0 %1904
      %v1906 = vsel %vm720, %v1856, -inf
      %1907 = vmax.xlane.f32.xlu0 %v1906
      %v1908 = vpop.xlane.xlu0 %1907
      %v1909 = vsel %vm720, %v1859, -inf
      %1910 = vmax.xlane.f32.xlu0 %v1909
      %v1911 = vpop.xlane.xlu0 %1910
      %v1912 = vsel %vm720, %v1864, -inf
      %1913 = vmax.xlane.f32.xlu0 %v1912
      %v1914 = vpop.xlane.xlu0 %1913
      %v1915 = vsel %vm720, %v1867, -inf
      %1916 = vmax.xlane.f32.xlu0 %v1915
      %v1917 = vpop.xlane.xlu0 %1916
      %v1918 = vsub.f32 %v1808, %v1872
      %v1919 = vsub.f32 %v1811, %v1875
      %v1920 = vsub.f32 %v1816, %v1878
      %v1921 = vsub.f32 %v1819, %v1881
      %v1922 = vsub.f32 %v1824, %v1884
      %v1923 = vsub.f32 %v1827, %v1887
      %v1924 = vsub.f32 %v1832, %v1890
      %v1925 = vsub.f32 %v1835, %v1893
      %v1926 = vsub.f32 %v1840, %v1896
      %v1927 = vsub.f32 %v1843, %v1899
      %v1928 = vsub.f32 %v1848, %v1902
      %v1929 = vsub.f32 %v1851, %v1905
      %v1930 = vsub.f32 %v1856, %v1908
      %v1931 = vsub.f32 %v1859, %v1911
      %v1932 = vsub.f32 %v1864, %v1914
      %v1933 = vsub.f32 %v1867, %v1917
      %v1934 = vmul.f32 %v1918, 1.442695
      %v1935 = vpow.pop %v1934
      %v1936 = vmul.f32 %v1919, 1.442695
      %v1937 = vpow.pop %v1936
      %v1938 = vmul.f32 %v1920, 1.442695
      %v1939 = vpow.pop %v1938
      %v1940 = vmul.f32 %v1921, 1.442695
      %v1941 = vpow.pop %v1940
      %v1942 = vmul.f32 %v1922, 1.442695
      %v1943 = vpow.pop %v1942
      %v1944 = vmul.f32 %v1923, 1.442695
      %v1945 = vpow.pop %v1944
      %v1946 = vmul.f32 %v1924, 1.442695
      %v1947 = vpow.pop %v1946
      %v1948 = vmul.f32 %v1925, 1.442695
      %v1949 = vpow.pop %v1948
      %v1950 = vmul.f32 %v1926, 1.442695
      %v1951 = vpow.pop %v1950
      %v1952 = vmul.f32 %v1927, 1.442695
      %v1953 = vpow.pop %v1952
      %v1954 = vmul.f32 %v1928, 1.442695
      %v1955 = vpow.pop %v1954
      %v1956 = vmul.f32 %v1929, 1.442695
      %v1957 = vpow.pop %v1956
      %v1958 = vmul.f32 %v1930, 1.442695
      %v1959 = vpow.pop %v1958
      %v1960 = vmul.f32 %v1931, 1.442695
      %v1961 = vpow.pop %v1960
      %v1962 = vmul.f32 %v1932, 1.442695
      %v1963 = vpow.pop %v1962
      %v1964 = vmul.f32 %v1933, 1.442695
      %v1965 = vpow.pop %v1964
      %v1966 = vsel %vm720, %v1935, 0.0
      %1967 = vadd.xlane.f32.xlu0 %v1966
      %v1968 = vpop.xlane.xlu0 %1967
      %v1969 = vsel %vm720, %v1937, 0.0
      %1970 = vadd.xlane.f32.xlu0 %v1969
      %v1971 = vpop.xlane.xlu0 %1970
      %v1972 = vsel %vm720, %v1939, 0.0
      %1973 = vadd.xlane.f32.xlu0 %v1972
      %v1974 = vpop.xlane.xlu0 %1973
      %v1975 = vsel %vm720, %v1941, 0.0
      %1976 = vadd.xlane.f32.xlu0 %v1975
      %v1977 = vpop.xlane.xlu0 %1976
      %v1978 = vsel %vm720, %v1943, 0.0
      %1979 = vadd.xlane.f32.xlu0 %v1978
      %v1980 = vpop.xlane.xlu0 %1979
      %v1981 = vsel %vm720, %v1945, 0.0
      %1982 = vadd.xlane.f32.xlu0 %v1981
      %v1983 = vpop.xlane.xlu0 %1982
      %v1984 = vsel %vm720, %v1947, 0.0
      %1985 = vadd.xlane.f32.xlu0 %v1984
      %v1986 = vpop.xlane.xlu0 %1985
      %v1987 = vsel %vm720, %v1949, 0.0
      %1988 = vadd.xlane.f32.xlu0 %v1987
      %v1989 = vpop.xlane.xlu0 %1988
      %v1990 = vsel %vm720, %v1951, 0.0
      %1991 = vadd.xlane.f32.xlu0 %v1990
      %v1992 = vpop.xlane.xlu0 %1991
      %v1993 = vsel %vm720, %v1953, 0.0
      %1994 = vadd.xlane.f32.xlu0 %v1993
      %v1995 = vpop.xlane.xlu0 %1994
      %v1996 = vsel %vm720, %v1955, 0.0
      %1997 = vadd.xlane.f32.xlu0 %v1996
      %v1998 = vpop.xlane.xlu0 %1997
      %v1999 = vsel %vm720, %v1957, 0.0
      %2000 = vadd.xlane.f32.xlu0 %v1999
      %v2001 = vpop.xlane.xlu0 %2000
      %v2002 = vsel %vm720, %v1959, 0.0
      %2003 = vadd.xlane.f32.xlu0 %v2002
      %v2004 = vpop.xlane.xlu0 %2003
      %v2005 = vsel %vm720, %v1961, 0.0
      %2006 = vadd.xlane.f32.xlu0 %v2005
      %v2007 = vpop.xlane.xlu0 %2006
      %v2008 = vsel %vm720, %v1963, 0.0
      %2009 = vadd.xlane.f32.xlu0 %v2008
      %v2010 = vpop.xlane.xlu0 %2009
      %v2011 = vsel %vm720, %v1965, 0.0
      %2012 = vadd.xlane.f32.xlu0 %v2011
      %v2013 = vpop.xlane.xlu0 %2012
      %v2014 = vpack.c.bf16 %v1937, %v1935
      %v2015 = vpack.c.bf16 %v1941, %v1939
      %v2016 = vpack.c.bf16 %v1945, %v1943
      %v2017 = vpack.c.bf16 %v1949, %v1947
      %v2018 = vpack.c.bf16 %v1953, %v1951
      %v2019 = vpack.c.bf16 %v1957, %v1955
      %v2020 = vpack.c.bf16 %v1961, %v1959
      %v2021 = vpack.c.bf16 %v1965, %v1963
      %v2030 = vunpack.c.l.b16 %v1677
      %v2031 = vunpack.c.l.b16 %v1678
      %v2032 = vunpack.c.l.b16 %v1679
      %v2033 = vunpack.c.l.b16 %v1680
      %v2034 = vunpack.c.l.b16 %v1681
      %v2035 = vunpack.c.l.b16 %v1682
      %v2036 = vunpack.c.l.b16 %v1683
      %v2037 = vunpack.c.l.b16 %v1684
      %v2038 = vpack.c.b16 %v2031, %v2030
      %v2039 = vpack.c.b16 %v2033, %v2032
      %v2040 = vpack.c.b16 %v2035, %v2034
      %v2041 = vpack.c.b16 %v2037, %v2036
      %2042 = vrot.lane.b32.xlu0 %v2038, 112
      %v2043 = vpop.permute.xlu0 %2042
      %2044 = vrot.lane.b32.xlu0 %v2039, 112
      %v2045 = vpop.permute.xlu0 %2044
      %2046 = vrot.lane.b32.xlu0 %v2040, 112
      %v2047 = vpop.permute.xlu0 %2046
      %2048 = vrot.lane.b32.xlu0 %v2041, 112
      %v2049 = vpop.permute.xlu0 %2048
      %v2055 = vsel %vm720, %v2014, 0
      %v2058 = vsel %vm720, %v2015, 0
      %v2061 = vsel %vm720, %v2016, 0
      %v2064 = vsel %vm720, %v2017, 0
      %v2067 = vsel %vm720, %v2018, 0
      %v2070 = vsel %vm720, %v2019, 0
      %v2073 = vsel %vm720, %v2020, 0
      %v2076 = vsel %vm720, %v2021, 0
      %2078 = vmatprep.subr.bf16.mxu0 0
      %2079 = vmatpush1.bf16.msra.mxu0 %v2043
      %2080 = vmatprep.subr.bf16.mxu0 0
      %2081 = vmatpush1.bf16.msra.mxu0 %v2045
      %2082 = vmatprep.subr.bf16.mxu0 0
      %2083 = vmatpush1.bf16.msra.mxu0 %v2047
      %2084 = vmatprep.subr.bf16.mxu0 0
      %2085 = vmatpush1.bf16.msra.mxu0 %v2049
      %2086 = vmatprep.subr.bf16.mxu0 0
      %2087 = vmatpush1.bf16.msra.mxu0 0
      %2088 = vmatprep.subr.bf16.mxu0 0
      %2089 = vmatpush1.bf16.msra.mxu0 0
      %2090 = vmatprep.subr.bf16.mxu0 0
      %2091 = vmatpush1.bf16.msra.mxu0 0
      %2092 = vmatprep.subr.bf16.mxu0 0
      %2093 = vmatpush1.bf16.msra.mxu0 0
      %2094 = vmatprep.subr.bf16.mxu0 0
      %2095 = vmatpush1.bf16.msra.mxu0 0
      %2096 = vmatprep.subr.bf16.mxu0 0
      %2097 = vmatpush1.bf16.msra.mxu0 0
      %2098 = vmatprep.subr.bf16.mxu0 0
      %2099 = vmatpush1.bf16.msra.mxu0 0
      %2100 = vmatprep.subr.bf16.mxu0 0
      %2101 = vmatpush1.bf16.msra.mxu0 0
      %2102 = vmatprep.subr.bf16.mxu0 0
      %2103 = vmatpush1.bf16.msra.mxu0 0
      %2104 = vmatprep.subr.bf16.mxu0 0
      %2105 = vmatpush1.bf16.msra.mxu0 0
      %2106 = vmatprep.subr.bf16.mxu0 0
      %2107 = vmatpush1.bf16.msra.mxu0 0
      %2108 = vmatprep.subr.bf16.mxu0 0
      %2109 = vmatpush1.bf16.msra.mxu0 0
      %2110 = vmatprep.mubr.bf16.mxu0 0
      %2111 = vmatmul.mubr.bf16.gmra.mrb[0].mxu0 %v2055
      %v2112 = vpop.f32.mrb[0].mxu0
      %v2113 = vadd.f32 0.0, %v2112
      %v2114 = vpop.f32.mrb[0].mxu0
      %v2115 = vpop.f32.mrb[0].mxu0
      %v2116 = vadd.f32 0.0, %v2115
      %v2117 = vpop.f32.mrb[0].mxu0
      %2118 = vmatprep.mubr.bf16.mxu0 0
      %2119 = vmatmul.mubr.bf16.gmra.mrb[0].mxu0 %v2058
      %v2120 = vpop.f32.mrb[0].mxu0
      %v2121 = vadd.f32 0.0, %v2120
      %v2122 = vpop.f32.mrb[0].mxu0
      %v2123 = vpop.f32.mrb[0].mxu0
      %v2124 = vadd.f32 0.0, %v2123
      %v2125 = vpop.f32.mrb[0].mxu0
      %2126 = vmatprep.mubr.bf16.mxu0 0
      %2127 = vmatmul.mubr.bf16.gmra.mrb[0].mxu0 %v2061
      %v2128 = vpop.f32.mrb[0].mxu0
      %v2129 = vadd.f32 0.0, %v2128
      %v2130 = vpop.f32.mrb[0].mxu0
      %v2131 = vpop.f32.mrb[0].mxu0
      %v2132 = vadd.f32 0.0, %v2131
      %v2133 = vpop.f32.mrb[0].mxu0
      %2134 = vmatprep.mubr.bf16.mxu0 0
      %2135 = vmatmul.mubr.bf16.gmra.mrb[0].mxu0 %v2064
      %v2136 = vpop.f32.mrb[0].mxu0
      %v2137 = vadd.f32 0.0, %v2136
      %v2138 = vpop.f32.mrb[0].mxu0
      %v2139 = vpop.f32.mrb[0].mxu0
      %v2140 = vadd.f32 0.0, %v2139
      %v2141 = vpop.f32.mrb[0].mxu0
      %2142 = vmatprep.mubr.bf16.mxu0 0
      %2143 = vmatmul.mubr.bf16.gmra.mrb[0].mxu0 %v2067
      %v2144 = vpop.f32.mrb[0].mxu0
      %v2145 = vadd.f32 0.0, %v2144
      %v2146 = vpop.f32.mrb[0].mxu0
      %v2147 = vpop.f32.mrb[0].mxu0
      %v2148 = vadd.f32 0.0, %v2147
      %v2149 = vpop.f32.mrb[0].mxu0
      %2150 = vmatprep.mubr.bf16.mxu0 0
      %2151 = vmatmul.mubr.bf16.gmra.mrb[0].mxu0 %v2070
      %v2152 = vpop.f32.mrb[0].mxu0
      %v2153 = vadd.f32 0.0, %v2152
      %v2154 = vpop.f32.mrb[0].mxu0
      %v2155 = vpop.f32.mrb[0].mxu0
      %v2156 = vadd.f32 0.0, %v2155
      %v2157 = vpop.f32.mrb[0].mxu0
      %2158 = vmatprep.mubr.bf16.mxu0 0
      %2159 = vmatmul.mubr.bf16.gmra.mrb[0].mxu0 %v2073
      %v2160 = vpop.f32.mrb[0].mxu0
      %v2161 = vadd.f32 0.0, %v2160
      %v2162 = vpop.f32.mrb[0].mxu0
      %v2163 = vpop.f32.mrb[0].mxu0
      %v2164 = vadd.f32 0.0, %v2163
      %v2165 = vpop.f32.mrb[0].mxu0
      %2166 = vmatprep.mubr.bf16.mxu0 0
      %2167 = vmatmul.mubr.bf16.gmra.mrb[0].mxu0 %v2076
      %v2168 = vpop.f32.mrb[0].mxu0
      %v2169 = vadd.f32 0.0, %v2168
      %v2170 = vpop.f32.mrb[0].mxu0
      %v2171 = vpop.f32.mrb[0].mxu0
      %v2172 = vadd.f32 0.0, %v2171
      %v2173 = vpop.f32.mrb[0].mxu0
      %2174 = vdwg.mxu0
      %v2175 = vrcp.pop %v1968
      %v2176 = vrcp.pop %v1971
      %v2177 = vrcp.pop %v1974
      %v2178 = vrcp.pop %v1977
      %v2179 = vrcp.pop %v1980
      %v2180 = vrcp.pop %v1983
      %v2181 = vrcp.pop %v1986
      %v2182 = vrcp.pop %v1989
      %v2183 = vrcp.pop %v1992
      %v2184 = vrcp.pop %v1995
      %v2185 = vrcp.pop %v1998
      %v2186 = vrcp.pop %v2001
      %v2187 = vrcp.pop %v2004
      %v2188 = vrcp.pop %v2007
      %v2189 = vrcp.pop %v2010
      %v2190 = vrcp.pop %v2013
      %v2191 = vmul.f32 %v2113, %v2175
      %v2192 = vmul.f32 %v2116, %v2176
      %v2193 = vmul.f32 %v2121, %v2177
      %v2194 = vmul.f32 %v2124, %v2178
      %v2195 = vmul.f32 %v2129, %v2179
      %v2196 = vmul.f32 %v2132, %v2180
      %v2197 = vmul.f32 %v2137, %v2181
      %v2198 = vmul.f32 %v2140, %v2182
      %v2199 = vmul.f32 %v2145, %v2183
      %v2200 = vmul.f32 %v2148, %v2184
      %v2201 = vmul.f32 %v2153, %v2185
      %v2202 = vmul.f32 %v2156, %v2186
      %v2203 = vmul.f32 %v2161, %v2187
      %v2204 = vmul.f32 %v2164, %v2188
      %v2205 = vmul.f32 %v2169, %v2189
      %v2206 = vmul.f32 %v2172, %v2190
      %v2207 = vpack.c.bf16 %v2192, %v2191
      %v2208 = vpack.c.bf16 %v2194, %v2193
      %v2209 = vpack.c.bf16 %v2196, %v2195
      %v2210 = vpack.c.bf16 %v2198, %v2197
      %v2211 = vpack.c.bf16 %v2200, %v2199
      %v2212 = vpack.c.bf16 %v2202, %v2201
      %v2213 = vpack.c.bf16 %v2204, %v2203
      %v2214 = vpack.c.bf16 %v2206, %v2205
      %2223 = vrot.lane.b32.xlu0 %v2207, 16
      %v2224 = vpop.permute.xlu0 %2223
      %2225 = vrot.lane.b32.xlu0 %v2208, 16
      %v2226 = vpop.permute.xlu0 %2225
      %2227 = vrot.lane.b32.xlu0 %v2209, 16
      %v2228 = vpop.permute.xlu0 %2227
      %2229 = vrot.lane.b32.xlu0 %v2210, 16
      %v2230 = vpop.permute.xlu0 %2229
      %2231 = vrot.lane.b32.xlu0 %v2211, 16
      %v2232 = vpop.permute.xlu0 %2231
      %2233 = vrot.lane.b32.xlu0 %v2212, 16
      %v2234 = vpop.permute.xlu0 %2233
      %2235 = vrot.lane.b32.xlu0 %v2213, 16
      %v2236 = vpop.permute.xlu0 %2235
      %2237 = vrot.lane.b32.xlu0 %v2214, 16
      %v2238 = vpop.permute.xlu0 %2237
      %vm2247 = vcmask 195712
      %2248 = vst.msk [vmem:[#allocation3] sm:$0xff] %vm2247, %v2224
      %2249 = vst.msk [vmem:[#allocation3 + $0x8] sm:$0xff] %vm2247, %v2226
      %2250 = vst.msk [vmem:[#allocation3 + $0x10] sm:$0xff] %vm2247, %v2228
      %2251 = vst.msk [vmem:[#allocation3 + $0x18] sm:$0xff] %vm2247, %v2230
      %2252 = vst.msk [vmem:[#allocation3 + $0x20] sm:$0xff] %vm2247, %v2232
      %2253 = vst.msk [vmem:[#allocation3 + $0x28] sm:$0xff] %vm2247, %v2234
      %2254 = vst.msk [vmem:[#allocation3 + $0x30] sm:$0xff] %vm2247, %v2236
      %2255 = vst.msk [vmem:[#allocation3 + $0x38] sm:$0xff] %vm2247, %v2238
      %v2256 = vld [vmem:[#allocation2] sm:$0xff]
      %v2257 = vld [vmem:[#allocation2 + $0x8] sm:$0xff]
      %v2258 = vld [vmem:[#allocation2 + $0x10] sm:$0xff]
      %v2259 = vld [vmem:[#allocation2 + $0x18] sm:$0xff]
      %v2260 = vld [vmem:[#allocation2 + $0x20] sm:$0xff]
      %v2261 = vld [vmem:[#allocation2 + $0x28] sm:$0xff]
      %v2262 = vld [vmem:[#allocation2 + $0x30] sm:$0xff]
      %v2263 = vld [vmem:[#allocation2 + $0x38] sm:$0xff]
      %v2264 = vld [vmem:[%s315] sm:$0xf]
      %v2265 = vld [vmem:[%s315 + $0x4] sm:$0xf]
      %v2266 = vld [vmem:[%s315 + $0x8] sm:$0xf]
      %v2267 = vld [vmem:[%s315 + $0xc] sm:$0xf]
      %v2268 = vld [vmem:[%s315 + $0x10] sm:$0xf]
      %v2269 = vld [vmem:[%s315 + $0x14] sm:$0xf]
      %v2270 = vld [vmem:[%s315 + $0x18] sm:$0xf]
      %v2271 = vld [vmem:[%s315 + $0x1c] sm:$0xf]
      %v2272 = vld [vmem:[%s320] sm:$0xf]
      %v2273 = vld [vmem:[%s320 + $0x4] sm:$0xf]
      %v2274 = vld [vmem:[%s320 + $0x8] sm:$0xf]
      %v2275 = vld [vmem:[%s320 + $0xc] sm:$0xf]
      %v2276 = vld [vmem:[%s320 + $0x10] sm:$0xf]
      %v2277 = vld [vmem:[%s320 + $0x14] sm:$0xf]
      %v2278 = vld [vmem:[%s320 + $0x18] sm:$0xf]
      %v2279 = vld [vmem:[%s320 + $0x1c] sm:$0xf]
      %2288 = vrot.lane.b32.xlu0 %v2256, 104
      %v2289 = vpop.permute.xlu0 %2288
      %2290 = vrot.lane.b32.xlu0 %v2257, 104
      %v2291 = vpop.permute.xlu0 %2290
      %2292 = vrot.lane.b32.xlu0 %v2258, 104
      %v2293 = vpop.permute.xlu0 %2292
      %2294 = vrot.lane.b32.xlu0 %v2259, 104
      %v2295 = vpop.permute.xlu0 %2294
      %2296 = vrot.lane.b32.xlu0 %v2260, 104
      %v2297 = vpop.permute.xlu0 %2296
      %2298 = vrot.lane.b32.xlu0 %v2261, 104
      %v2299 = vpop.permute.xlu0 %2298
      %2300 = vrot.lane.b32.xlu0 %v2262, 104
      %v2301 = vpop.permute.xlu0 %2300
      %2302 = vrot.lane.b32.xlu0 %v2263, 104
      %v2303 = vpop.permute.xlu0 %2302
      %v2312 = vunpack.c.l.b16 %v2264
      %v2313 = vunpack.c.l.b16 %v2265
      %v2314 = vunpack.c.l.b16 %v2266
      %v2315 = vunpack.c.l.b16 %v2267
      %v2316 = vunpack.c.l.b16 %v2268
      %v2317 = vunpack.c.l.b16 %v2269
      %v2318 = vunpack.c.l.b16 %v2270
      %v2319 = vunpack.c.l.b16 %v2271
      %v2320 = vpack.c.b16 %v2313, %v2312
      %v2321 = vpack.c.b16 %v2315, %v2314
      %v2322 = vpack.c.b16 %v2317, %v2316
      %v2323 = vpack.c.b16 %v2319, %v2318
      %2324 = vrot.lane.b32.xlu0 %v2320, 104
      %v2325 = vpop.permute.xlu0 %2324
      %2326 = vrot.lane.b32.xlu0 %v2321, 104
      %v2327 = vpop.permute.xlu0 %2326
      %2328 = vrot.lane.b32.xlu0 %v2322, 104
      %v2329 = vpop.permute.xlu0 %2328
      %2330 = vrot.lane.b32.xlu0 %v2323, 104
      %v2331 = vpop.permute.xlu0 %2330
      %v2333 = vsel %vm586, %v2289, 0
      %v2336 = vsel %vm586, %v2291, 0
      %v2339 = vsel %vm586, %v2293, 0
      %v2342 = vsel %vm586, %v2295, 0
      %v2345 = vsel %vm586, %v2297, 0
      %v2348 = vsel %vm586, %v2299, 0
      %v2351 = vsel %vm586, %v2301, 0
      %v2354 = vsel %vm586, %v2303, 0
      %v2357 = vsel %vm586, %v2325, 0
      %v2360 = vsel %vm586, %v2327, 0
      %v2363 = vsel %vm586, %v2329, 0
      %v2366 = vsel %vm586, %v2331, 0
      %2368 = vmatprep.subr.bf16.mxu0 0
      %2369 = vmatpush1.bf16.xpose.msra.mxu0 %v2357
      %2370 = vmatprep.subr.bf16.mxu0 0
      %2371 = vmatpush1.bf16.xpose.msra.mxu0 %v2360
      %2372 = vmatprep.subr.bf16.mxu0 0
      %2373 = vmatpush1.bf16.xpose.msra.mxu0 %v2363
      %2374 = vmatprep.subr.bf16.mxu0 0
      %2375 = vmatpush1.bf16.xpose.msra.mxu0 %v2366
      %2376 = vmatprep.subr.bf16.mxu0 0
      %2377 = vmatpush1.bf16.xpose.msra.mxu0 0
      %2378 = vmatprep.subr.bf16.mxu0 0
      %2379 = vmatpush1.bf16.xpose.msra.mxu0 0
      %2380 = vmatprep.subr.bf16.mxu0 0
      %2381 = vmatpush1.bf16.xpose.msra.mxu0 0
      %2382 = vmatprep.subr.bf16.mxu0 0
      %2383 = vmatpush1.bf16.xpose.msra.mxu0 0
      %2384 = vmatprep.subr.bf16.mxu0 0
      %2385 = vmatpush1.bf16.xpose.msra.mxu0 0
      %2386 = vmatprep.subr.bf16.mxu0 0
      %2387 = vmatpush1.bf16.xpose.msra.mxu0 0
      %2388 = vmatprep.subr.bf16.mxu0 0
      %2389 = vmatpush1.bf16.xpose.msra.mxu0 0
      %2390 = vmatprep.subr.bf16.mxu0 0
      %2391 = vmatpush1.bf16.xpose.msra.mxu0 0
      %2392 = vmatprep.subr.bf16.mxu0 0
      %2393 = vmatpush1.bf16.xpose.msra.mxu0 0
      %2394 = vmatprep.subr.bf16.mxu0 0
      %2395 = vmatpush1.bf16.xpose.msra.mxu0 0
      %2396 = vmatprep.subr.bf16.mxu0 0
      %2397 = vmatpush1.bf16.xpose.msra.mxu0 0
      %2398 = vmatprep.subr.bf16.mxu0 0
      %2399 = vmatpush1.bf16.xpose.msra.mxu0 0
      %2400 = vmatprep.mubr.bf16.mxu0 0
      %2401 = vmatmul.mubr.bf16.gmra.mrb[0].mxu0 %v2333
      %v2402 = vpop.f32.mrb[0].mxu0
      %v2403 = vadd.f32 0.0, %v2402
      %v2404 = vpop.f32.mrb[0].mxu0
      %v2405 = vpop.f32.mrb[0].mxu0
      %v2406 = vadd.f32 0.0, %v2405
      %v2407 = vpop.f32.mrb[0].mxu0
      %2408 = vmatprep.mubr.bf16.mxu0 0
      %2409 = vmatmul.mubr.bf16.gmra.mrb[0].mxu0 %v2336
      %v2410 = vpop.f32.mrb[0].mxu0
      %v2411 = vadd.f32 0.0, %v2410
      %v2412 = vpop.f32.mrb[0].mxu0
      %v2413 = vpop.f32.mrb[0].mxu0
      %v2414 = vadd.f32 0.0, %v2413
      %v2415 = vpop.f32.mrb[0].mxu0
      %2416 = vmatprep.mubr.bf16.mxu0 0
      %2417 = vmatmul.mubr.bf16.gmra.mrb[0].mxu0 %v2339
      %v2418 = vpop.f32.mrb[0].mxu0
      %v2419 = vadd.f32 0.0, %v2418
      %v2420 = vpop.f32.mrb[0].mxu0
      %v2421 = vpop.f32.mrb[0].mxu0
      %v2422 = vadd.f32 0.0, %v2421
      %v2423 = vpop.f32.mrb[0].mxu0
      %2424 = vmatprep.mubr.bf16.mxu0 0
      %2425 = vmatmul.mubr.bf16.gmra.mrb[0].mxu0 %v2342
      %v2426 = vpop.f32.mrb[0].mxu0
      %v2427 = vadd.f32 0.0, %v2426
      %v2428 = vpop.f32.mrb[0].mxu0
      %v2429 = vpop.f32.mrb[0].mxu0
      %v2430 = vadd.f32 0.0, %v2429
      %v2431 = vpop.f32.mrb[0].mxu0
      %2432 = vmatprep.mubr.bf16.mxu0 0
      %2433 = vmatmul.mubr.bf16.gmra.mrb[0].mxu0 %v2345
      %v2434 = vpop.f32.mrb[0].mxu0
      %v2435 = vadd.f32 0.0, %v2434
      %v2436 = vpop.f32.mrb[0].mxu0
      %v2437 = vpop.f32.mrb[0].mxu0
      %v2438 = vadd.f32 0.0, %v2437
      %v2439 = vpop.f32.mrb[0].mxu0
      %2440 = vmatprep.mubr.bf16.mxu0 0
      %2441 = vmatmul.mubr.bf16.gmra.mrb[0].mxu0 %v2348
      %v2442 = vpop.f32.mrb[0].mxu0
      %v2443 = vadd.f32 0.0, %v2442
      %v2444 = vpop.f32.mrb[0].mxu0
      %v2445 = vpop.f32.mrb[0].mxu0
      %v2446 = vadd.f32 0.0, %v2445
      %v2447 = vpop.f32.mrb[0].mxu0
      %2448 = vmatprep.mubr.bf16.mxu0 0
      %2449 = vmatmul.mubr.bf16.gmra.mrb[0].mxu0 %v2351
      %v2450 = vpop.f32.mrb[0].mxu0
      %v2451 = vadd.f32 0.0, %v2450
      %v2452 = vpop.f32.mrb[0].mxu0
      %v2453 = vpop.f32.mrb[0].mxu0
      %v2454 = vadd.f32 0.0, %v2453
      %v2455 = vpop.f32.mrb[0].mxu0
      %2456 = vmatprep.mubr.bf16.mxu0 0
      %2457 = vmatmul.mubr.bf16.gmra.mrb[0].mxu0 %v2354
      %v2458 = vpop.f32.mrb[0].mxu0
      %v2459 = vadd.f32 0.0, %v2458
      %v2460 = vpop.f32.mrb[0].mxu0
      %v2461 = vpop.f32.mrb[0].mxu0
      %v2462 = vadd.f32 0.0, %v2461
      %v2463 = vpop.f32.mrb[0].mxu0
      %2464 = vdwg.mxu0
      %v2465 = vsel %vm720, %v2403, -inf
      %2466 = vmax.xlane.f32.xlu0 %v2465
      %v2467 = vpop.xlane.xlu0 %2466
      %v2468 = vsel %vm720, %v2406, -inf
      %2469 = vmax.xlane.f32.xlu0 %v2468
      %v2470 = vpop.xlane.xlu0 %2469
      %v2471 = vsel %vm720, %v2411, -inf
      %2472 = vmax.xlane.f32.xlu0 %v2471
      %v2473 = vpop.xlane.xlu0 %2472
      %v2474 = vsel %vm720, %v2414, -inf
      %2475 = vmax.xlane.f32.xlu0 %v2474
      %v2476 = vpop.xlane.xlu0 %2475
      %v2477 = vsel %vm720, %v2419, -inf
      %2478 = vmax.xlane.f32.xlu0 %v2477
      %v2479 = vpop.xlane.xlu0 %2478
      %v2480 = vsel %vm720, %v2422, -inf
      %2481 = vmax.xlane.f32.xlu0 %v2480
      %v2482 = vpop.xlane.xlu0 %2481
      %v2483 = vsel %vm720, %v2427, -inf
      %2484 = vmax.xlane.f32.xlu0 %v2483
      %v2485 = vpop.xlane.xlu0 %2484
      %v2486 = vsel %vm720, %v2430, -inf
      %2487 = vmax.xlane.f32.xlu0 %v2486
      %v2488 = vpop.xlane.xlu0 %2487
      %v2489 = vsel %vm720, %v2435, -inf
      %2490 = vmax.xlane.f32.xlu0 %v2489
      %v2491 = vpop.xlane.xlu0 %2490
      %v2492 = vsel %vm720, %v2438, -inf
      %2493 = vmax.xlane.f32.xlu0 %v2492
      %v2494 = vpop.xlane.xlu0 %2493
      %v2495 = vsel %vm720, %v2443, -inf
      %2496 = vmax.xlane.f32.xlu0 %v2495
      %v2497 = vpop.xlane.xlu0 %2496
      %v2498 = vsel %vm720, %v2446, -inf
      %2499 = vmax.xlane.f32.xlu0 %v2498
      %v2500 = vpop.xlane.xlu0 %2499
      %v2501 = vsel %vm720, %v2451, -inf
      %2502 = vmax.xlane.f32.xlu0 %v2501
      %v2503 = vpop.xlane.xlu0 %2502
      %v2504 = vsel %vm720, %v2454, -inf
      %2505 = vmax.xlane.f32.xlu0 %v2504
      %v2506 = vpop.xlane.xlu0 %2505
      %v2507 = vsel %vm720, %v2459, -inf
      %2508 = vmax.xlane.f32.xlu0 %v2507
      %v2509 = vpop.xlane.xlu0 %2508
      %v2510 = vsel %vm720, %v2462, -inf
      %2511 = vmax.xlane.f32.xlu0 %v2510
      %v2512 = vpop.xlane.xlu0 %2511
      %v2513 = vsub.f32 %v2403, %v2467
      %v2514 = vsub.f32 %v2406, %v2470
      %v2515 = vsub.f32 %v2411, %v2473
      %v2516 = vsub.f32 %v2414, %v2476
      %v2517 = vsub.f32 %v2419, %v2479
      %v2518 = vsub.f32 %v2422, %v2482
      %v2519 = vsub.f32 %v2427, %v2485
      %v2520 = vsub.f32 %v2430, %v2488
      %v2521 = vsub.f32 %v2435, %v2491
      %v2522 = vsub.f32 %v2438, %v2494
      %v2523 = vsub.f32 %v2443, %v2497
      %v2524 = vsub.f32 %v2446, %v2500
      %v2525 = vsub.f32 %v2451, %v2503
      %v2526 = vsub.f32 %v2454, %v2506
      %v2527 = vsub.f32 %v2459, %v2509
      %v2528 = vsub.f32 %v2462, %v2512
      %v2529 = vmul.f32 %v2513, 1.442695
      %v2530 = vpow.pop %v2529
      %v2531 = vmul.f32 %v2514, 1.442695
      %v2532 = vpow.pop %v2531
      %v2533 = vmul.f32 %v2515, 1.442695
      %v2534 = vpow.pop %v2533
      %v2535 = vmul.f32 %v2516, 1.442695
      %v2536 = vpow.pop %v2535
      %v2537 = vmul.f32 %v2517, 1.442695
      %v2538 = vpow.pop %v2537
      %v2539 = vmul.f32 %v2518, 1.442695
      %v2540 = vpow.pop %v2539
      %v2541 = vmul.f32 %v2519, 1.442695
      %v2542 = vpow.pop %v2541
      %v2543 = vmul.f32 %v2520, 1.442695
      %v2544 = vpow.pop %v2543
      %v2545 = vmul.f32 %v2521, 1.442695
      %v2546 = vpow.pop %v2545
      %v2547 = vmul.f32 %v2522, 1.442695
      %v2548 = vpow.pop %v2547
      %v2549 = vmul.f32 %v2523, 1.442695
      %v2550 = vpow.pop %v2549
      %v2551 = vmul.f32 %v2524, 1.442695
      %v2552 = vpow.pop %v2551
      %v2553 = vmul.f32 %v2525, 1.442695
      %v2554 = vpow.pop %v2553
      %v2555 = vmul.f32 %v2526, 1.442695
      %v2556 = vpow.pop %v2555
      %v2557 = vmul.f32 %v2527, 1.442695
      %v2558 = vpow.pop %v2557
      %v2559 = vmul.f32 %v2528, 1.442695
      %v2560 = vpow.pop %v2559
      %v2561 = vsel %vm720, %v2530, 0.0
      %2562 = vadd.xlane.f32.xlu0 %v2561
      %v2563 = vpop.xlane.xlu0 %2562
      %v2564 = vsel %vm720, %v2532, 0.0
      %2565 = vadd.xlane.f32.xlu0 %v2564
      %v2566 = vpop.xlane.xlu0 %2565
      %v2567 = vsel %vm720, %v2534, 0.0
      %2568 = vadd.xlane.f32.xlu0 %v2567
      %v2569 = vpop.xlane.xlu0 %2568
      %v2570 = vsel %vm720, %v2536, 0.0
      %2571 = vadd.xlane.f32.xlu0 %v2570
      %v2572 = vpop.xlane.xlu0 %2571
      %v2573 = vsel %vm720, %v2538, 0.0
      %2574 = vadd.xlane.f32.xlu0 %v2573
      %v2575 = vpop.xlane.xlu0 %2574
      %v2576 = vsel %vm720, %v2540, 0.0
      %2577 = vadd.xlane.f32.xlu0 %v2576
      %v2578 = vpop.xlane.xlu0 %2577
      %v2579 = vsel %vm720, %v2542, 0.0
      %2580 = vadd.xlane.f32.xlu0 %v2579
      %v2581 = vpop.xlane.xlu0 %2580
      %v2582 = vsel %vm720, %v2544, 0.0
      %2583 = vadd.xlane.f32.xlu0 %v2582
      %v2584 = vpop.xlane.xlu0 %2583
      %v2585 = vsel %vm720, %v2546, 0.0
      %2586 = vadd.xlane.f32.xlu0 %v2585
      %v2587 = vpop.xlane.xlu0 %2586
      %v2588 = vsel %vm720, %v2548, 0.0
      %2589 = vadd.xlane.f32.xlu0 %v2588
      %v2590 = vpop.xlane.xlu0 %2589
      %v2591 = vsel %vm720, %v2550, 0.0
      %2592 = vadd.xlane.f32.xlu0 %v2591
      %v2593 = vpop.xlane.xlu0 %2592
      %v2594 = vsel %vm720, %v2552, 0.0
      %2595 = vadd.xlane.f32.xlu0 %v2594
      %v2596 = vpop.xlane.xlu0 %2595
      %v2597 = vsel %vm720, %v2554, 0.0
      %2598 = vadd.xlane.f32.xlu0 %v2597
      %v2599 = vpop.xlane.xlu0 %2598
      %v2600 = vsel %vm720, %v2556, 0.0
      %2601 = vadd.xlane.f32.xlu0 %v2600
      %v2602 = vpop.xlane.xlu0 %2601
      %v2603 = vsel %vm720, %v2558, 0.0
      %2604 = vadd.xlane.f32.xlu0 %v2603
      %v2605 = vpop.xlane.xlu0 %2604
      %v2606 = vsel %vm720, %v2560, 0.0
      %2607 = vadd.xlane.f32.xlu0 %v2606
      %v2608 = vpop.xlane.xlu0 %2607
      %v2609 = vpack.c.bf16 %v2532, %v2530
      %v2610 = vpack.c.bf16 %v2536, %v2534
      %v2611 = vpack.c.bf16 %v2540, %v2538
      %v2612 = vpack.c.bf16 %v2544, %v2542
      %v2613 = vpack.c.bf16 %v2548, %v2546
      %v2614 = vpack.c.bf16 %v2552, %v2550
      %v2615 = vpack.c.bf16 %v2556, %v2554
      %v2616 = vpack.c.bf16 %v2560, %v2558
      %v2625 = vunpack.c.l.b16 %v2272
      %v2626 = vunpack.c.l.b16 %v2273
      %v2627 = vunpack.c.l.b16 %v2274
      %v2628 = vunpack.c.l.b16 %v2275
      %v2629 = vunpack.c.l.b16 %v2276
      %v2630 = vunpack.c.l.b16 %v2277
      %v2631 = vunpack.c.l.b16 %v2278
      %v2632 = vunpack.c.l.b16 %v2279
      %v2633 = vpack.c.b16 %v2626, %v2625
      %v2634 = vpack.c.b16 %v2628, %v2627
      %v2635 = vpack.c.b16 %v2630, %v2629
      %v2636 = vpack.c.b16 %v2632, %v2631
      %2637 = vrot.lane.b32.xlu0 %v2633, 104
      %v2638 = vpop.permute.xlu0 %2637
      %2639 = vrot.lane.b32.xlu0 %v2634, 104
      %v2640 = vpop.permute.xlu0 %2639
      %2641 = vrot.lane.b32.xlu0 %v2635, 104
      %v2642 = vpop.permute.xlu0 %2641
      %2643 = vrot.lane.b32.xlu0 %v2636, 104
      %v2644 = vpop.permute.xlu0 %2643
      %v2650 = vsel %vm720, %v2609, 0
      %v2653 = vsel %vm720, %v2610, 0
      %v2656 = vsel %vm720, %v2611, 0
      %v2659 = vsel %vm720, %v2612, 0
      %v2662 = vsel %vm720, %v2613, 0
      %v2665 = vsel %vm720, %v2614, 0
      %v2668 = vsel %vm720, %v2615, 0
      %v2671 = vsel %vm720, %v2616, 0
      %2673 = vmatprep.subr.bf16.mxu0 0
      %2674 = vmatpush1.bf16.msra.mxu0 %v2638
      %2675 = vmatprep.subr.bf16.mxu0 0
      %2676 = vmatpush1.bf16.msra.mxu0 %v2640
      %2677 = vmatprep.subr.bf16.mxu0 0
      %2678 = vmatpush1.bf16.msra.mxu0 %v2642
      %2679 = vmatprep.subr.bf16.mxu0 0
      %2680 = vmatpush1.bf16.msra.mxu0 %v2644
      %2681 = vmatprep.subr.bf16.mxu0 0
      %2682 = vmatpush1.bf16.msra.mxu0 0
      %2683 = vmatprep.subr.bf16.mxu0 0
      %2684 = vmatpush1.bf16.msra.mxu0 0
      %2685 = vmatprep.subr.bf16.mxu0 0
      %2686 = vmatpush1.bf16.msra.mxu0 0
      %2687 = vmatprep.subr.bf16.mxu0 0
      %2688 = vmatpush1.bf16.msra.mxu0 0
      %2689 = vmatprep.subr.bf16.mxu0 0
      %2690 = vmatpush1.bf16.msra.mxu0 0
      %2691 = vmatprep.subr.bf16.mxu0 0
      %2692 = vmatpush1.bf16.msra.mxu0 0
      %2693 = vmatprep.subr.bf16.mxu0 0
      %2694 = vmatpush1.bf16.msra.mxu0 0
      %2695 = vmatprep.subr.bf16.mxu0 0
      %2696 = vmatpush1.bf16.msra.mxu0 0
      %2697 = vmatprep.subr.bf16.mxu0 0
      %2698 = vmatpush1.bf16.msra.mxu0 0
      %2699 = vmatprep.subr.bf16.mxu0 0
      %2700 = vmatpush1.bf16.msra.mxu0 0
      %2701 = vmatprep.subr.bf16.mxu0 0
      %2702 = vmatpush1.bf16.msra.mxu0 0
      %2703 = vmatprep.subr.bf16.mxu0 0
      %2704 = vmatpush1.bf16.msra.mxu0 0
      %2705 = vmatprep.mubr.bf16.mxu0 0
      %2706 = vmatmul.mubr.bf16.gmra.mrb[0].mxu0 %v2650
      %v2707 = vpop.f32.mrb[0].mxu0
      %v2708 = vadd.f32 0.0, %v2707
      %v2709 = vpop.f32.mrb[0].mxu0
      %v2710 = vpop.f32.mrb[0].mxu0
      %v2711 = vadd.f32 0.0, %v2710
      %v2712 = vpop.f32.mrb[0].mxu0
      %2713 = vmatprep.mubr.bf16.mxu0 0
      %2714 = vmatmul.mubr.bf16.gmra.mrb[0].mxu0 %v2653
      %v2715 = vpop.f32.mrb[0].mxu0
      %v2716 = vadd.f32 0.0, %v2715
      %v2717 = vpop.f32.mrb[0].mxu0
      %v2718 = vpop.f32.mrb[0].mxu0
      %v2719 = vadd.f32 0.0, %v2718
      %v2720 = vpop.f32.mrb[0].mxu0
      %2721 = vmatprep.mubr.bf16.mxu0 0
      %2722 = vmatmul.mubr.bf16.gmra.mrb[0].mxu0 %v2656
      %v2723 = vpop.f32.mrb[0].mxu0
      %v2724 = vadd.f32 0.0, %v2723
      %v2725 = vpop.f32.mrb[0].mxu0
      %v2726 = vpop.f32.mrb[0].mxu0
      %v2727 = vadd.f32 0.0, %v2726
      %v2728 = vpop.f32.mrb[0].mxu0
      %2729 = vmatprep.mubr.bf16.mxu0 0
      %2730 = vmatmul.mubr.bf16.gmra.mrb[0].mxu0 %v2659
      %v2731 = vpop.f32.mrb[0].mxu0
      %v2732 = vadd.f32 0.0, %v2731
      %v2733 = vpop.f32.mrb[0].mxu0
      %v2734 = vpop.f32.mrb[0].mxu0
      %v2735 = vadd.f32 0.0, %v2734
      %v2736 = vpop.f32.mrb[0].mxu0
      %2737 = vmatprep.mubr.bf16.mxu0 0
      %2738 = vmatmul.mubr.bf16.gmra.mrb[0].mxu0 %v2662
      %v2739 = vpop.f32.mrb[0].mxu0
      %v2740 = vadd.f32 0.0, %v2739
      %v2741 = vpop.f32.mrb[0].mxu0
      %v2742 = vpop.f32.mrb[0].mxu0
      %v2743 = vadd.f32 0.0, %v2742
      %v2744 = vpop.f32.mrb[0].mxu0
      %2745 = vmatprep.mubr.bf16.mxu0 0
      %2746 = vmatmul.mubr.bf16.gmra.mrb[0].mxu0 %v2665
      %v2747 = vpop.f32.mrb[0].mxu0
      %v2748 = vadd.f32 0.0, %v2747
      %v2749 = vpop.f32.mrb[0].mxu0
      %v2750 = vpop.f32.mrb[0].mxu0
      %v2751 = vadd.f32 0.0, %v2750
      %v2752 = vpop.f32.mrb[0].mxu0
      %2753 = vmatprep.mubr.bf16.mxu0 0
      %2754 = vmatmul.mubr.bf16.gmra.mrb[0].mxu0 %v2668
      %v2755 = vpop.f32.mrb[0].mxu0
      %v2756 = vadd.f32 0.0, %v2755
      %v2757 = vpop.f32.mrb[0].mxu0
      %v2758 = vpop.f32.mrb[0].mxu0
      %v2759 = vadd.f32 0.0, %v2758
      %v2760 = vpop.f32.mrb[0].mxu0
      %2761 = vmatprep.mubr.bf16.mxu0 0
      %2762 = vmatmul.mubr.bf16.gmra.mrb[0].mxu0 %v2671
      %v2763 = vpop.f32.mrb[0].mxu0
      %v2764 = vadd.f32 0.0, %v2763
      %v2765 = vpop.f32.mrb[0].mxu0
      %v2766 = vpop.f32.mrb[0].mxu0
      %v2767 = vadd.f32 0.0, %v2766
      %v2768 = vpop.f32.mrb[0].mxu0
      %2769 = vdwg.mxu0
      %v2770 = vrcp.pop %v2563
      %v2771 = vrcp.pop %v2566
      %v2772 = vrcp.pop %v2569
      %v2773 = vrcp.pop %v2572
      %v2774 = vrcp.pop %v2575
      %v2775 = vrcp.pop %v2578
      %v2776 = vrcp.pop %v2581
      %v2777 = vrcp.pop %v2584
      %v2778 = vrcp.pop %v2587
      %v2779 = vrcp.pop %v2590
      %v2780 = vrcp.pop %v2593
      %v2781 = vrcp.pop %v2596
      %v2782 = vrcp.pop %v2599
      %v2783 = vrcp.pop %v2602
      %v2784 = vrcp.pop %v2605
      %v2785 = vrcp.pop %v2608
      %v2786 = vmul.f32 %v2708, %v2770
      %v2787 = vmul.f32 %v2711, %v2771
      %v2788 = vmul.f32 %v2716, %v2772
      %v2789 = vmul.f32 %v2719, %v2773
      %v2790 = vmul.f32 %v2724, %v2774
      %v2791 = vmul.f32 %v2727, %v2775
      %v2792 = vmul.f32 %v2732, %v2776
      %v2793 = vmul.f32 %v2735, %v2777
      %v2794 = vmul.f32 %v2740, %v2778
      %v2795 = vmul.f32 %v2743, %v2779
      %v2796 = vmul.f32 %v2748, %v2780
      %v2797 = vmul.f32 %v2751, %v2781
      %v2798 = vmul.f32 %v2756, %v2782
      %v2799 = vmul.f32 %v2759, %v2783
      %v2800 = vmul.f32 %v2764, %v2784
      %v2801 = vmul.f32 %v2767, %v2785
      %v2802 = vpack.c.bf16 %v2787, %v2786
      %v2803 = vpack.c.bf16 %v2789, %v2788
      %v2804 = vpack.c.bf16 %v2791, %v2790
      %v2805 = vpack.c.bf16 %v2793, %v2792
      %v2806 = vpack.c.bf16 %v2795, %v2794
      %v2807 = vpack.c.bf16 %v2797, %v2796
      %v2808 = vpack.c.bf16 %v2799, %v2798
      %v2809 = vpack.c.bf16 %v2801, %v2800
      %2818 = vrot.lane.b32.xlu0 %v2802, 24
      %v2819 = vpop.permute.xlu0 %2818
      %2820 = vrot.lane.b32.xlu0 %v2803, 24
      %v2821 = vpop.permute.xlu0 %2820
      %2822 = vrot.lane.b32.xlu0 %v2804, 24
      %v2823 = vpop.permute.xlu0 %2822
      %2824 = vrot.lane.b32.xlu0 %v2805, 24
      %v2825 = vpop.permute.xlu0 %2824
      %2826 = vrot.lane.b32.xlu0 %v2806, 24
      %v2827 = vpop.permute.xlu0 %2826
      %2828 = vrot.lane.b32.xlu0 %v2807, 24
      %v2829 = vpop.permute.xlu0 %2828
      %2830 = vrot.lane.b32.xlu0 %v2808, 24
      %v2831 = vpop.permute.xlu0 %2830
      %2832 = vrot.lane.b32.xlu0 %v2809, 24
      %v2833 = vpop.permute.xlu0 %2832
      %vm2842 = vcmask 261312
      %2843 = vst.msk [vmem:[#allocation3] sm:$0xff] %vm2842, %v2819
      %2844 = vst.msk [vmem:[#allocation3 + $0x8] sm:$0xff] %vm2842, %v2821
      %2845 = vst.msk [vmem:[#allocation3 + $0x10] sm:$0xff] %vm2842, %v2823
      %2846 = vst.msk [vmem:[#allocation3 + $0x18] sm:$0xff] %vm2842, %v2825
      %2847 = vst.msk [vmem:[#allocation3 + $0x20] sm:$0xff] %vm2842, %v2827
      %2848 = vst.msk [vmem:[#allocation3 + $0x28] sm:$0xff] %vm2842, %v2829
      %2849 = vst.msk [vmem:[#allocation3 + $0x30] sm:$0xff] %vm2842, %v2831
      %2850 = vst.msk [vmem:[#allocation3 + $0x38] sm:$0xff] %vm2842, %v2833
      %v2851 = vld [vmem:[#allocation3] sm:$0xff]
      %v2852 = vld [vmem:[#allocation3 + $0x8] sm:$0xff]
      %v2853 = vld [vmem:[#allocation3 + $0x10] sm:$0xff]
      %v2854 = vld [vmem:[#allocation3 + $0x18] sm:$0xff]
      %v2855 = vld [vmem:[#allocation3 + $0x20] sm:$0xff]
      %v2856 = vld [vmem:[#allocation3 + $0x28] sm:$0xff]
      %v2857 = vld [vmem:[#allocation3 + $0x30] sm:$0xff]
      %v2858 = vld [vmem:[#allocation3 + $0x38] sm:$0xff]
      %v2859 = vld [vmem:[%s4] sm:$0xf]
      %v2860 = vld [vmem:[%s4 + $0x4] sm:$0xf]
      %v2861 = vld [vmem:[%s4 + $0x8] sm:$0xf]
      %v2862 = vld [vmem:[%s4 + $0xc] sm:$0xf]
      %v2863 = vld [vmem:[%s5] sm:$0x1]
      %v2865 = vlaneseq
      %v2866 = vshrl.u32 %v2865, 7
      %v2867 = vsub.s32 0, %v2866
      %v2868 = vrot.slane %v2863, %v2867
      %v2874 = vunpack.c.l.b16 %v2859
      %v2875 = vunpack.c.l.b16 %v2860
      %v2876 = vunpack.c.l.b16 %v2861
      %v2877 = vunpack.c.l.b16 %v2862
      %v2878 = vpack.c.b16 %v2875, %v2874
      %v2879 = vpack.c.b16 %v2877, %v2876
      %v2883 = vsel %vm404, %v2851, 0
      %v2886 = vsel %vm404, %v2852, 0
      %v2889 = vsel %vm404, %v2853, 0
      %v2892 = vsel %vm404, %v2854, 0
      %v2895 = vsel %vm404, %v2855, 0
      %v2898 = vsel %vm404, %v2856, 0
      %v2901 = vsel %vm404, %v2857, 0
      %v2904 = vsel %vm404, %v2858, 0
      %2906 = vmatprep.subr.bf16.mxu0 0
      %2907 = vmatpush1.bf16.msra.mxu0 %v2878
      %2908 = vmatprep.subr.bf16.mxu0 0
      %2909 = vmatpush1.bf16.msra.mxu0 %v2879
      %2910 = vmatprep.subr.bf16.mxu0 0
      %2911 = vmatpush1.bf16.msra.mxu0 0
      %2912 = vmatprep.subr.bf16.mxu0 0
      %2913 = vmatpush1.bf16.msra.mxu0 0
      %2914 = vmatprep.subr.bf16.mxu0 0
      %2915 = vmatpush1.bf16.msra.mxu0 0
      %2916 = vmatprep.subr.bf16.mxu0 0
      %2917 = vmatpush1.bf16.msra.mxu0 0
      %2918 = vmatprep.subr.bf16.mxu0 0
      %2919 = vmatpush1.bf16.msra.mxu0 0
      %2920 = vmatprep.subr.bf16.mxu0 0
      %2921 = vmatpush1.bf16.msra.mxu0 0
      %2922 = vmatprep.subr.bf16.mxu0 0
      %2923 = vmatpush1.bf16.msra.mxu0 0
      %2924 = vmatprep.subr.bf16.mxu0 0
      %2925 = vmatpush1.bf16.msra.mxu0 0
      %2926 = vmatprep.subr.bf16.mxu0 0
      %2927 = vmatpush1.bf16.msra.mxu0 0
      %2928 = vmatprep.subr.bf16.mxu0 0
      %2929 = vmatpush1.bf16.msra.mxu0 0
      %2930 = vmatprep.subr.bf16.mxu0 0
      %2931 = vmatpush1.bf16.msra.mxu0 0
      %2932 = vmatprep.subr.bf16.mxu0 0
      %2933 = vmatpush1.bf16.msra.mxu0 0
      %2934 = vmatprep.subr.bf16.mxu0 0
      %2935 = vmatpush1.bf16.msra.mxu0 0
      %2936 = vmatprep.subr.bf16.mxu0 0
      %2937 = vmatpush1.bf16.msra.mxu0 0
      %2938 = vmatprep.mubr.bf16.mxu0 0
      %2939 = vmatmul.mubr.bf16.gmra.mrb[0].mxu0 %v2883
      %v2940 = vpop.f32.mrb[0].mxu0
      %v2941 = vadd.f32 %v2868, %v2940
      %v2942 = vpop.f32.mrb[0].mxu0
      %v2943 = vpop.f32.mrb[0].mxu0
      %v2944 = vadd.f32 %v2868, %v2943
      %v2945 = vpop.f32.mrb[0].mxu0
      %2946 = vmatprep.mubr.bf16.mxu0 0
      %2947 = vmatmul.mubr.bf16.gmra.mrb[0].mxu0 %v2886
      %v2948 = vpop.f32.mrb[0].mxu0
      %v2949 = vadd.f32 %v2868, %v2948
      %v2950 = vpop.f32.mrb[0].mxu0
      %v2951 = vpop.f32.mrb[0].mxu0
      %v2952 = vadd.f32 %v2868, %v2951
      %v2953 = vpop.f32.mrb[0].mxu0
      %2954 = vmatprep.mubr.bf16.mxu0 0
      %2955 = vmatmul.mubr.bf16.gmra.mrb[0].mxu0 %v2889
      %v2956 = vpop.f32.mrb[0].mxu0
      %v2957 = vadd.f32 %v2868, %v2956
      %v2958 = vpop.f32.mrb[0].mxu0
      %v2959 = vpop.f32.mrb[0].mxu0
      %v2960 = vadd.f32 %v2868, %v2959
      %v2961 = vpop.f32.mrb[0].mxu0
      %2962 = vmatprep.mubr.bf16.mxu0 0
      %2963 = vmatmul.mubr.bf16.gmra.mrb[0].mxu0 %v2892
      %v2964 = vpop.f32.mrb[0].mxu0
      %v2965 = vadd.f32 %v2868, %v2964
      %v2966 = vpop.f32.mrb[0].mxu0
      %v2967 = vpop.f32.mrb[0].mxu0
      %v2968 = vadd.f32 %v2868, %v2967
      %v2969 = vpop.f32.mrb[0].mxu0
      %2970 = vmatprep.mubr.bf16.mxu0 0
      %2971 = vmatmul.mubr.bf16.gmra.mrb[0].mxu0 %v2895
      %v2972 = vpop.f32.mrb[0].mxu0
      %v2973 = vadd.f32 %v2868, %v2972
      %v2974 = vpop.f32.mrb[0].mxu0
      %v2975 = vpop.f32.mrb[0].mxu0
      %v2976 = vadd.f32 %v2868, %v2975
      %v2977 = vpop.f32.mrb[0].mxu0
      %2978 = vmatprep.mubr.bf16.mxu0 0
      %2979 = vmatmul.mubr.bf16.gmra.mrb[0].mxu0 %v2898
      %v2980 = vpop.f32.mrb[0].mxu0
      %v2981 = vadd.f32 %v2868, %v2980
      %v2982 = vpop.f32.mrb[0].mxu0
      %v2983 = vpop.f32.mrb[0].mxu0
      %v2984 = vadd.f32 %v2868, %v2983
      %v2985 = vpop.f32.mrb[0].mxu0
      %2986 = vmatprep.mubr.bf16.mxu0 0
      %2987 = vmatmul.mubr.bf16.gmra.mrb[0].mxu0 %v2901
      %v2988 = vpop.f32.mrb[0].mxu0
      %v2989 = vadd.f32 %v2868, %v2988
      %v2990 = vpop.f32.mrb[0].mxu0
      %v2991 = vpop.f32.mrb[0].mxu0
      %v2992 = vadd.f32 %v2868, %v2991
      %v2993 = vpop.f32.mrb[0].mxu0
      %2994 = vmatprep.mubr.bf16.mxu0 0
      %2995 = vmatmul.mubr.bf16.gmra.mrb[0].mxu0 %v2904
      %v2996 = vpop.f32.mrb[0].mxu0
      %v2997 = vadd.f32 %v2868, %v2996
      %v2998 = vpop.f32.mrb[0].mxu0
      %v2999 = vpop.f32.mrb[0].mxu0
      %v3000 = vadd.f32 %v2868, %v2999
      %v3001 = vpop.f32.mrb[0].mxu0
      %3002 = vdwg.mxu0
      %3003 = vst.msk [vmem:[%s329] sm:$0xff] %vm404, %v2941
      %3004 = vst.msk [vmem:[%s329 + $0x8] sm:$0xff] %vm404, %v2944
      %3005 = vst.msk [vmem:[%s329 + $0x10] sm:$0xff] %vm404, %v2949
      %3006 = vst.msk [vmem:[%s329 + $0x18] sm:$0xff] %vm404, %v2952
      %3007 = vst.msk [vmem:[%s329 + $0x20] sm:$0xff] %vm404, %v2957
      %3008 = vst.msk [vmem:[%s329 + $0x28] sm:$0xff] %vm404, %v2960
      %3009 = vst.msk [vmem:[%s329 + $0x30] sm:$0xff] %vm404, %v2965
      %3010 = vst.msk [vmem:[%s329 + $0x38] sm:$0xff] %vm404, %v2968
      %3011 = vst.msk [vmem:[%s329 + $0x40] sm:$0xff] %vm404, %v2973
      %3012 = vst.msk [vmem:[%s329 + $0x48] sm:$0xff] %vm404, %v2976
      %3013 = vst.msk [vmem:[%s329 + $0x50] sm:$0xff] %vm404, %v2981
      %3014 = vst.msk [vmem:[%s329 + $0x58] sm:$0xff] %vm404, %v2984
      %3015 = vst.msk [vmem:[%s329 + $0x60] sm:$0xff] %vm404, %v2989
      %3016 = vst.msk [vmem:[%s329 + $0x68] sm:$0xff] %vm404, %v2992
      %3017 = vst.msk [vmem:[%s329 + $0x70] sm:$0xff] %vm404, %v2997
      %3018 = vst.msk [vmem:[%s329 + $0x78] sm:$0xff] %vm404, %v3000
      %s3019 = smul.u32 16, %s22
      %p3020 = scmp.lt.s32.totalorder %s21, 1
      %s3021 = scalar_select %p3020, %s21, 1
      %p3022 = scmp.lt.s32.totalorder %s3019, 31
      %s3023 = scalar_select %p3022, %s3019, 31
      %s3024 = smul.addr %s3021, 32
      %s3025 = sadd.s32 %s3023, %s3024
      %s3026 = smul.addr %s3025, 8
      %s3027 = scalar_lea.vmem %s6, %s3026
      // Predicated region
      $region45: #{attention_pallas.3} parent=43 // pred_check
        %p3028 = pneg %p192
      $region46: #{attention_pallas.3} parent=43 // pred_check_branch
        %3030 = sbr.rel (%p3028) target = $region48
      $region47: #{attention_pallas.3} parent=43 // pred_region
        %s3031 = smul.u32 16, %s22
      $region48: #{attention_pallas.3} parent=43 // pred_fallthru
        _
    $region44: #{attention_pallas.3} parent=5 // pred_fallthru
      _
    %p3032 = scmp.le.s32.totalorder 2, %s12
    // Predicated region
    $region49: #{attention_pallas.3} parent=5 // pred_check
      %p3033 = pneg %p3032
    $region50: #{attention_pallas.3} parent=5 // pred_check_branch
      %3035 = sbr.rel (%p3033) target = $region52
    $region51: #{attention_pallas.3} parent=5 // pred_region
      %s3036 = ssub.s32 %s12, 2
      // Predicated region
      $region53: #{attention_pallas.3} parent=51 // pred_check
        %p3037 = pneg %p198
      $region54: #{attention_pallas.3} parent=51 // pred_check_branch
        %3039 = sbr.rel (%p3037) target = $region56
      $region55: #{attention_pallas.3} parent=51 // pred_region
        %s3040 = smul.u32 16, %s24
        %p3041 = scmp.lt.s32.totalorder %s23, 1
        %s3042 = scalar_select %p3041, %s23, 1
        %p3043 = scmp.lt.s32.totalorder %s3040, 31
        %s3044 = scalar_select %p3043, %s3040, 31
        %s3045 = smul.addr %s3042, 32
        %s3046 = sadd.s32 %s3044, %s3045
        %s3047 = smul.addr %s3046, 8
        %s3048 = scalar_lea.vmem %s6, %s3047
      $region56: #{attention_pallas.3} parent=51 // pred_fallthru
        _
    $region52: #{attention_pallas.3} parent=5 // pred_fallthru
      _
  $region6: #{attention_pallas.3} parent=0 // loop_footer
    %s16 = sadd.s32 1, %s12
  $region7: #{attention_pallas.3} parent=0 // loop_footer_branch
    %11 = sbr.rel target = $region3
  $region8: #{attention_pallas.3} parent=0 // loop_exit
    _

</llo_original>
